<compile_context>
chip_gen: v7x
topology: tpu7x:2x2x1
jax: 0.10.0
libtpu: 0.0.40
codegen_flags: <defaults>
</compile_context>

<pallas_src>
import functools

import jax
import jax.numpy as jnp
from jax import lax
from jax.experimental import pallas as pl
from jax.experimental.pallas import tpu as pltpu

_EPS = 1e-5
_F32 = jnp.float32


# ----------------------------------------------------------------------------
# In-kernel building blocks (operate on VMEM-resident values)
# ----------------------------------------------------------------------------

def _relu_bn(y, gamma, beta, n_rows):
    """ReLU + BatchNorm1d (training-mode batch stats, single pass, biased var)."""
    y = jnp.maximum(y, 0.0)
    inv_n = 1.0 / float(n_rows)
    s1 = jnp.sum(y, axis=0, keepdims=True)
    s2 = jnp.sum(y * y, axis=0, keepdims=True)
    mean = s1 * inv_n
    var = jnp.maximum(s2 * inv_n - mean * mean, 0.0)   # clamp: cancellation can go <0
    return (y - mean) * lax.rsqrt(var + _EPS) * gamma + beta


def _edgeconv_relu_bn(terms, b1, w2, b2, w3, b3, gamma, beta, *, offsets, n_nodes):
    """EdgeConv (edge MLP, max aggregation) + ReLU + BN, fully in VMEM.

    `terms` is a list of (feat (n, c_k), wpack (c_k, 2*H1)) pairs.  Each wpack
    lane-packs the pre-split effective target-side weight (W1_tgt - W1_src) and the
    source-side weight W1_src, so stage 1 is one MXU matmul per input term:
        [x_i, x_j - x_i] @ W1 == x_i @ (W1_tgt - W1_src) + x_j @ W1_src
    The source-side product is expanded from node rows to edge rows with static
    sublane rolls (circulant, offset-major graph), so no (E, C) gather, concat or
    one-hot intermediate ever exists.
    """
    h1 = w2.shape[0]
    hm = None
    for feat, wpack in terms:
        p = jnp.dot(feat, wpack, preferred_element_type=_F32)       # (n, 2*H1)
        hm = p if hm is None else hm + p
    a = hm[:, :h1] + b1       # per-node target-side term  x_i @ (W1_tgt - W1_src) + b1
    xw = hm[:, h1:]           # per-node source-side term  x @ W1_src   (pre-"gather")

    agg = None
    for off in offsets:
        k = (-int(off)) % n_nodes
        # nb[i] = xw[(i + off) % n]  -- the source-node term of the i-th target's edge.
        nb = xw if k == 0 else pltpu.roll(xw, shift=k, axis=0)
        h = jnp.maximum(a + nb, 0.0)
        h = jnp.maximum(jnp.dot(h, w2, preferred_element_type=_F32) + b2, 0.0)
        msg = jnp.dot(h, w3, preferred_element_type=_F32) + b3
        agg = msg if agg is None else jnp.maximum(agg, msg)         # running max-aggr

    return _relu_bn(agg, gamma, beta, n_nodes)


def _make_fused_kernel(static):
    """Build the single fused forward kernel for the whole U-Net block."""
    num_layers = static["num_layers"]
    offsets = static["offsets"]
    n_nodes = static["n_nodes"]

    def kernel(*refs):
        out_ref = refs[-1]
        it = iter(refs[:-1])

        def take(k):
            return [next(it)[...] for _ in range(k)]

        (x,) = take(1)
        skips = []

        # Encoder (left) path: EdgeConv -> ReLU -> BN, then fused cluster avg-pool.
        for i in range(num_layers):
            wpack, b1, w2, b2, w3, b3, g, bt = take(8)
            x = _edgeconv_relu_bn([(x, wpack)], b1, w2, b2, w3, b3, g, bt,
                                  offsets=offsets[i], n_nodes=n_nodes[i])
            skips.append(x)
            if i < num_layers - 1:
                (pool_mat,) = take(1)      # (n_coarse, n_fine), count-normalised
                x = jnp.dot(pool_mat, x, preferred_element_type=_F32)

        # Decoder (right) path: skip concat folded into a K-split of W1
        # (skip @ W1a + cur @ W1b), then cluster unpool via one-hot matmul.
        cur = x
        for j in range(num_layers - 1, -1, -1):
            wpa, wpb, b1, w2, b2, w3, b3, g, bt = take(9)
            cur = _edgeconv_relu_bn([(skips[j], wpa), (cur, wpb)], b1, w2, b2, w3,
                                    b3, g, bt, offsets=offsets[j], n_nodes=n_nodes[j])
            if j > 0:
                (unpool_mat,) = take(1)    # (n_fine, n_coarse) one-hot
                cur = jnp.dot(unpool_mat, cur, preferred_element_type=_F32)

        # Output MLP (fused).
        mw1, mb1, mw2, mb2, mw3, mb3 = take(6)
        h = jnp.maximum(jnp.dot(cur, mw1, preferred_element_type=_F32) + mb1, 0.0)
        h = jnp.maximum(jnp.dot(h, mw2, preferred_element_type=_F32) + mb2, 0.0)
        out_ref[...] = jnp.dot(h, mw3, preferred_element_type=_F32) + mb3

    return kernel


# ----------------------------------------------------------------------------
# Offline parameter prep + the fused forward wrapper (one pallas_call total)
# ----------------------------------------------------------------------------

def prepare_fused(params, clusters, *, offsets, n_nodes, num_layers=2):
    """One-time, un-jitted prep: split & lane-pack W1 slabs, build the normalised
    pool / one-hot unpool matrices, flatten everything in kernel consumption order."""
    flat = []

    def add_conv(conv, norm, k_splits):
        (w1, b1), (w2, b2), (w3, b3) = conv
        gamma, beta = norm
        c_in = w1.shape[0] // 2
        assert sum(k_splits) == c_in
        w1i = w1[:c_in] - w1[c_in:]                 # effective target-side weight
        w1j = w1[c_in:]                             # source-side weight
        s = 0
        for c in k_splits:                          # lane-pack [tgt | src] per K-split
            flat.append(jnp.concatenate([w1i[s:s + c], w1j[s:s + c]], axis=1))
            s += c
        flat.extend([b1, w2, b2, w3, b3, gamma, beta])

    # Encoder levels.
    for i in range(num_layers):
        c_in = params["Lconvs"][i][0][0].shape[0] // 2
        add_conv(params["Lconvs"][i], params["Lnorms"][i], (c_in,))
        if i < num_layers - 1:
            nc = n_nodes[i + 1]
            onehot = jax.nn.one_hot(clusters[i], nc, dtype=_F32)        # (n_fine, nc)
            cnt = jnp.maximum(jnp.sum(onehot, axis=0, keepdims=True), 1.0)
            flat.append((onehot / cnt).T)                               # (nc, n_fine)

    # Decoder levels (consumed coarsest-first).
    for j in range(num_layers - 1, -1, -1):
        c_in = params["Rconvs"][j][0][0].shape[0] // 2
        half = c_in // 2
        add_conv(params["Rconvs"][j], params["Rnorms"][j], (half, c_in - half))
        if j > 0:
            nc = n_nodes[j]
            flat.append(jax.nn.one_hot(clusters[j - 1], nc, dtype=_F32))  # (n_fine, nc)

    # Output MLP.
    for w, b in params["mlp_out"]:
        flat.extend([w, b])

    static = dict(num_layers=num_layers,
                  offsets=tuple(tuple(int(o) for o in off) for off in offsets),
                  n_nodes=tuple(int(n) for n in n_nodes))
    return flat, static


def fused_forward(X, flat_params, *, static):
    args = [X, *flat_params]
    out_shape = jax.ShapeDtypeStruct(
        (static["n_nodes"][0], flat_params[-1].shape[-1]), _F32)
    return pl.pallas_call(
        _make_fused_kernel(static),
        out_shape=out_shape,
        in_specs=[pl.BlockSpec(memory_space=pltpu.MemorySpace.VMEM)] * len(args),
        out_specs=pl.BlockSpec(memory_space=pltpu.MemorySpace.VMEM),
    )(*args)


# ----------------------------------------------------------------------------
# Pure-JAX reference (same math, independent gather/aggregation path)
# ----------------------------------------------------------------------------

def forward_ref(params, X, graph, *, num_layers=2, level_sizes=()):
    levels, clusters = graph["levels"], graph["clusters"]

    def edgeconv(x, src, tgt, mlp):
        (w1, b1), (w2, b2), (w3, b3) = mlp
        xi, xj = x[tgt], x[src]
        ef = jnp.concatenate([xi, xj - xi], axis=1)
        h = jnp.maximum(ef @ w1 + b1, 0.0)
        h = jnp.maximum(h @ w2 + b2, 0.0)
        msg = h @ w3 + b3
        return jax.ops.segment_max(msg, tgt, num_segments=x.shape[0])

    def relu_bn(x, gb):
        g, b = gb
        x = jnp.maximum(x, 0.0)
        m = jnp.mean(x, axis=0, keepdims=True)
        v = jnp.mean((x - m) ** 2, axis=0, keepdims=True)
        return (x - m) * lax.rsqrt(v + _EPS) * g + b

    x = [X]
    for i in range(num_layers):
        lv = levels[i]
        x[i] = relu_bn(edgeconv(x[i], lv["src"], lv["tgt"], params["Lconvs"][i]),
                       params["Lnorms"][i])
        if i < num_layers - 1:
            nc = level_sizes[i + 1]
            s = jax.ops.segment_sum(x[i], clusters[i], num_segments=nc)
            cnt = jax.ops.segment_sum(jnp.ones((x[i].shape[0], 1), _F32),
                                      clusters[i], num_segments=nc)
            x.append(s / cnt)
        else:
            Xc = x[i]
    for i in range(num_layers, 0, -1):
        j = i - 1
        lv = levels[j]
        Xc = jnp.concatenate([x[j], Xc], axis=1)
        Xc = relu_bn(edgeconv(Xc, lv["src"], lv["tgt"], params["Rconvs"][j]),
                     params["Rnorms"][j])
        if j > 0:
            Xc = Xc[clusters[j - 1]]
    (w1, b1), (w2, b2), (w3, b3) = params["mlp_out"]
    h = jnp.maximum(Xc @ w1 + b1, 0.0)
    h = jnp.maximum(h @ w2 + b2, 0.0)
    return h @ w3 + b3


# ----------------------------------------------------------------------------
# Deterministic parameter / data construction
# ----------------------------------------------------------------------------

def init_mlp(key, dims):
    params = []
    for i in range(len(dims) - 1):
        key, kw, kb = jax.random.split(key, 3)
        w = jax.random.normal(kw, (dims[i], dims[i + 1]), _F32) / jnp.sqrt(
            jnp.float32(dims[i]))
        b = 0.01 * jax.random.normal(kb, (1, dims[i + 1]), _F32)
        params.append((w, b))
    return params


def init_params(key, n_in=64, n_out=64, num_layers=2, num_channels=64,
                mlp_dims=(128, 128), conv_dims=(64, 64)):
    params = {"Lconvs": [], "Rconvs": [], "Lnorms": [], "Rnorms": []}
    no = num_channels
    for i in range(num_layers):
        ni = n_in if i == 0 else num_channels
        key, kl, kr = jax.random.split(key, 3)
        params["Lconvs"].append(init_mlp(kl, [2 * ni, *conv_dims, no]))
        params["Rconvs"].append(init_mlp(kr, [2 * (2 * no), *conv_dims, no]))
        params["Lnorms"].append((jnp.ones((1, no), _F32), jnp.zeros((1, no), _F32)))
        params["Rnorms"].append((jnp.ones((1, no), _F32), jnp.zeros((1, no), _F32)))
    key, km = jax.random.split(key)
    params["mlp_out"] = init_mlp(km, [no, *mlp_dims, n_out])
    return params


def ring_edges(n, offsets):
    """Circulant fixed-degree graph, offset-major order (row o*n + i targets node i)."""
    src, tgt = [], []
    for o in offsets:
        for i in range(n):
            src.append((i + o) % n)
            tgt.append(i)
    return jnp.asarray(src, jnp.int32), jnp.asarray(tgt, jnp.int32)


# ----------------------------------------------------------------------------
# main
# ----------------------------------------------------------------------------

if __name__ == "__main__":
    key = jax.random.PRNGKey(0)
    num_layers = 2
    n_in = n_out = 64
    num_channels = 64
    N0, N1 = 64, 16                # fine-level nodes, coarse-level nodes (clusters)
    offsets0 = (-2, -1, 1, 2)      # degree-4 circulant (ring) graph at the fine level
    offsets1 = (-1, 1)             # degree-2 circulant graph at the coarse level

    kx, kp = jax.random.split(key)
    X = jax.random.normal(kx, (N0, n_in), _F32)

    src0, tgt0 = ring_edges(N0, offsets0)
    src1, tgt1 = ring_edges(N1, offsets1)
    clusters0 = jnp.asarray([n // (N0 // N1) for n in range(N0)], jnp.int32)

    params = init_params(kp, n_in=n_in, n_out=n_out, num_layers=num_layers,
                         num_channels=num_channels)

    # Offline prep (once, outside jit): W1 split/lane-pack, pool/unpool matrices.
    flat_args, static = prepare_fused(
        params, [clusters0], offsets=(offsets0, offsets1), n_nodes=(N0, N1),
        num_layers=num_layers)

    fwd_pallas = jax.jit(functools.partial(fused_forward, static=static))

    graph = {"levels": [dict(src=src0, tgt=tgt0), dict(src=src1, tgt=tgt1)],
             "clusters": [clusters0]}
    fwd_ref = jax.jit(functools.partial(forward_ref, num_layers=num_layers,
                                        level_sizes=(N0, N1)))

    out = jax.block_until_ready(fwd_pallas(X, flat_args))
    ref = jax.block_until_ready(fwd_ref(params, X, graph))

    assert out.shape == (N0, n_out), out.shape
    assert out.dtype == jnp.float32
    assert bool(jnp.all(jnp.isfinite(out)))
    assert bool(jnp.allclose(out, ref, atol=3e-2, rtol=3e-2)), (
        f"max abs diff {float(jnp.max(jnp.abs(out - ref)))}")

    print("KERNEL_OK")
</pallas_src>

<mosaic_0001>
module attributes {stable_mosaic.version = 11 : i64} {
  func.func @kernel(%arg0: memref<64x64xf32, #tpu.memory_space<vmem>>, %arg1: memref<64x128xf32, #tpu.memory_space<vmem>>, %arg2: memref<1x64xf32, #tpu.memory_space<vmem>>, %arg3: memref<64x64xf32, #tpu.memory_space<vmem>>, %arg4: memref<1x64xf32, #tpu.memory_space<vmem>>, %arg5: memref<64x64xf32, #tpu.memory_space<vmem>>, %arg6: memref<1x64xf32, #tpu.memory_space<vmem>>, %arg7: memref<1x64xf32, #tpu.memory_space<vmem>>, %arg8: memref<1x64xf32, #tpu.memory_space<vmem>>, %arg9: memref<16x64xf32, #tpu.memory_space<vmem>>, %arg10: memref<64x128xf32, #tpu.memory_space<vmem>>, %arg11: memref<1x64xf32, #tpu.memory_space<vmem>>, %arg12: memref<64x64xf32, #tpu.memory_space<vmem>>, %arg13: memref<1x64xf32, #tpu.memory_space<vmem>>, %arg14: memref<64x64xf32, #tpu.memory_space<vmem>>, %arg15: memref<1x64xf32, #tpu.memory_space<vmem>>, %arg16: memref<1x64xf32, #tpu.memory_space<vmem>>, %arg17: memref<1x64xf32, #tpu.memory_space<vmem>>, %arg18: memref<64x128xf32, #tpu.memory_space<vmem>>, %arg19: memref<64x128xf32, #tpu.memory_space<vmem>>, %arg20: memref<1x64xf32, #tpu.memory_space<vmem>>, %arg21: memref<64x64xf32, #tpu.memory_space<vmem>>, %arg22: memref<1x64xf32, #tpu.memory_space<vmem>>, %arg23: memref<64x64xf32, #tpu.memory_space<vmem>>, %arg24: memref<1x64xf32, #tpu.memory_space<vmem>>, %arg25: memref<1x64xf32, #tpu.memory_space<vmem>>, %arg26: memref<1x64xf32, #tpu.memory_space<vmem>>, %arg27: memref<64x16xf32, #tpu.memory_space<vmem>>, %arg28: memref<64x128xf32, #tpu.memory_space<vmem>>, %arg29: memref<64x128xf32, #tpu.memory_space<vmem>>, %arg30: memref<1x64xf32, #tpu.memory_space<vmem>>, %arg31: memref<64x64xf32, #tpu.memory_space<vmem>>, %arg32: memref<1x64xf32, #tpu.memory_space<vmem>>, %arg33: memref<64x64xf32, #tpu.memory_space<vmem>>, %arg34: memref<1x64xf32, #tpu.memory_space<vmem>>, %arg35: memref<1x64xf32, #tpu.memory_space<vmem>>, %arg36: memref<1x64xf32, #tpu.memory_space<vmem>>, %arg37: memref<64x128xf32, #tpu.memory_space<vmem>>, %arg38: memref<1x128xf32, #tpu.memory_space<vmem>>, %arg39: memref<128x128xf32, #tpu.memory_space<vmem>>, %arg40: memref<1x128xf32, #tpu.memory_space<vmem>>, %arg41: memref<128x64xf32, #tpu.memory_space<vmem>>, %arg42: memref<1x64xf32, #tpu.memory_space<vmem>>, %arg43: memref<64x64xf32, #tpu.memory_space<vmem>>) attributes {dimension_semantics = [], scalar_prefetch = 0 : i64, scratch_operands = 0 : i64, tpu.core_type = #tpu.core_type<tc>} {
    %c0 = arith.constant 0 : index
    %c0_0 = arith.constant 0 : index
    %0 = vector.load %arg0[%c0, %c0_0] : memref<64x64xf32, #tpu.memory_space<vmem>>, vector<64x64xf32>
    %c0_1 = arith.constant 0 : index
    %c0_2 = arith.constant 0 : index
    %1 = vector.load %arg1[%c0_1, %c0_2] : memref<64x128xf32, #tpu.memory_space<vmem>>, vector<64x128xf32>
    %c0_3 = arith.constant 0 : index
    %c0_4 = arith.constant 0 : index
    %2 = vector.load %arg2[%c0_3, %c0_4] : memref<1x64xf32, #tpu.memory_space<vmem>>, vector<1x64xf32>
    %c0_5 = arith.constant 0 : index
    %c0_6 = arith.constant 0 : index
    %3 = vector.load %arg3[%c0_5, %c0_6] : memref<64x64xf32, #tpu.memory_space<vmem>>, vector<64x64xf32>
    %c0_7 = arith.constant 0 : index
    %c0_8 = arith.constant 0 : index
    %4 = vector.load %arg4[%c0_7, %c0_8] : memref<1x64xf32, #tpu.memory_space<vmem>>, vector<1x64xf32>
    %c0_9 = arith.constant 0 : index
    %c0_10 = arith.constant 0 : index
    %5 = vector.load %arg5[%c0_9, %c0_10] : memref<64x64xf32, #tpu.memory_space<vmem>>, vector<64x64xf32>
    %c0_11 = arith.constant 0 : index
    %c0_12 = arith.constant 0 : index
    %6 = vector.load %arg6[%c0_11, %c0_12] : memref<1x64xf32, #tpu.memory_space<vmem>>, vector<1x64xf32>
    %c0_13 = arith.constant 0 : index
    %c0_14 = arith.constant 0 : index
    %7 = vector.load %arg7[%c0_13, %c0_14] : memref<1x64xf32, #tpu.memory_space<vmem>>, vector<1x64xf32>
    %c0_15 = arith.constant 0 : index
    %c0_16 = arith.constant 0 : index
    %8 = vector.load %arg8[%c0_15, %c0_16] : memref<1x64xf32, #tpu.memory_space<vmem>>, vector<1x64xf32>
    %cst = arith.constant dense<0.000000e+00> : vector<64x128xf32>
    %9 = tpu.matmul %0, %1, %cst {dimension_numbers = #tpu.dot_dimension_numbers<[1], [0], [0], [1], [0, 0, 1, 1], [], []>} : vector<64x64xf32>, vector<64x128xf32>, vector<64x128xf32> -> vector<64x128xf32>
    %10 = vector.extract_strided_slice %9 {offsets = [0, 0], sizes = [64, 64], strides = [1, 1]} : vector<64x128xf32> to vector<64x64xf32>
    %11 = vector.broadcast %2 : vector<1x64xf32> to vector<64x64xf32>
    %12 = arith.addf %10, %11 : vector<64x64xf32>
    %13 = vector.extract_strided_slice %9 {offsets = [0, 64], sizes = [64, 64], strides = [1, 1]} : vector<64x128xf32> to vector<64x64xf32>
    %c2_i32 = arith.constant 2 : i32
    %14 = tpu.dynamic_rotate %13 by %c2_i32 dim 0 : vector<64x64xf32>, i32 -> vector<64x64xf32>
    %15 = arith.addf %12, %14 : vector<64x64xf32>
    %cst_17 = arith.constant 0.000000e+00 : f32
    %16 = vector.broadcast %cst_17 : f32 to vector<64x64xf32>
    %17 = arith.maximumf %15, %16 : vector<64x64xf32>
    %cst_18 = arith.constant dense<0.000000e+00> : vector<64x64xf32>
    %18 = tpu.matmul %17, %3, %cst_18 {dimension_numbers = #tpu.dot_dimension_numbers<[1], [0], [0], [1], [0, 0, 1, 1], [], []>} : vector<64x64xf32>, vector<64x64xf32>, vector<64x64xf32> -> vector<64x64xf32>
    %19 = vector.broadcast %4 : vector<1x64xf32> to vector<64x64xf32>
    %20 = arith.addf %18, %19 : vector<64x64xf32>
    %cst_19 = arith.constant 0.000000e+00 : f32
    %21 = vector.broadcast %cst_19 : f32 to vector<64x64xf32>
    %22 = arith.maximumf %20, %21 : vector<64x64xf32>
    %cst_20 = arith.constant dense<0.000000e+00> : vector<64x64xf32>
    %23 = tpu.matmul %22, %5, %cst_20 {dimension_numbers = #tpu.dot_dimension_numbers<[1], [0], [0], [1], [0, 0, 1, 1], [], []>} : vector<64x64xf32>, vector<64x64xf32>, vector<64x64xf32> -> vector<64x64xf32>
    %24 = vector.broadcast %6 : vector<1x64xf32> to vector<64x64xf32>
    %25 = arith.addf %23, %24 : vector<64x64xf32>
    %c1_i32 = arith.constant 1 : i32
    %26 = tpu.dynamic_rotate %13 by %c1_i32 dim 0 : vector<64x64xf32>, i32 -> vector<64x64xf32>
    %27 = arith.addf %12, %26 : vector<64x64xf32>
    %cst_21 = arith.constant 0.000000e+00 : f32
    %28 = vector.broadcast %cst_21 : f32 to vector<64x64xf32>
    %29 = arith.maximumf %27, %28 : vector<64x64xf32>
    %cst_22 = arith.constant dense<0.000000e+00> : vector<64x64xf32>
    %30 = tpu.matmul %29, %3, %cst_22 {dimension_numbers = #tpu.dot_dimension_numbers<[1], [0], [0], [1], [0, 0, 1, 1], [], []>} : vector<64x64xf32>, vector<64x64xf32>, vector<64x64xf32> -> vector<64x64xf32>
    %31 = vector.broadcast %4 : vector<1x64xf32> to vector<64x64xf32>
    %32 = arith.addf %30, %31 : vector<64x64xf32>
    %cst_23 = arith.constant 0.000000e+00 : f32
    %33 = vector.broadcast %cst_23 : f32 to vector<64x64xf32>
    %34 = arith.maximumf %32, %33 : vector<64x64xf32>
    %cst_24 = arith.constant dense<0.000000e+00> : vector<64x64xf32>
    %35 = tpu.matmul %34, %5, %cst_24 {dimension_numbers = #tpu.dot_dimension_numbers<[1], [0], [0], [1], [0, 0, 1, 1], [], []>} : vector<64x64xf32>, vector<64x64xf32>, vector<64x64xf32> -> vector<64x64xf32>
    %36 = vector.broadcast %6 : vector<1x64xf32> to vector<64x64xf32>
    %37 = arith.addf %35, %36 : vector<64x64xf32>
    %38 = arith.maximumf %25, %37 : vector<64x64xf32>
    %c63_i32 = arith.constant 63 : i32
    %39 = tpu.dynamic_rotate %13 by %c63_i32 dim 0 : vector<64x64xf32>, i32 -> vector<64x64xf32>
    %40 = arith.addf %12, %39 : vector<64x64xf32>
    %cst_25 = arith.constant 0.000000e+00 : f32
    %41 = vector.broadcast %cst_25 : f32 to vector<64x64xf32>
    %42 = arith.maximumf %40, %41 : vector<64x64xf32>
    %cst_26 = arith.constant dense<0.000000e+00> : vector<64x64xf32>
    %43 = tpu.matmul %42, %3, %cst_26 {dimension_numbers = #tpu.dot_dimension_numbers<[1], [0], [0], [1], [0, 0, 1, 1], [], []>} : vector<64x64xf32>, vector<64x64xf32>, vector<64x64xf32> -> vector<64x64xf32>
    %44 = vector.broadcast %4 : vector<1x64xf32> to vector<64x64xf32>
    %45 = arith.addf %43, %44 : vector<64x64xf32>
    %cst_27 = arith.constant 0.000000e+00 : f32
    %46 = vector.broadcast %cst_27 : f32 to vector<64x64xf32>
    %47 = arith.maximumf %45, %46 : vector<64x64xf32>
    %cst_28 = arith.constant dense<0.000000e+00> : vector<64x64xf32>
    %48 = tpu.matmul %47, %5, %cst_28 {dimension_numbers = #tpu.dot_dimension_numbers<[1], [0], [0], [1], [0, 0, 1, 1], [], []>} : vector<64x64xf32>, vector<64x64xf32>, vector<64x64xf32> -> vector<64x64xf32>
    %49 = vector.broadcast %6 : vector<1x64xf32> to vector<64x64xf32>
    %50 = arith.addf %48, %49 : vector<64x64xf32>
    %51 = arith.maximumf %38, %50 : vector<64x64xf32>
    %c62_i32 = arith.constant 62 : i32
    %52 = tpu.dynamic_rotate %13 by %c62_i32 dim 0 : vector<64x64xf32>, i32 -> vector<64x64xf32>
    %53 = arith.addf %12, %52 : vector<64x64xf32>
    %cst_29 = arith.constant 0.000000e+00 : f32
    %54 = vector.broadcast %cst_29 : f32 to vector<64x64xf32>
    %55 = arith.maximumf %53, %54 : vector<64x64xf32>
    %cst_30 = arith.constant dense<0.000000e+00> : vector<64x64xf32>
    %56 = tpu.matmul %55, %3, %cst_30 {dimension_numbers = #tpu.dot_dimension_numbers<[1], [0], [0], [1], [0, 0, 1, 1], [], []>} : vector<64x64xf32>, vector<64x64xf32>, vector<64x64xf32> -> vector<64x64xf32>
    %57 = vector.broadcast %4 : vector<1x64xf32> to vector<64x64xf32>
    %58 = arith.addf %56, %57 : vector<64x64xf32>
    %cst_31 = arith.constant 0.000000e+00 : f32
    %59 = vector.broadcast %cst_31 : f32 to vector<64x64xf32>
    %60 = arith.maximumf %58, %59 : vector<64x64xf32>
    %cst_32 = arith.constant dense<0.000000e+00> : vector<64x64xf32>
    %61 = tpu.matmul %60, %5, %cst_32 {dimension_numbers = #tpu.dot_dimension_numbers<[1], [0], [0], [1], [0, 0, 1, 1], [], []>} : vector<64x64xf32>, vector<64x64xf32>, vector<64x64xf32> -> vector<64x64xf32>
    %62 = vector.broadcast %6 : vector<1x64xf32> to vector<64x64xf32>
    %63 = arith.addf %61, %62 : vector<64x64xf32>
    %64 = arith.maximumf %51, %63 : vector<64x64xf32>
    %cst_33 = arith.constant 0.000000e+00 : f32
    %65 = vector.broadcast %cst_33 : f32 to vector<64x64xf32>
    %66 = arith.maximumf %64, %65 : vector<64x64xf32>
    %cst_34 = arith.constant dense<0.000000e+00> : vector<64xf32>
    %67 = vector.multi_reduction <add>, %66, %cst_34 [0] : vector<64x64xf32> to vector<64xf32>
    %68 = vector.shape_cast %67 : vector<64xf32> to vector<1x64xf32>
    %69 = arith.mulf %66, %66 : vector<64x64xf32>
    %cst_35 = arith.constant dense<0.000000e+00> : vector<64xf32>
    %70 = vector.multi_reduction <add>, %69, %cst_35 [0] : vector<64x64xf32> to vector<64xf32>
    %71 = vector.shape_cast %70 : vector<64xf32> to vector<1x64xf32>
    %cst_36 = arith.constant 1.562500e-02 : f32
    %72 = vector.broadcast %cst_36 : f32 to vector<1x64xf32>
    %73 = arith.mulf %68, %72 : vector<1x64xf32>
    %cst_37 = arith.constant 1.562500e-02 : f32
    %74 = vector.broadcast %cst_37 : f32 to vector<1x64xf32>
    %75 = arith.mulf %71, %74 : vector<1x64xf32>
    %76 = arith.mulf %73, %73 : vector<1x64xf32>
    %77 = arith.subf %75, %76 : vector<1x64xf32>
    %cst_38 = arith.constant 0.000000e+00 : f32
    %78 = vector.broadcast %cst_38 : f32 to vector<1x64xf32>
    %79 = arith.maximumf %77, %78 : vector<1x64xf32>
    %80 = vector.broadcast %73 : vector<1x64xf32> to vector<64x64xf32>
    %81 = arith.subf %66, %80 : vector<64x64xf32>
    %cst_39 = arith.constant 9.99999974E-6 : f32
    %82 = vector.broadcast %cst_39 : f32 to vector<1x64xf32>
    %83 = arith.addf %79, %82 : vector<1x64xf32>
    %84 = math.rsqrt %83 : vector<1x64xf32>
    %85 = vector.broadcast %84 : vector<1x64xf32> to vector<64x64xf32>
    %86 = arith.mulf %81, %85 : vector<64x64xf32>
    %87 = vector.broadcast %7 : vector<1x64xf32> to vector<64x64xf32>
    %88 = arith.mulf %86, %87 : vector<64x64xf32>
    %89 = vector.broadcast %8 : vector<1x64xf32> to vector<64x64xf32>
    %90 = arith.addf %88, %89 : vector<64x64xf32>
    %c0_40 = arith.constant 0 : index
    %c0_41 = arith.constant 0 : index
    %91 = vector.load %arg9[%c0_40, %c0_41] : memref<16x64xf32, #tpu.memory_space<vmem>>, vector<16x64xf32>
    %cst_42 = arith.constant dense<0.000000e+00> : vector<16x64xf32>
    %92 = tpu.matmul %91, %90, %cst_42 {dimension_numbers = #tpu.dot_dimension_numbers<[1], [0], [0], [1], [0, 0, 1, 1], [], []>} : vector<16x64xf32>, vector<64x64xf32>, vector<16x64xf32> -> vector<16x64xf32>
    %c0_43 = arith.constant 0 : index
    %c0_44 = arith.constant 0 : index
    %93 = vector.load %arg10[%c0_43, %c0_44] : memref<64x128xf32, #tpu.memory_space<vmem>>, vector<64x128xf32>
    %c0_45 = arith.constant 0 : index
    %c0_46 = arith.constant 0 : index
    %94 = vector.load %arg11[%c0_45, %c0_46] : memref<1x64xf32, #tpu.memory_space<vmem>>, vector<1x64xf32>
    %c0_47 = arith.constant 0 : index
    %c0_48 = arith.constant 0 : index
    %95 = vector.load %arg12[%c0_47, %c0_48] : memref<64x64xf32, #tpu.memory_space<vmem>>, vector<64x64xf32>
    %c0_49 = arith.constant 0 : index
    %c0_50 = arith.constant 0 : index
    %96 = vector.load %arg13[%c0_49, %c0_50] : memref<1x64xf32, #tpu.memory_space<vmem>>, vector<1x64xf32>
    %c0_51 = arith.constant 0 : index
    %c0_52 = arith.constant 0 : index
    %97 = vector.load %arg14[%c0_51, %c0_52] : memref<64x64xf32, #tpu.memory_space<vmem>>, vector<64x64xf32>
    %c0_53 = arith.constant 0 : index
    %c0_54 = arith.constant 0 : index
    %98 = vector.load %arg15[%c0_53, %c0_54] : memref<1x64xf32, #tpu.memory_space<vmem>>, vector<1x64xf32>
    %c0_55 = arith.constant 0 : index
    %c0_56 = arith.constant 0 : index
    %99 = vector.load %arg16[%c0_55, %c0_56] : memref<1x64xf32, #tpu.memory_space<vmem>>, vector<1x64xf32>
    %c0_57 = arith.constant 0 : index
    %c0_58 = arith.constant 0 : index
    %100 = vector.load %arg17[%c0_57, %c0_58] : memref<1x64xf32, #tpu.memory_space<vmem>>, vector<1x64xf32>
    %cst_59 = arith.constant dense<0.000000e+00> : vector<16x128xf32>
    %101 = tpu.matmul %92, %93, %cst_59 {dimension_numbers = #tpu.dot_dimension_numbers<[1], [0], [0], [1], [0, 0, 1, 1], [], []>} : vector<16x64xf32>, vector<64x128xf32>, vector<16x128xf32> -> vector<16x128xf32>
    %102 = vector.extract_strided_slice %101 {offsets = [0, 0], sizes = [16, 64], strides = [1, 1]} : vector<16x128xf32> to vector<16x64xf32>
    %103 = vector.broadcast %94 : vector<1x64xf32> to vector<16x64xf32>
    %104 = arith.addf %102, %103 : vector<16x64xf32>
    %105 = vector.extract_strided_slice %101 {offsets = [0, 64], sizes = [16, 64], strides = [1, 1]} : vector<16x128xf32> to vector<16x64xf32>
    %c1_i32_60 = arith.constant 1 : i32
    %106 = tpu.dynamic_rotate %105 by %c1_i32_60 dim 0 : vector<16x64xf32>, i32 -> vector<16x64xf32>
    %107 = arith.addf %104, %106 : vector<16x64xf32>
    %cst_61 = arith.constant 0.000000e+00 : f32
    %108 = vector.broadcast %cst_61 : f32 to vector<16x64xf32>
    %109 = arith.maximumf %107, %108 : vector<16x64xf32>
    %cst_62 = arith.constant dense<0.000000e+00> : vector<16x64xf32>
    %110 = tpu.matmul %109, %95, %cst_62 {dimension_numbers = #tpu.dot_dimension_numbers<[1], [0], [0], [1], [0, 0, 1, 1], [], []>} : vector<16x64xf32>, vector<64x64xf32>, vector<16x64xf32> -> vector<16x64xf32>
    %111 = vector.broadcast %96 : vector<1x64xf32> to vector<16x64xf32>
    %112 = arith.addf %110, %111 : vector<16x64xf32>
    %cst_63 = arith.constant 0.000000e+00 : f32
    %113 = vector.broadcast %cst_63 : f32 to vector<16x64xf32>
    %114 = arith.maximumf %112, %113 : vector<16x64xf32>
    %cst_64 = arith.constant dense<0.000000e+00> : vector<16x64xf32>
    %115 = tpu.matmul %114, %97, %cst_64 {dimension_numbers = #tpu.dot_dimension_numbers<[1], [0], [0], [1], [0, 0, 1, 1], [], []>} : vector<16x64xf32>, vector<64x64xf32>, vector<16x64xf32> -> vector<16x64xf32>
    %116 = vector.broadcast %98 : vector<1x64xf32> to vector<16x64xf32>
    %117 = arith.addf %115, %116 : vector<16x64xf32>
    %c15_i32 = arith.constant 15 : i32
    %118 = tpu.dynamic_rotate %105 by %c15_i32 dim 0 : vector<16x64xf32>, i32 -> vector<16x64xf32>
    %119 = arith.addf %104, %118 : vector<16x64xf32>
    %cst_65 = arith.constant 0.000000e+00 : f32
    %120 = vector.broadcast %cst_65 : f32 to vector<16x64xf32>
    %121 = arith.maximumf %119, %120 : vector<16x64xf32>
    %cst_66 = arith.constant dense<0.000000e+00> : vector<16x64xf32>
    %122 = tpu.matmul %121, %95, %cst_66 {dimension_numbers = #tpu.dot_dimension_numbers<[1], [0], [0], [1], [0, 0, 1, 1], [], []>} : vector<16x64xf32>, vector<64x64xf32>, vector<16x64xf32> -> vector<16x64xf32>
    %123 = vector.broadcast %96 : vector<1x64xf32> to vector<16x64xf32>
    %124 = arith.addf %122, %123 : vector<16x64xf32>
    %cst_67 = arith.constant 0.000000e+00 : f32
    %125 = vector.broadcast %cst_67 : f32 to vector<16x64xf32>
    %126 = arith.maximumf %124, %125 : vector<16x64xf32>
    %cst_68 = arith.constant dense<0.000000e+00> : vector<16x64xf32>
    %127 = tpu.matmul %126, %97, %cst_68 {dimension_numbers = #tpu.dot_dimension_numbers<[1], [0], [0], [1], [0, 0, 1, 1], [], []>} : vector<16x64xf32>, vector<64x64xf32>, vector<16x64xf32> -> vector<16x64xf32>
    %128 = vector.broadcast %98 : vector<1x64xf32> to vector<16x64xf32>
    %129 = arith.addf %127, %128 : vector<16x64xf32>
    %130 = arith.maximumf %117, %129 : vector<16x64xf32>
    %cst_69 = arith.constant 0.000000e+00 : f32
    %131 = vector.broadcast %cst_69 : f32 to vector<16x64xf32>
    %132 = arith.maximumf %130, %131 : vector<16x64xf32>
    %cst_70 = arith.constant dense<0.000000e+00> : vector<64xf32>
    %133 = vector.multi_reduction <add>, %132, %cst_70 [0] : vector<16x64xf32> to vector<64xf32>
    %134 = vector.shape_cast %133 : vector<64xf32> to vector<1x64xf32>
    %135 = arith.mulf %132, %132 : vector<16x64xf32>
    %cst_71 = arith.constant dense<0.000000e+00> : vector<64xf32>
    %136 = vector.multi_reduction <add>, %135, %cst_71 [0] : vector<16x64xf32> to vector<64xf32>
    %137 = vector.shape_cast %136 : vector<64xf32> to vector<1x64xf32>
    %cst_72 = arith.constant 6.250000e-02 : f32
    %138 = vector.broadcast %cst_72 : f32 to vector<1x64xf32>
    %139 = arith.mulf %134, %138 : vector<1x64xf32>
    %cst_73 = arith.constant 6.250000e-02 : f32
    %140 = vector.broadcast %cst_73 : f32 to vector<1x64xf32>
    %141 = arith.mulf %137, %140 : vector<1x64xf32>
    %142 = arith.mulf %139, %139 : vector<1x64xf32>
    %143 = arith.subf %141, %142 : vector<1x64xf32>
    %cst_74 = arith.constant 0.000000e+00 : f32
    %144 = vector.broadcast %cst_74 : f32 to vector<1x64xf32>
    %145 = arith.maximumf %143, %144 : vector<1x64xf32>
    %146 = vector.broadcast %139 : vector<1x64xf32> to vector<16x64xf32>
    %147 = arith.subf %132, %146 : vector<16x64xf32>
    %cst_75 = arith.constant 9.99999974E-6 : f32
    %148 = vector.broadcast %cst_75 : f32 to vector<1x64xf32>
    %149 = arith.addf %145, %148 : vector<1x64xf32>
    %150 = math.rsqrt %149 : vector<1x64xf32>
    %151 = vector.broadcast %150 : vector<1x64xf32> to vector<16x64xf32>
    %152 = arith.mulf %147, %151 : vector<16x64xf32>
    %153 = vector.broadcast %99 : vector<1x64xf32> to vector<16x64xf32>
    %154 = arith.mulf %152, %153 : vector<16x64xf32>
    %155 = vector.broadcast %100 : vector<1x64xf32> to vector<16x64xf32>
    %156 = arith.addf %154, %155 : vector<16x64xf32>
    %c0_76 = arith.constant 0 : index
    %c0_77 = arith.constant 0 : index
    %157 = vector.load %arg18[%c0_76, %c0_77] : memref<64x128xf32, #tpu.memory_space<vmem>>, vector<64x128xf32>
    %c0_78 = arith.constant 0 : index
    %c0_79 = arith.constant 0 : index
    %158 = vector.load %arg19[%c0_78, %c0_79] : memref<64x128xf32, #tpu.memory_space<vmem>>, vector<64x128xf32>
    %c0_80 = arith.constant 0 : index
    %c0_81 = arith.constant 0 : index
    %159 = vector.load %arg20[%c0_80, %c0_81] : memref<1x64xf32, #tpu.memory_space<vmem>>, vector<1x64xf32>
    %c0_82 = arith.constant 0 : index
    %c0_83 = arith.constant 0 : index
    %160 = vector.load %arg21[%c0_82, %c0_83] : memref<64x64xf32, #tpu.memory_space<vmem>>, vector<64x64xf32>
    %c0_84 = arith.constant 0 : index
    %c0_85 = arith.constant 0 : index
    %161 = vector.load %arg22[%c0_84, %c0_85] : memref<1x64xf32, #tpu.memory_space<vmem>>, vector<1x64xf32>
    %c0_86 = arith.constant 0 : index
    %c0_87 = arith.constant 0 : index
    %162 = vector.load %arg23[%c0_86, %c0_87] : memref<64x64xf32, #tpu.memory_space<vmem>>, vector<64x64xf32>
    %c0_88 = arith.constant 0 : index
    %c0_89 = arith.constant 0 : index
    %163 = vector.load %arg24[%c0_88, %c0_89] : memref<1x64xf32, #tpu.memory_space<vmem>>, vector<1x64xf32>
    %c0_90 = arith.constant 0 : index
    %c0_91 = arith.constant 0 : index
    %164 = vector.load %arg25[%c0_90, %c0_91] : memref<1x64xf32, #tpu.memory_space<vmem>>, vector<1x64xf32>
    %c0_92 = arith.constant 0 : index
    %c0_93 = arith.constant 0 : index
    %165 = vector.load %arg26[%c0_92, %c0_93] : memref<1x64xf32, #tpu.memory_space<vmem>>, vector<1x64xf32>
    %cst_94 = arith.constant dense<0.000000e+00> : vector<16x128xf32>
    %166 = tpu.matmul %156, %157, %cst_94 {dimension_numbers = #tpu.dot_dimension_numbers<[1], [0], [0], [1], [0, 0, 1, 1], [], []>} : vector<16x64xf32>, vector<64x128xf32>, vector<16x128xf32> -> vector<16x128xf32>
    %cst_95 = arith.constant dense<0.000000e+00> : vector<16x128xf32>
    %167 = tpu.matmul %156, %158, %cst_95 {dimension_numbers = #tpu.dot_dimension_numbers<[1], [0], [0], [1], [0, 0, 1, 1], [], []>} : vector<16x64xf32>, vector<64x128xf32>, vector<16x128xf32> -> vector<16x128xf32>
    %168 = arith.addf %166, %167 : vector<16x128xf32>
    %169 = vector.extract_strided_slice %168 {offsets = [0, 0], sizes = [16, 64], strides = [1, 1]} : vector<16x128xf32> to vector<16x64xf32>
    %170 = vector.broadcast %159 : vector<1x64xf32> to vector<16x64xf32>
    %171 = arith.addf %169, %170 : vector<16x64xf32>
    %172 = vector.extract_strided_slice %168 {offsets = [0, 64], sizes = [16, 64], strides = [1, 1]} : vector<16x128xf32> to vector<16x64xf32>
    %c1_i32_96 = arith.constant 1 : i32
    %173 = tpu.dynamic_rotate %172 by %c1_i32_96 dim 0 : vector<16x64xf32>, i32 -> vector<16x64xf32>
    %174 = arith.addf %171, %173 : vector<16x64xf32>
    %cst_97 = arith.constant 0.000000e+00 : f32
    %175 = vector.broadcast %cst_97 : f32 to vector<16x64xf32>
    %176 = arith.maximumf %174, %175 : vector<16x64xf32>
    %cst_98 = arith.constant dense<0.000000e+00> : vector<16x64xf32>
    %177 = tpu.matmul %176, %160, %cst_98 {dimension_numbers = #tpu.dot_dimension_numbers<[1], [0], [0], [1], [0, 0, 1, 1], [], []>} : vector<16x64xf32>, vector<64x64xf32>, vector<16x64xf32> -> vector<16x64xf32>
    %178 = vector.broadcast %161 : vector<1x64xf32> to vector<16x64xf32>
    %179 = arith.addf %177, %178 : vector<16x64xf32>
    %cst_99 = arith.constant 0.000000e+00 : f32
    %180 = vector.broadcast %cst_99 : f32 to vector<16x64xf32>
    %181 = arith.maximumf %179, %180 : vector<16x64xf32>
    %cst_100 = arith.constant dense<0.000000e+00> : vector<16x64xf32>
    %182 = tpu.matmul %181, %162, %cst_100 {dimension_numbers = #tpu.dot_dimension_numbers<[1], [0], [0], [1], [0, 0, 1, 1], [], []>} : vector<16x64xf32>, vector<64x64xf32>, vector<16x64xf32> -> vector<16x64xf32>
    %183 = vector.broadcast %163 : vector<1x64xf32> to vector<16x64xf32>
    %184 = arith.addf %182, %183 : vector<16x64xf32>
    %c15_i32_101 = arith.constant 15 : i32
    %185 = tpu.dynamic_rotate %172 by %c15_i32_101 dim 0 : vector<16x64xf32>, i32 -> vector<16x64xf32>
    %186 = arith.addf %171, %185 : vector<16x64xf32>
    %cst_102 = arith.constant 0.000000e+00 : f32
    %187 = vector.broadcast %cst_102 : f32 to vector<16x64xf32>
    %188 = arith.maximumf %186, %187 : vector<16x64xf32>
    %cst_103 = arith.constant dense<0.000000e+00> : vector<16x64xf32>
    %189 = tpu.matmul %188, %160, %cst_103 {dimension_numbers = #tpu.dot_dimension_numbers<[1], [0], [0], [1], [0, 0, 1, 1], [], []>} : vector<16x64xf32>, vector<64x64xf32>, vector<16x64xf32> -> vector<16x64xf32>
    %190 = vector.broadcast %161 : vector<1x64xf32> to vector<16x64xf32>
    %191 = arith.addf %189, %190 : vector<16x64xf32>
    %cst_104 = arith.constant 0.000000e+00 : f32
    %192 = vector.broadcast %cst_104 : f32 to vector<16x64xf32>
    %193 = arith.maximumf %191, %192 : vector<16x64xf32>
    %cst_105 = arith.constant dense<0.000000e+00> : vector<16x64xf32>
    %194 = tpu.matmul %193, %162, %cst_105 {dimension_numbers = #tpu.dot_dimension_numbers<[1], [0], [0], [1], [0, 0, 1, 1], [], []>} : vector<16x64xf32>, vector<64x64xf32>, vector<16x64xf32> -> vector<16x64xf32>
    %195 = vector.broadcast %163 : vector<1x64xf32> to vector<16x64xf32>
    %196 = arith.addf %194, %195 : vector<16x64xf32>
    %197 = arith.maximumf %184, %196 : vector<16x64xf32>
    %cst_106 = arith.constant 0.000000e+00 : f32
    %198 = vector.broadcast %cst_106 : f32 to vector<16x64xf32>
    %199 = arith.maximumf %197, %198 : vector<16x64xf32>
    %cst_107 = arith.constant dense<0.000000e+00> : vector<64xf32>
    %200 = vector.multi_reduction <add>, %199, %cst_107 [0] : vector<16x64xf32> to vector<64xf32>
    %201 = vector.shape_cast %200 : vector<64xf32> to vector<1x64xf32>
    %202 = arith.mulf %199, %199 : vector<16x64xf32>
    %cst_108 = arith.constant dense<0.000000e+00> : vector<64xf32>
    %203 = vector.multi_reduction <add>, %202, %cst_108 [0] : vector<16x64xf32> to vector<64xf32>
    %204 = vector.shape_cast %203 : vector<64xf32> to vector<1x64xf32>
    %cst_109 = arith.constant 6.250000e-02 : f32
    %205 = vector.broadcast %cst_109 : f32 to vector<1x64xf32>
    %206 = arith.mulf %201, %205 : vector<1x64xf32>
    %cst_110 = arith.constant 6.250000e-02 : f32
    %207 = vector.broadcast %cst_110 : f32 to vector<1x64xf32>
    %208 = arith.mulf %204, %207 : vector<1x64xf32>
    %209 = arith.mulf %206, %206 : vector<1x64xf32>
    %210 = arith.subf %208, %209 : vector<1x64xf32>
    %cst_111 = arith.constant 0.000000e+00 : f32
    %211 = vector.broadcast %cst_111 : f32 to vector<1x64xf32>
    %212 = arith.maximumf %210, %211 : vector<1x64xf32>
    %213 = vector.broadcast %206 : vector<1x64xf32> to vector<16x64xf32>
    %214 = arith.subf %199, %213 : vector<16x64xf32>
    %cst_112 = arith.constant 9.99999974E-6 : f32
    %215 = vector.broadcast %cst_112 : f32 to vector<1x64xf32>
    %216 = arith.addf %212, %215 : vector<1x64xf32>
    %217 = math.rsqrt %216 : vector<1x64xf32>
    %218 = vector.broadcast %217 : vector<1x64xf32> to vector<16x64xf32>
    %219 = arith.mulf %214, %218 : vector<16x64xf32>
    %220 = vector.broadcast %164 : vector<1x64xf32> to vector<16x64xf32>
    %221 = arith.mulf %219, %220 : vector<16x64xf32>
    %222 = vector.broadcast %165 : vector<1x64xf32> to vector<16x64xf32>
    %223 = arith.addf %221, %222 : vector<16x64xf32>
    %c0_113 = arith.constant 0 : index
    %c0_114 = arith.constant 0 : index
    %224 = vector.load %arg27[%c0_113, %c0_114] : memref<64x16xf32, #tpu.memory_space<vmem>>, vector<64x16xf32>
    %cst_115 = arith.constant dense<0.000000e+00> : vector<64x64xf32>
    %225 = tpu.matmul %224, %223, %cst_115 {dimension_numbers = #tpu.dot_dimension_numbers<[1], [0], [0], [1], [0, 0, 1, 1], [], []>} : vector<64x16xf32>, vector<16x64xf32>, vector<64x64xf32> -> vector<64x64xf32>
    %c0_116 = arith.constant 0 : index
    %c0_117 = arith.constant 0 : index
    %226 = vector.load %arg28[%c0_116, %c0_117] : memref<64x128xf32, #tpu.memory_space<vmem>>, vector<64x128xf32>
    %c0_118 = arith.constant 0 : index
    %c0_119 = arith.constant 0 : index
    %227 = vector.load %arg29[%c0_118, %c0_119] : memref<64x128xf32, #tpu.memory_space<vmem>>, vector<64x128xf32>
    %c0_120 = arith.constant 0 : index
    %c0_121 = arith.constant 0 : index
    %228 = vector.load %arg30[%c0_120, %c0_121] : memref<1x64xf32, #tpu.memory_space<vmem>>, vector<1x64xf32>
    %c0_122 = arith.constant 0 : index
    %c0_123 = arith.constant 0 : index
    %229 = vector.load %arg31[%c0_122, %c0_123] : memref<64x64xf32, #tpu.memory_space<vmem>>, vector<64x64xf32>
    %c0_124 = arith.constant 0 : index
    %c0_125 = arith.constant 0 : index
    %230 = vector.load %arg32[%c0_124, %c0_125] : memref<1x64xf32, #tpu.memory_space<vmem>>, vector<1x64xf32>
    %c0_126 = arith.constant 0 : index
    %c0_127 = arith.constant 0 : index
    %231 = vector.load %arg33[%c0_126, %c0_127] : memref<64x64xf32, #tpu.memory_space<vmem>>, vector<64x64xf32>
    %c0_128 = arith.constant 0 : index
    %c0_129 = arith.constant 0 : index
    %232 = vector.load %arg34[%c0_128, %c0_129] : memref<1x64xf32, #tpu.memory_space<vmem>>, vector<1x64xf32>
    %c0_130 = arith.constant 0 : index
    %c0_131 = arith.constant 0 : index
    %233 = vector.load %arg35[%c0_130, %c0_131] : memref<1x64xf32, #tpu.memory_space<vmem>>, vector<1x64xf32>
    %c0_132 = arith.constant 0 : index
    %c0_133 = arith.constant 0 : index
    %234 = vector.load %arg36[%c0_132, %c0_133] : memref<1x64xf32, #tpu.memory_space<vmem>>, vector<1x64xf32>
    %cst_134 = arith.constant dense<0.000000e+00> : vector<64x128xf32>
    %235 = tpu.matmul %90, %226, %cst_134 {dimension_numbers = #tpu.dot_dimension_numbers<[1], [0], [0], [1], [0, 0, 1, 1], [], []>} : vector<64x64xf32>, vector<64x128xf32>, vector<64x128xf32> -> vector<64x128xf32>
    %cst_135 = arith.constant dense<0.000000e+00> : vector<64x128xf32>
    %236 = tpu.matmul %225, %227, %cst_135 {dimension_numbers = #tpu.dot_dimension_numbers<[1], [0], [0], [1], [0, 0, 1, 1], [], []>} : vector<64x64xf32>, vector<64x128xf32>, vector<64x128xf32> -> vector<64x128xf32>
    %237 = arith.addf %235, %236 : vector<64x128xf32>
    %238 = vector.extract_strided_slice %237 {offsets = [0, 0], sizes = [64, 64], strides = [1, 1]} : vector<64x128xf32> to vector<64x64xf32>
    %239 = vector.broadcast %228 : vector<1x64xf32> to vector<64x64xf32>
    %240 = arith.addf %238, %239 : vector<64x64xf32>
    %241 = vector.extract_strided_slice %237 {offsets = [0, 64], sizes = [64, 64], strides = [1, 1]} : vector<64x128xf32> to vector<64x64xf32>
    %c2_i32_136 = arith.constant 2 : i32
    %242 = tpu.dynamic_rotate %241 by %c2_i32_136 dim 0 : vector<64x64xf32>, i32 -> vector<64x64xf32>
    %243 = arith.addf %240, %242 : vector<64x64xf32>
    %cst_137 = arith.constant 0.000000e+00 : f32
    %244 = vector.broadcast %cst_137 : f32 to vector<64x64xf32>
    %245 = arith.maximumf %243, %244 : vector<64x64xf32>
    %cst_138 = arith.constant dense<0.000000e+00> : vector<64x64xf32>
    %246 = tpu.matmul %245, %229, %cst_138 {dimension_numbers = #tpu.dot_dimension_numbers<[1], [0], [0], [1], [0, 0, 1, 1], [], []>} : vector<64x64xf32>, vector<64x64xf32>, vector<64x64xf32> -> vector<64x64xf32>
    %247 = vector.broadcast %230 : vector<1x64xf32> to vector<64x64xf32>
    %248 = arith.addf %246, %247 : vector<64x64xf32>
    %cst_139 = arith.constant 0.000000e+00 : f32
    %249 = vector.broadcast %cst_139 : f32 to vector<64x64xf32>
    %250 = arith.maximumf %248, %249 : vector<64x64xf32>
    %cst_140 = arith.constant dense<0.000000e+00> : vector<64x64xf32>
    %251 = tpu.matmul %250, %231, %cst_140 {dimension_numbers = #tpu.dot_dimension_numbers<[1], [0], [0], [1], [0, 0, 1, 1], [], []>} : vector<64x64xf32>, vector<64x64xf32>, vector<64x64xf32> -> vector<64x64xf32>
    %252 = vector.broadcast %232 : vector<1x64xf32> to vector<64x64xf32>
    %253 = arith.addf %251, %252 : vector<64x64xf32>
    %c1_i32_141 = arith.constant 1 : i32
    %254 = tpu.dynamic_rotate %241 by %c1_i32_141 dim 0 : vector<64x64xf32>, i32 -> vector<64x64xf32>
    %255 = arith.addf %240, %254 : vector<64x64xf32>
    %cst_142 = arith.constant 0.000000e+00 : f32
    %256 = vector.broadcast %cst_142 : f32 to vector<64x64xf32>
    %257 = arith.maximumf %255, %256 : vector<64x64xf32>
    %cst_143 = arith.constant dense<0.000000e+00> : vector<64x64xf32>
    %258 = tpu.matmul %257, %229, %cst_143 {dimension_numbers = #tpu.dot_dimension_numbers<[1], [0], [0], [1], [0, 0, 1, 1], [], []>} : vector<64x64xf32>, vector<64x64xf32>, vector<64x64xf32> -> vector<64x64xf32>
    %259 = vector.broadcast %230 : vector<1x64xf32> to vector<64x64xf32>
    %260 = arith.addf %258, %259 : vector<64x64xf32>
    %cst_144 = arith.constant 0.000000e+00 : f32
    %261 = vector.broadcast %cst_144 : f32 to vector<64x64xf32>
    %262 = arith.maximumf %260, %261 : vector<64x64xf32>
    %cst_145 = arith.constant dense<0.000000e+00> : vector<64x64xf32>
    %263 = tpu.matmul %262, %231, %cst_145 {dimension_numbers = #tpu.dot_dimension_numbers<[1], [0], [0], [1], [0, 0, 1, 1], [], []>} : vector<64x64xf32>, vector<64x64xf32>, vector<64x64xf32> -> vector<64x64xf32>
    %264 = vector.broadcast %232 : vector<1x64xf32> to vector<64x64xf32>
    %265 = arith.addf %263, %264 : vector<64x64xf32>
    %266 = arith.maximumf %253, %265 : vector<64x64xf32>
    %c63_i32_146 = arith.constant 63 : i32
    %267 = tpu.dynamic_rotate %241 by %c63_i32_146 dim 0 : vector<64x64xf32>, i32 -> vector<64x64xf32>
    %268 = arith.addf %240, %267 : vector<64x64xf32>
    %cst_147 = arith.constant 0.000000e+00 : f32
    %269 = vector.broadcast %cst_147 : f32 to vector<64x64xf32>
    %270 = arith.maximumf %268, %269 : vector<64x64xf32>
    %cst_148 = arith.constant dense<0.000000e+00> : vector<64x64xf32>
    %271 = tpu.matmul %270, %229, %cst_148 {dimension_numbers = #tpu.dot_dimension_numbers<[1], [0], [0], [1], [0, 0, 1, 1], [], []>} : vector<64x64xf32>, vector<64x64xf32>, vector<64x64xf32> -> vector<64x64xf32>
    %272 = vector.broadcast %230 : vector<1x64xf32> to vector<64x64xf32>
    %273 = arith.addf %271, %272 : vector<64x64xf32>
    %cst_149 = arith.constant 0.000000e+00 : f32
    %274 = vector.broadcast %cst_149 : f32 to vector<64x64xf32>
    %275 = arith.maximumf %273, %274 : vector<64x64xf32>
    %cst_150 = arith.constant dense<0.000000e+00> : vector<64x64xf32>
    %276 = tpu.matmul %275, %231, %cst_150 {dimension_numbers = #tpu.dot_dimension_numbers<[1], [0], [0], [1], [0, 0, 1, 1], [], []>} : vector<64x64xf32>, vector<64x64xf32>, vector<64x64xf32> -> vector<64x64xf32>
    %277 = vector.broadcast %232 : vector<1x64xf32> to vector<64x64xf32>
    %278 = arith.addf %276, %277 : vector<64x64xf32>
    %279 = arith.maximumf %266, %278 : vector<64x64xf32>
    %c62_i32_151 = arith.constant 62 : i32
    %280 = tpu.dynamic_rotate %241 by %c62_i32_151 dim 0 : vector<64x64xf32>, i32 -> vector<64x64xf32>
    %281 = arith.addf %240, %280 : vector<64x64xf32>
    %cst_152 = arith.constant 0.000000e+00 : f32
    %282 = vector.broadcast %cst_152 : f32 to vector<64x64xf32>
    %283 = arith.maximumf %281, %282 : vector<64x64xf32>
    %cst_153 = arith.constant dense<0.000000e+00> : vector<64x64xf32>
    %284 = tpu.matmul %283, %229, %cst_153 {dimension_numbers = #tpu.dot_dimension_numbers<[1], [0], [0], [1], [0, 0, 1, 1], [], []>} : vector<64x64xf32>, vector<64x64xf32>, vector<64x64xf32> -> vector<64x64xf32>
    %285 = vector.broadcast %230 : vector<1x64xf32> to vector<64x64xf32>
    %286 = arith.addf %284, %285 : vector<64x64xf32>
    %cst_154 = arith.constant 0.000000e+00 : f32
    %287 = vector.broadcast %cst_154 : f32 to vector<64x64xf32>
    %288 = arith.maximumf %286, %287 : vector<64x64xf32>
    %cst_155 = arith.constant dense<0.000000e+00> : vector<64x64xf32>
    %289 = tpu.matmul %288, %231, %cst_155 {dimension_numbers = #tpu.dot_dimension_numbers<[1], [0], [0], [1], [0, 0, 1, 1], [], []>} : vector<64x64xf32>, vector<64x64xf32>, vector<64x64xf32> -> vector<64x64xf32>
    %290 = vector.broadcast %232 : vector<1x64xf32> to vector<64x64xf32>
    %291 = arith.addf %289, %290 : vector<64x64xf32>
    %292 = arith.maximumf %279, %291 : vector<64x64xf32>
    %cst_156 = arith.constant 0.000000e+00 : f32
    %293 = vector.broadcast %cst_156 : f32 to vector<64x64xf32>
    %294 = arith.maximumf %292, %293 : vector<64x64xf32>
    %cst_157 = arith.constant dense<0.000000e+00> : vector<64xf32>
    %295 = vector.multi_reduction <add>, %294, %cst_157 [0] : vector<64x64xf32> to vector<64xf32>
    %296 = vector.shape_cast %295 : vector<64xf32> to vector<1x64xf32>
    %297 = arith.mulf %294, %294 : vector<64x64xf32>
    %cst_158 = arith.constant dense<0.000000e+00> : vector<64xf32>
    %298 = vector.multi_reduction <add>, %297, %cst_158 [0] : vector<64x64xf32> to vector<64xf32>
    %299 = vector.shape_cast %298 : vector<64xf32> to vector<1x64xf32>
    %cst_159 = arith.constant 1.562500e-02 : f32
    %300 = vector.broadcast %cst_159 : f32 to vector<1x64xf32>
    %301 = arith.mulf %296, %300 : vector<1x64xf32>
    %cst_160 = arith.constant 1.562500e-02 : f32
    %302 = vector.broadcast %cst_160 : f32 to vector<1x64xf32>
    %303 = arith.mulf %299, %302 : vector<1x64xf32>
    %304 = arith.mulf %301, %301 : vector<1x64xf32>
    %305 = arith.subf %303, %304 : vector<1x64xf32>
    %cst_161 = arith.constant 0.000000e+00 : f32
    %306 = vector.broadcast %cst_161 : f32 to vector<1x64xf32>
    %307 = arith.maximumf %305, %306 : vector<1x64xf32>
    %308 = vector.broadcast %301 : vector<1x64xf32> to vector<64x64xf32>
    %309 = arith.subf %294, %308 : vector<64x64xf32>
    %cst_162 = arith.constant 9.99999974E-6 : f32
    %310 = vector.broadcast %cst_162 : f32 to vector<1x64xf32>
    %311 = arith.addf %307, %310 : vector<1x64xf32>
    %312 = math.rsqrt %311 : vector<1x64xf32>
    %313 = vector.broadcast %312 : vector<1x64xf32> to vector<64x64xf32>
    %314 = arith.mulf %309, %313 : vector<64x64xf32>
    %315 = vector.broadcast %233 : vector<1x64xf32> to vector<64x64xf32>
    %316 = arith.mulf %314, %315 : vector<64x64xf32>
    %317 = vector.broadcast %234 : vector<1x64xf32> to vector<64x64xf32>
    %318 = arith.addf %316, %317 : vector<64x64xf32>
    %c0_163 = arith.constant 0 : index
    %c0_164 = arith.constant 0 : index
    %319 = vector.load %arg37[%c0_163, %c0_164] : memref<64x128xf32, #tpu.memory_space<vmem>>, vector<64x128xf32>
    %c0_165 = arith.constant 0 : index
    %c0_166 = arith.constant 0 : index
    %320 = vector.load %arg38[%c0_165, %c0_166] : memref<1x128xf32, #tpu.memory_space<vmem>>, vector<1x128xf32>
    %c0_167 = arith.constant 0 : index
    %c0_168 = arith.constant 0 : index
    %321 = vector.load %arg39[%c0_167, %c0_168] : memref<128x128xf32, #tpu.memory_space<vmem>>, vector<128x128xf32>
    %c0_169 = arith.constant 0 : index
    %c0_170 = arith.constant 0 : index
    %322 = vector.load %arg40[%c0_169, %c0_170] : memref<1x128xf32, #tpu.memory_space<vmem>>, vector<1x128xf32>
    %c0_171 = arith.constant 0 : index
    %c0_172 = arith.constant 0 : index
    %323 = vector.load %arg41[%c0_171, %c0_172] : memref<128x64xf32, #tpu.memory_space<vmem>>, vector<128x64xf32>
    %c0_173 = arith.constant 0 : index
    %c0_174 = arith.constant 0 : index
    %324 = vector.load %arg42[%c0_173, %c0_174] : memref<1x64xf32, #tpu.memory_space<vmem>>, vector<1x64xf32>
    %cst_175 = arith.constant dense<0.000000e+00> : vector<64x128xf32>
    %325 = tpu.matmul %318, %319, %cst_175 {dimension_numbers = #tpu.dot_dimension_numbers<[1], [0], [0], [1], [0, 0, 1, 1], [], []>} : vector<64x64xf32>, vector<64x128xf32>, vector<64x128xf32> -> vector<64x128xf32>
    %326 = vector.broadcast %320 : vector<1x128xf32> to vector<64x128xf32>
    %327 = arith.addf %325, %326 : vector<64x128xf32>
    %cst_176 = arith.constant 0.000000e+00 : f32
    %328 = vector.broadcast %cst_176 : f32 to vector<64x128xf32>
    %329 = arith.maximumf %327, %328 : vector<64x128xf32>
    %cst_177 = arith.constant dense<0.000000e+00> : vector<64x128xf32>
    %330 = tpu.matmul %329, %321, %cst_177 {dimension_numbers = #tpu.dot_dimension_numbers<[1], [0], [0], [1], [0, 0, 1, 1], [], []>} : vector<64x128xf32>, vector<128x128xf32>, vector<64x128xf32> -> vector<64x128xf32>
    %331 = vector.broadcast %322 : vector<1x128xf32> to vector<64x128xf32>
    %332 = arith.addf %330, %331 : vector<64x128xf32>
    %cst_178 = arith.constant 0.000000e+00 : f32
    %333 = vector.broadcast %cst_178 : f32 to vector<64x128xf32>
    %334 = arith.maximumf %332, %333 : vector<64x128xf32>
    %cst_179 = arith.constant dense<0.000000e+00> : vector<64x64xf32>
    %335 = tpu.matmul %334, %323, %cst_179 {dimension_numbers = #tpu.dot_dimension_numbers<[1], [0], [0], [1], [0, 0, 1, 1], [], []>} : vector<64x128xf32>, vector<128x64xf32>, vector<64x64xf32> -> vector<64x64xf32>
    %336 = vector.broadcast %324 : vector<1x64xf32> to vector<64x64xf32>
    %337 = arith.addf %335, %336 : vector<64x64xf32>
    %c0_180 = arith.constant 0 : index
    %c0_181 = arith.constant 0 : index
    %338 = vector.load %arg43[%c0_180, %c0_181] : memref<64x64xf32, #tpu.memory_space<vmem>>, vector<64x64xf32>
    tpu.vector_store %arg43[%c0_180, %c0_181], %337 {strides = array<i32>} : memref<64x64xf32, #tpu.memory_space<vmem>>, vector<64x64xf32>,
    return
  }
}

</mosaic_0001>

<llo_original>
// kernel: fused_forward.1
$region0: #{fused_forward.1}
  #allocation0 [shape = 'u32[]', space=smem, size = 0x4, offset = 0x4, fixed_abs, tag = 'smem constant byte address 0x4 - core index']
  #allocation1 [shape = 'u32[144,128]{1,0:T(1,128)}', space=vmem, size = 0x12000, scoped, tag = 'internal scratch']
  %s0 = inlined_call_operand.smem [shape: u32[44], index: -1, kind: input, shape index: {}]
  %s1 = sld [smem:[%s0]]
  %s2 = scalar_lea.smem %s0, 1
  %s3 = sld [smem:[%s2]]
  %s4 = scalar_lea.smem %s0, 2
  %s5 = sld [smem:[%s4]]
  %s6 = scalar_lea.smem %s0, 3
  %s7 = sld [smem:[%s6]]
  %s8 = scalar_lea.smem %s0, 4
  %s9 = sld [smem:[%s8]]
  %s10 = scalar_lea.smem %s0, 5
  %s11 = sld [smem:[%s10]]
  %s12 = scalar_lea.smem %s0, 6
  %s13 = sld [smem:[%s12]]
  %s14 = scalar_lea.smem %s0, 7
  %s15 = sld [smem:[%s14]]
  %s16 = scalar_lea.smem %s0, 8
  %s17 = sld [smem:[%s16]]
  %s18 = scalar_lea.smem %s0, 9
  %s19 = sld [smem:[%s18]]
  %s20 = scalar_lea.smem %s0, 10
  %s21 = sld [smem:[%s20]]
  %s22 = scalar_lea.smem %s0, 11
  %s23 = sld [smem:[%s22]]
  %s24 = scalar_lea.smem %s0, 12
  %s25 = sld [smem:[%s24]]
  %s26 = scalar_lea.smem %s0, 13
  %s27 = sld [smem:[%s26]]
  %s28 = scalar_lea.smem %s0, 14
  %s29 = sld [smem:[%s28]]
  %s30 = scalar_lea.smem %s0, 15
  %s31 = sld [smem:[%s30]]
  %s32 = scalar_lea.smem %s0, 16
  %s33 = sld [smem:[%s32]]
  %s34 = scalar_lea.smem %s0, 17
  %s35 = sld [smem:[%s34]]
  %s36 = scalar_lea.smem %s0, 18
  %s37 = sld [smem:[%s36]]
  %s38 = scalar_lea.smem %s0, 19
  %s39 = sld [smem:[%s38]]
  %s40 = scalar_lea.smem %s0, 20
  %s41 = sld [smem:[%s40]]
  %s42 = scalar_lea.smem %s0, 21
  %s43 = sld [smem:[%s42]]
  %s44 = scalar_lea.smem %s0, 22
  %s45 = sld [smem:[%s44]]
  %s46 = scalar_lea.smem %s0, 23
  %s47 = sld [smem:[%s46]]
  %s48 = scalar_lea.smem %s0, 24
  %s49 = sld [smem:[%s48]]
  %s50 = scalar_lea.smem %s0, 25
  %s51 = sld [smem:[%s50]]
  %s52 = scalar_lea.smem %s0, 26
  %s53 = sld [smem:[%s52]]
  %s54 = scalar_lea.smem %s0, 27
  %s55 = sld [smem:[%s54]]
  %s56 = scalar_lea.smem %s0, 28
  %s57 = sld [smem:[%s56]]
  %s58 = scalar_lea.smem %s0, 29
  %s59 = sld [smem:[%s58]]
  %s60 = scalar_lea.smem %s0, 30
  %s61 = sld [smem:[%s60]]
  %s62 = scalar_lea.smem %s0, 31
  %s63 = sld [smem:[%s62]]
  %s64 = scalar_lea.smem %s0, 32
  %s65 = sld [smem:[%s64]]
  %s66 = scalar_lea.smem %s0, 33
  %s67 = sld [smem:[%s66]]
  %s68 = scalar_lea.smem %s0, 34
  %s69 = sld [smem:[%s68]]
  %s70 = scalar_lea.smem %s0, 35
  %s71 = sld [smem:[%s70]]
  %s72 = scalar_lea.smem %s0, 36
  %s73 = sld [smem:[%s72]]
  %s74 = scalar_lea.smem %s0, 37
  %s75 = sld [smem:[%s74]]
  %s76 = scalar_lea.smem %s0, 38
  %s77 = sld [smem:[%s76]]
  %s78 = scalar_lea.smem %s0, 39
  %s79 = sld [smem:[%s78]]
  %s80 = scalar_lea.smem %s0, 40
  %s81 = sld [smem:[%s80]]
  %s82 = scalar_lea.smem %s0, 41
  %s83 = sld [smem:[%s82]]
  %s84 = scalar_lea.smem %s0, 42
  %s85 = sld [smem:[%s84]]
  %s86 = scalar_lea.smem %s0, 43
  %s87 = sld [smem:[%s86]]
  %s88 = sld [smem:[#allocation0]]
  $region298: #{fused_forward.1} parent=0
    _
  %s90 = ssub.s32 1, %s88
  %s91 = scalar_select 0, %s90, %s88
  $region1: #{fused_forward.1} parent=0
    #allocation2 [shape = 'u8[32768]{0}', space=vmem, size = 0x8000, scoped, tag = 'input window, operand 3, single buffered']
    #allocation3 [shape = 's32[1]{0}', space=sflag, size = 0x4, scoped, tag = 'scoped memory for fused_forward.1']
    #allocation4 [shape = 's32[1]{0}', space=sflag, size = 0x4, scoped, tag = 'scoped memory for fused_forward.1']
    #allocation5 [shape = 'u8[512]{0}', space=vmem, size = 0x400, scoped, tag = 'input window, operand 4, single buffered']
    #allocation6 [shape = 's32[1]{0}', space=sflag, size = 0x4, scoped, tag = 'scoped memory for fused_forward.1']
    #allocation7 [shape = 'u8[32768]{0}', space=vmem, size = 0x8000, scoped, tag = 'input window, operand 5, single buffered']
    #allocation8 [shape = 'u8[512]{0}', space=vmem, size = 0x400, scoped, tag = 'input window, operand 6, single buffered']
    #allocation9 [shape = 's32[1]{0}', space=sflag, size = 0x4, scoped, tag = 'scoped memory for fused_forward.1']
    #allocation10 [shape = 'u8[512]{0}', space=vmem, size = 0x400, scoped, tag = 'input window, operand 7, single buffered']
    #allocation11 [shape = 'u8[512]{0}', space=vmem, size = 0x400, scoped, tag = 'input window, operand 8, single buffered']
    #allocation12 [shape = 's32[1]{0}', space=sflag, size = 0x4, scoped, tag = 'scoped memory for fused_forward.1']
    #allocation13 [shape = 'u8[8192]{0}', space=vmem, size = 0x2000, scoped, tag = 'input window, operand 9, single buffered']
    #allocation14 [shape = 'u8[32768]{0}', space=vmem, size = 0x8000, scoped, tag = 'input window, operand 10, single buffered']
    #allocation15 [shape = 's32[1]{0}', space=sflag, size = 0x4, scoped, tag = 'scoped memory for fused_forward.1']
    #allocation16 [shape = 'u8[512]{0}', space=vmem, size = 0x400, scoped, tag = 'input window, operand 11, single buffered']
    #allocation17 [shape = 'u8[32768]{0}', space=vmem, size = 0x8000, scoped, tag = 'input window, operand 12, single buffered']
    #allocation18 [shape = 's32[1]{0}', space=sflag, size = 0x4, scoped, tag = 'scoped memory for fused_forward.1']
    #allocation19 [shape = 'u8[512]{0}', space=vmem, size = 0x400, scoped, tag = 'input window, operand 13, single buffered']
    #allocation20 [shape = 'u8[32768]{0}', space=vmem, size = 0x8000, scoped, tag = 'input window, operand 14, single buffered']
    #allocation21 [shape = 's32[1]{0}', space=sflag, size = 0x4, scoped, tag = 'scoped memory for fused_forward.1']
    #allocation22 [shape = 'u8[512]{0}', space=vmem, size = 0x400, scoped, tag = 'input window, operand 15, single buffered']
    #allocation23 [shape = 'u8[512]{0}', space=vmem, size = 0x400, scoped, tag = 'input window, operand 16, single buffered']
    #allocation24 [shape = 's32[1]{0}', space=sflag, size = 0x4, scoped, tag = 'scoped memory for fused_forward.1']
    #allocation25 [shape = 'u8[512]{0}', space=vmem, size = 0x400, scoped, tag = 'input window, operand 17, single buffered']
    #allocation26 [shape = 'u8[32768]{0}', space=vmem, size = 0x8000, scoped, tag = 'input window, operand 18, single buffered']
    #allocation27 [shape = 's32[1]{0}', space=sflag, size = 0x4, scoped, tag = 'scoped memory for fused_forward.1']
    #allocation28 [shape = 'u8[32768]{0}', space=vmem, size = 0x8000, scoped, tag = 'input window, operand 19, single buffered']
    #allocation29 [shape = 'u8[512]{0}', space=vmem, size = 0x400, scoped, tag = 'input window, operand 20, single buffered']
    #allocation30 [shape = 's32[1]{0}', space=sflag, size = 0x4, scoped, tag = 'scoped memory for fused_forward.1']
    #allocation31 [shape = 'u8[32768]{0}', space=vmem, size = 0x8000, scoped, tag = 'input window, operand 21, single buffered']
    #allocation32 [shape = 'u8[512]{0}', space=vmem, size = 0x400, scoped, tag = 'input window, operand 22, single buffered']
    #allocation33 [shape = 's32[1]{0}', space=sflag, size = 0x4, scoped, tag = 'scoped memory for fused_forward.1']
    #allocation34 [shape = 'u8[32768]{0}', space=vmem, size = 0x8000, scoped, tag = 'input window, operand 23, single buffered']
    #allocation35 [shape = 'u8[512]{0}', space=vmem, size = 0x400, scoped, tag = 'input window, operand 24, single buffered']
    #allocation36 [shape = 's32[1]{0}', space=sflag, size = 0x4, scoped, tag = 'scoped memory for fused_forward.1']
    #allocation37 [shape = 'u8[512]{0}', space=vmem, size = 0x400, scoped, tag = 'input window, operand 25, single buffered']
    #allocation38 [shape = 'u8[512]{0}', space=vmem, size = 0x400, scoped, tag = 'input window, operand 26, single buffered']
    #allocation39 [shape = 's32[1]{0}', space=sflag, size = 0x4, scoped, tag = 'scoped memory for fused_forward.1']
    #allocation40 [shape = 'u8[32768]{0}', space=vmem, size = 0x8000, scoped, tag = 'input window, operand 28, single buffered']
    #allocation41 [shape = 'u8[32768]{0}', space=vmem, size = 0x8000, scoped, tag = 'input window, operand 29, single buffered']
    #allocation42 [shape = 's32[1]{0}', space=sflag, size = 0x4, scoped, tag = 'scoped memory for fused_forward.1']
    #allocation43 [shape = 'u8[512]{0}', space=vmem, size = 0x400, scoped, tag = 'input window, operand 30, single buffered']
    #allocation44 [shape = 'u8[32768]{0}', space=vmem, size = 0x8000, scoped, tag = 'input window, operand 33, single buffered']
    #allocation45 [shape = 's32[1]{0}', space=sflag, size = 0x4, scoped, tag = 'scoped memory for fused_forward.1']
    #allocation46 [shape = 'u8[32768]{0}', space=vmem, size = 0x8000, scoped, tag = 'input window, operand 37, single buffered']
    #allocation47 [shape = 'u8[32768]{0}', space=vmem, size = 0x8000, scoped, tag = 'output window, operand 0, single buffered']
    %92 = vsyncpa [#allocation3], 0
    %93 = vsyncpa [#allocation6], 0
    %94 = vsyncpa [#allocation9], 0
    %95 = vsyncpa [#allocation12], 0
    %96 = vsyncpa [#allocation15], 0
    %97 = vsyncpa [#allocation18], 0
    %98 = vsyncpa [#allocation21], 0
    %99 = vsyncpa [#allocation24], 0
    %100 = vsyncpa [#allocation27], 0
    %101 = vsyncpa [#allocation30], 0
    %102 = vsyncpa [#allocation33], 0
    %103 = vsyncpa [#allocation36], 0
    %104 = vsyncpa [#allocation39], 0
    %105 = vsyncpa [#allocation42], 0
    %106 = vsyncpa [#allocation45], 0
    %107 = vsyncpa [#allocation4], 0
    // Predicated region
    $region2: #{fused_forward.1} parent=1 // pred_check
      _
    $region3: #{fused_forward.1} parent=1 // pred_check_branch
      %109 = sbr.rel (0) target = $region5
    $region4: #{fused_forward.1} parent=1 // pred_region
      _
    $region5: #{fused_forward.1} parent=1 // pred_fallthru
      _
    // Predicated region
    $region6: #{fused_forward.1} parent=1 // pred_check
      _
    $region7: #{fused_forward.1} parent=1 // pred_check_branch
      %111 = sbr.rel (0) target = $region9
    $region8: #{fused_forward.1} parent=1 // pred_region
      _
    $region9: #{fused_forward.1} parent=1 // pred_fallthru
      _
    // Predicated region
    $region10: #{fused_forward.1} parent=1 // pred_check
      _
    $region11: #{fused_forward.1} parent=1 // pred_check_branch
      %113 = sbr.rel (0) target = $region13
    $region12: #{fused_forward.1} parent=1 // pred_region
      _
    $region13: #{fused_forward.1} parent=1 // pred_fallthru
      _
    // Predicated region
    $region14: #{fused_forward.1} parent=1 // pred_check
      _
    $region15: #{fused_forward.1} parent=1 // pred_check_branch
      %115 = sbr.rel (0) target = $region17
    $region16: #{fused_forward.1} parent=1 // pred_region
      %s117 = ssub.s32 1024, 1024
      %118 = vsyncadd [#allocation3], %s117
      %s119 = sshll.u32 [#allocation2], 4
      %s120 = int_to_ptr.vmem [resolvable:$true] %s119
      %125 = dma.hbm_to_vmem [thread:$0]  %s7, 1024, %s120, [#allocation3], 128, 128, 8
    $region17: #{fused_forward.1} parent=1 // pred_fallthru
      _
    // Predicated region
    $region18: #{fused_forward.1} parent=1 // pred_check
      _
    $region19: #{fused_forward.1} parent=1 // pred_check_branch
      %127 = sbr.rel (0) target = $region21
    $region20: #{fused_forward.1} parent=1 // pred_region
      %s129 = ssub.s32 16, 16
      %130 = vsyncadd [#allocation6], %s129
      %s132 = sshll.u32 [#allocation5], 4
      %s133 = int_to_ptr.vmem [resolvable:$true] %s132
      %135 = dma.hbm_to_vmem [thread:$0]  %s9, 16, %s133, [#allocation6]
    $region21: #{fused_forward.1} parent=1 // pred_fallthru
      _
    // Predicated region
    $region22: #{fused_forward.1} parent=1 // pred_check
      _
    $region23: #{fused_forward.1} parent=1 // pred_check_branch
      %137 = sbr.rel (0) target = $region25
    $region24: #{fused_forward.1} parent=1 // pred_region
      %s139 = ssub.s32 1024, 1024
      %140 = vsyncadd [#allocation6], %s139
      %s141 = sshll.u32 [#allocation7], 4
      %s142 = int_to_ptr.vmem [resolvable:$true] %s141
      %147 = dma.hbm_to_vmem [thread:$0]  %s11, 1024, %s142, [#allocation6], 128, 128, 8
    $region25: #{fused_forward.1} parent=1 // pred_fallthru
      _
    // Predicated region
    $region26: #{fused_forward.1} parent=1 // pred_check
      _
    $region27: #{fused_forward.1} parent=1 // pred_check_branch
      %149 = sbr.rel (0) target = $region29
    $region28: #{fused_forward.1} parent=1 // pred_region
      %s151 = ssub.s32 16, 16
      %152 = vsyncadd [#allocation9], %s151
      %s154 = sshll.u32 [#allocation8], 4
      %s155 = int_to_ptr.vmem [resolvable:$true] %s154
      %157 = dma.hbm_to_vmem [thread:$0]  %s13, 16, %s155, [#allocation9]
    $region29: #{fused_forward.1} parent=1 // pred_fallthru
      _
    // Predicated region
    $region30: #{fused_forward.1} parent=1 // pred_check
      _
    $region31: #{fused_forward.1} parent=1 // pred_check_branch
      %159 = sbr.rel (0) target = $region33
    $region32: #{fused_forward.1} parent=1 // pred_region
      %s161 = ssub.s32 16, 16
      %162 = vsyncadd [#allocation9], %s161
      %s164 = sshll.u32 [#allocation10], 4
      %s165 = int_to_ptr.vmem [resolvable:$true] %s164
      %167 = dma.hbm_to_vmem [thread:$0]  %s15, 16, %s165, [#allocation9]
    $region33: #{fused_forward.1} parent=1 // pred_fallthru
      _
    // Predicated region
    $region34: #{fused_forward.1} parent=1 // pred_check
      _
    $region35: #{fused_forward.1} parent=1 // pred_check_branch
      %169 = sbr.rel (0) target = $region37
    $region36: #{fused_forward.1} parent=1 // pred_region
      %s171 = ssub.s32 16, 16
      %172 = vsyncadd [#allocation12], %s171
      %s174 = sshll.u32 [#allocation11], 4
      %s175 = int_to_ptr.vmem [resolvable:$true] %s174
      %177 = dma.hbm_to_vmem [thread:$0]  %s17, 16, %s175, [#allocation12]
    $region37: #{fused_forward.1} parent=1 // pred_fallthru
      _
    // Predicated region
    $region38: #{fused_forward.1} parent=1 // pred_check
      _
    $region39: #{fused_forward.1} parent=1 // pred_check_branch
      %179 = sbr.rel (0) target = $region41
    $region40: #{fused_forward.1} parent=1 // pred_region
      %s181 = ssub.s32 256, 256
      %182 = vsyncadd [#allocation12], %s181
      %s183 = sshll.u32 [#allocation13], 4
      %s184 = int_to_ptr.vmem [resolvable:$true] %s183
      %189 = dma.hbm_to_vmem [thread:$0]  %s19, 256, %s184, [#allocation12], 128, 128, 8
    $region41: #{fused_forward.1} parent=1 // pred_fallthru
      _
    // Predicated region
    $region42: #{fused_forward.1} parent=1 // pred_check
      _
    $region43: #{fused_forward.1} parent=1 // pred_check_branch
      %191 = sbr.rel (0) target = $region45
    $region44: #{fused_forward.1} parent=1 // pred_region
      %s193 = ssub.s32 1024, 1024
      %194 = vsyncadd [#allocation15], %s193
      %s195 = sshll.u32 [#allocation14], 4
      %s196 = int_to_ptr.vmem [resolvable:$true] %s195
      %201 = dma.hbm_to_vmem [thread:$0]  %s21, 1024, %s196, [#allocation15], 128, 128, 8
    $region45: #{fused_forward.1} parent=1 // pred_fallthru
      _
    // Predicated region
    $region46: #{fused_forward.1} parent=1 // pred_check
      _
    $region47: #{fused_forward.1} parent=1 // pred_check_branch
      %203 = sbr.rel (0) target = $region49
    $region48: #{fused_forward.1} parent=1 // pred_region
      %s205 = ssub.s32 16, 16
      %206 = vsyncadd [#allocation15], %s205
      %s208 = sshll.u32 [#allocation16], 4
      %s209 = int_to_ptr.vmem [resolvable:$true] %s208
      %211 = dma.hbm_to_vmem [thread:$0]  %s23, 16, %s209, [#allocation15]
    $region49: #{fused_forward.1} parent=1 // pred_fallthru
      _
    // Predicated region
    $region50: #{fused_forward.1} parent=1 // pred_check
      _
    $region51: #{fused_forward.1} parent=1 // pred_check_branch
      %213 = sbr.rel (0) target = $region53
    $region52: #{fused_forward.1} parent=1 // pred_region
      %s215 = ssub.s32 1024, 1024
      %216 = vsyncadd [#allocation18], %s215
      %s217 = sshll.u32 [#allocation17], 4
      %s218 = int_to_ptr.vmem [resolvable:$true] %s217
      %223 = dma.hbm_to_vmem [thread:$0]  %s25, 1024, %s218, [#allocation18], 128, 128, 8
    $region53: #{fused_forward.1} parent=1 // pred_fallthru
      _
    // Predicated region
    $region54: #{fused_forward.1} parent=1 // pred_check
      _
    $region55: #{fused_forward.1} parent=1 // pred_check_branch
      %225 = sbr.rel (0) target = $region57
    $region56: #{fused_forward.1} parent=1 // pred_region
      %s227 = ssub.s32 16, 16
      %228 = vsyncadd [#allocation18], %s227
      %s230 = sshll.u32 [#allocation19], 4
      %s231 = int_to_ptr.vmem [resolvable:$true] %s230
      %233 = dma.hbm_to_vmem [thread:$0]  %s27, 16, %s231, [#allocation18]
    $region57: #{fused_forward.1} parent=1 // pred_fallthru
      _
    // Predicated region
    $region58: #{fused_forward.1} parent=1 // pred_check
      _
    $region59: #{fused_forward.1} parent=1 // pred_check_branch
      %235 = sbr.rel (0) target = $region61
    $region60: #{fused_forward.1} parent=1 // pred_region
      %s237 = ssub.s32 1024, 1024
      %238 = vsyncadd [#allocation21], %s237
      %s239 = sshll.u32 [#allocation20], 4
      %s240 = int_to_ptr.vmem [resolvable:$true] %s239
      %245 = dma.hbm_to_vmem [thread:$0]  %s29, 1024, %s240, [#allocation21], 128, 128, 8
    $region61: #{fused_forward.1} parent=1 // pred_fallthru
      _
    // Predicated region
    $region62: #{fused_forward.1} parent=1 // pred_check
      _
    $region63: #{fused_forward.1} parent=1 // pred_check_branch
      %247 = sbr.rel (0) target = $region65
    $region64: #{fused_forward.1} parent=1 // pred_region
      %s249 = ssub.s32 16, 16
      %250 = vsyncadd [#allocation21], %s249
      %s252 = sshll.u32 [#allocation22], 4
      %s253 = int_to_ptr.vmem [resolvable:$true] %s252
      %255 = dma.hbm_to_vmem [thread:$0]  %s31, 16, %s253, [#allocation21]
    $region65: #{fused_forward.1} parent=1 // pred_fallthru
      _
    // Predicated region
    $region66: #{fused_forward.1} parent=1 // pred_check
      _
    $region67: #{fused_forward.1} parent=1 // pred_check_branch
      %257 = sbr.rel (0) target = $region69
    $region68: #{fused_forward.1} parent=1 // pred_region
      %s259 = ssub.s32 16, 16
      %260 = vsyncadd [#allocation24], %s259
      %s262 = sshll.u32 [#allocation23], 4
      %s263 = int_to_ptr.vmem [resolvable:$true] %s262
      %265 = dma.hbm_to_vmem [thread:$0]  %s33, 16, %s263, [#allocation24]
    $region69: #{fused_forward.1} parent=1 // pred_fallthru
      _
    // Predicated region
    $region70: #{fused_forward.1} parent=1 // pred_check
      _
    $region71: #{fused_forward.1} parent=1 // pred_check_branch
      %267 = sbr.rel (0) target = $region73
    $region72: #{fused_forward.1} parent=1 // pred_region
      %s269 = ssub.s32 16, 16
      %270 = vsyncadd [#allocation24], %s269
      %s272 = sshll.u32 [#allocation25], 4
      %s273 = int_to_ptr.vmem [resolvable:$true] %s272
      %275 = dma.hbm_to_vmem [thread:$0]  %s35, 16, %s273, [#allocation24]
    $region73: #{fused_forward.1} parent=1 // pred_fallthru
      _
    // Predicated region
    $region74: #{fused_forward.1} parent=1 // pred_check
      _
    $region75: #{fused_forward.1} parent=1 // pred_check_branch
      %277 = sbr.rel (0) target = $region77
    $region76: #{fused_forward.1} parent=1 // pred_region
      %s279 = ssub.s32 1024, 1024
      %280 = vsyncadd [#allocation27], %s279
      %s281 = sshll.u32 [#allocation26], 4
      %s282 = int_to_ptr.vmem [resolvable:$true] %s281
      %287 = dma.hbm_to_vmem [thread:$0]  %s37, 1024, %s282, [#allocation27], 128, 128, 8
    $region77: #{fused_forward.1} parent=1 // pred_fallthru
      _
    // Predicated region
    $region78: #{fused_forward.1} parent=1 // pred_check
      _
    $region79: #{fused_forward.1} parent=1 // pred_check_branch
      %289 = sbr.rel (0) target = $region81
    $region80: #{fused_forward.1} parent=1 // pred_region
      %s291 = ssub.s32 1024, 1024
      %292 = vsyncadd [#allocation27], %s291
      %s293 = sshll.u32 [#allocation28], 4
      %s294 = int_to_ptr.vmem [resolvable:$true] %s293
      %299 = dma.hbm_to_vmem [thread:$0]  %s39, 1024, %s294, [#allocation27], 128, 128, 8
    $region81: #{fused_forward.1} parent=1 // pred_fallthru
      _
    // Predicated region
    $region82: #{fused_forward.1} parent=1 // pred_check
      _
    $region83: #{fused_forward.1} parent=1 // pred_check_branch
      %301 = sbr.rel (0) target = $region85
    $region84: #{fused_forward.1} parent=1 // pred_region
      %s303 = ssub.s32 16, 16
      %304 = vsyncadd [#allocation30], %s303
      %s306 = sshll.u32 [#allocation29], 4
      %s307 = int_to_ptr.vmem [resolvable:$true] %s306
      %309 = dma.hbm_to_vmem [thread:$0]  %s41, 16, %s307, [#allocation30]
    $region85: #{fused_forward.1} parent=1 // pred_fallthru
      _
    // Predicated region
    $region86: #{fused_forward.1} parent=1 // pred_check
      _
    $region87: #{fused_forward.1} parent=1 // pred_check_branch
      %311 = sbr.rel (0) target = $region89
    $region88: #{fused_forward.1} parent=1 // pred_region
      %s313 = ssub.s32 1024, 1024
      %314 = vsyncadd [#allocation30], %s313
      %s315 = sshll.u32 [#allocation31], 4
      %s316 = int_to_ptr.vmem [resolvable:$true] %s315
      %321 = dma.hbm_to_vmem [thread:$0]  %s43, 1024, %s316, [#allocation30], 128, 128, 8
    $region89: #{fused_forward.1} parent=1 // pred_fallthru
      _
    // Predicated region
    $region90: #{fused_forward.1} parent=1 // pred_check
      _
    $region91: #{fused_forward.1} parent=1 // pred_check_branch
      %323 = sbr.rel (0) target = $region93
    $region92: #{fused_forward.1} parent=1 // pred_region
      %s325 = ssub.s32 16, 16
      %326 = vsyncadd [#allocation33], %s325
      %s328 = sshll.u32 [#allocation32], 4
      %s329 = int_to_ptr.vmem [resolvable:$true] %s328
      %331 = dma.hbm_to_vmem [thread:$0]  %s45, 16, %s329, [#allocation33]
    $region93: #{fused_forward.1} parent=1 // pred_fallthru
      _
    // Predicated region
    $region94: #{fused_forward.1} parent=1 // pred_check
      _
    $region95: #{fused_forward.1} parent=1 // pred_check_branch
      %333 = sbr.rel (0) target = $region97
    $region96: #{fused_forward.1} parent=1 // pred_region
      %s335 = ssub.s32 1024, 1024
      %336 = vsyncadd [#allocation33], %s335
      %s337 = sshll.u32 [#allocation34], 4
      %s338 = int_to_ptr.vmem [resolvable:$true] %s337
      %343 = dma.hbm_to_vmem [thread:$0]  %s47, 1024, %s338, [#allocation33], 128, 128, 8
    $region97: #{fused_forward.1} parent=1 // pred_fallthru
      _
    // Predicated region
    $region98: #{fused_forward.1} parent=1 // pred_check
      _
    $region99: #{fused_forward.1} parent=1 // pred_check_branch
      %345 = sbr.rel (0) target = $region101
    $region100: #{fused_forward.1} parent=1 // pred_region
      %s347 = ssub.s32 16, 16
      %348 = vsyncadd [#allocation36], %s347
      %s350 = sshll.u32 [#allocation35], 4
      %s351 = int_to_ptr.vmem [resolvable:$true] %s350
      %353 = dma.hbm_to_vmem [thread:$0]  %s49, 16, %s351, [#allocation36]
    $region101: #{fused_forward.1} parent=1 // pred_fallthru
      _
    // Predicated region
    $region102: #{fused_forward.1} parent=1 // pred_check
      _
    $region103: #{fused_forward.1} parent=1 // pred_check_branch
      %355 = sbr.rel (0) target = $region105
    $region104: #{fused_forward.1} parent=1 // pred_region
      %s357 = ssub.s32 16, 16
      %358 = vsyncadd [#allocation36], %s357
      %s360 = sshll.u32 [#allocation37], 4
      %s361 = int_to_ptr.vmem [resolvable:$true] %s360
      %363 = dma.hbm_to_vmem [thread:$0]  %s51, 16, %s361, [#allocation36]
    $region105: #{fused_forward.1} parent=1 // pred_fallthru
      _
    // Predicated region
    $region106: #{fused_forward.1} parent=1 // pred_check
      _
    $region107: #{fused_forward.1} parent=1 // pred_check_branch
      %365 = sbr.rel (0) target = $region109
    $region108: #{fused_forward.1} parent=1 // pred_region
      %s367 = ssub.s32 16, 16
      %368 = vsyncadd [#allocation39], %s367
      %s370 = sshll.u32 [#allocation38], 4
      %s371 = int_to_ptr.vmem [resolvable:$true] %s370
      %373 = dma.hbm_to_vmem [thread:$0]  %s53, 16, %s371, [#allocation39]
    $region109: #{fused_forward.1} parent=1 // pred_fallthru
      _
    // Predicated region
    $region110: #{fused_forward.1} parent=1 // pred_check
      _
    $region111: #{fused_forward.1} parent=1 // pred_check_branch
      %375 = sbr.rel (0) target = $region113
    $region112: #{fused_forward.1} parent=1 // pred_region
      _
    $region113: #{fused_forward.1} parent=1 // pred_fallthru
      _
    // Predicated region
    $region114: #{fused_forward.1} parent=1 // pred_check
      _
    $region115: #{fused_forward.1} parent=1 // pred_check_branch
      %377 = sbr.rel (0) target = $region117
    $region116: #{fused_forward.1} parent=1 // pred_region
      %s379 = ssub.s32 1024, 1024
      %380 = vsyncadd [#allocation39], %s379
      %s381 = sshll.u32 [#allocation40], 4
      %s382 = int_to_ptr.vmem [resolvable:$true] %s381
      %387 = dma.hbm_to_vmem [thread:$0]  %s57, 1024, %s382, [#allocation39], 128, 128, 8
    $region117: #{fused_forward.1} parent=1 // pred_fallthru
      _
    // Predicated region
    $region118: #{fused_forward.1} parent=1 // pred_check
      _
    $region119: #{fused_forward.1} parent=1 // pred_check_branch
      %389 = sbr.rel (0) target = $region121
    $region120: #{fused_forward.1} parent=1 // pred_region
      %s391 = ssub.s32 1024, 1024
      %392 = vsyncadd [#allocation42], %s391
      %s393 = sshll.u32 [#allocation41], 4
      %s394 = int_to_ptr.vmem [resolvable:$true] %s393
      %399 = dma.hbm_to_vmem [thread:$0]  %s59, 1024, %s394, [#allocation42], 128, 128, 8
    $region121: #{fused_forward.1} parent=1 // pred_fallthru
      _
    // Predicated region
    $region122: #{fused_forward.1} parent=1 // pred_check
      _
    $region123: #{fused_forward.1} parent=1 // pred_check_branch
      %401 = sbr.rel (0) target = $region125
    $region124: #{fused_forward.1} parent=1 // pred_region
      %s403 = ssub.s32 16, 16
      %404 = vsyncadd [#allocation42], %s403
      %s406 = sshll.u32 [#allocation43], 4
      %s407 = int_to_ptr.vmem [resolvable:$true] %s406
      %409 = dma.hbm_to_vmem [thread:$0]  %s61, 16, %s407, [#allocation42]
    $region125: #{fused_forward.1} parent=1 // pred_fallthru
      _
    // Predicated region
    $region126: #{fused_forward.1} parent=1 // pred_check
      _
    $region127: #{fused_forward.1} parent=1 // pred_check_branch
      %411 = sbr.rel (0) target = $region129
    $region128: #{fused_forward.1} parent=1 // pred_region
      _
    $region129: #{fused_forward.1} parent=1 // pred_fallthru
      _
    // Predicated region
    $region130: #{fused_forward.1} parent=1 // pred_check
      _
    $region131: #{fused_forward.1} parent=1 // pred_check_branch
      %413 = sbr.rel (0) target = $region133
    $region132: #{fused_forward.1} parent=1 // pred_region
      _
    $region133: #{fused_forward.1} parent=1 // pred_fallthru
      _
    // Predicated region
    $region134: #{fused_forward.1} parent=1 // pred_check
      _
    $region135: #{fused_forward.1} parent=1 // pred_check_branch
      %415 = sbr.rel (0) target = $region137
    $region136: #{fused_forward.1} parent=1 // pred_region
      %s417 = ssub.s32 1024, 1024
      %418 = vsyncadd [#allocation45], %s417
      %s419 = sshll.u32 [#allocation44], 4
      %s420 = int_to_ptr.vmem [resolvable:$true] %s419
      %425 = dma.hbm_to_vmem [thread:$0]  %s67, 1024, %s420, [#allocation45], 128, 128, 8
    $region137: #{fused_forward.1} parent=1 // pred_fallthru
      _
    // Predicated region
    $region138: #{fused_forward.1} parent=1 // pred_check
      _
    $region139: #{fused_forward.1} parent=1 // pred_check_branch
      %427 = sbr.rel (0) target = $region141
    $region140: #{fused_forward.1} parent=1 // pred_region
      _
    $region141: #{fused_forward.1} parent=1 // pred_fallthru
      _
    // Predicated region
    $region142: #{fused_forward.1} parent=1 // pred_check
      _
    $region143: #{fused_forward.1} parent=1 // pred_check_branch
      %429 = sbr.rel (0) target = $region145
    $region144: #{fused_forward.1} parent=1 // pred_region
      _
    $region145: #{fused_forward.1} parent=1 // pred_fallthru
      _
    // Predicated region
    $region146: #{fused_forward.1} parent=1 // pred_check
      _
    $region147: #{fused_forward.1} parent=1 // pred_check_branch
      %431 = sbr.rel (0) target = $region149
    $region148: #{fused_forward.1} parent=1 // pred_region
      _
    $region149: #{fused_forward.1} parent=1 // pred_fallthru
      _
    // Predicated region
    $region150: #{fused_forward.1} parent=1 // pred_check
      _
    $region151: #{fused_forward.1} parent=1 // pred_check_branch
      %433 = sbr.rel (0) target = $region153
    $region152: #{fused_forward.1} parent=1 // pred_region
      %s435 = ssub.s32 1024, 1024
      %436 = vsyncadd [#allocation45], %s435
      %s437 = sshll.u32 [#allocation46], 4
      %s438 = int_to_ptr.vmem [resolvable:$true] %s437
      %443 = dma.hbm_to_vmem [thread:$0]  %s75, 1024, %s438, [#allocation45], 128, 128, 8
    $region153: #{fused_forward.1} parent=1 // pred_fallthru
      _
    // Predicated region
    $region154: #{fused_forward.1} parent=1 // pred_check
      _
    $region155: #{fused_forward.1} parent=1 // pred_check_branch
      %445 = sbr.rel (0) target = $region157
    $region156: #{fused_forward.1} parent=1 // pred_region
      _
    $region157: #{fused_forward.1} parent=1 // pred_fallthru
      _
    // Predicated region
    $region158: #{fused_forward.1} parent=1 // pred_check
      _
    $region159: #{fused_forward.1} parent=1 // pred_check_branch
      %447 = sbr.rel (0) target = $region161
    $region160: #{fused_forward.1} parent=1 // pred_region
      _
    $region161: #{fused_forward.1} parent=1 // pred_fallthru
      _
    // Predicated region
    $region162: #{fused_forward.1} parent=1 // pred_check
      _
    $region163: #{fused_forward.1} parent=1 // pred_check_branch
      %449 = sbr.rel (0) target = $region165
    $region164: #{fused_forward.1} parent=1 // pred_region
      _
    $region165: #{fused_forward.1} parent=1 // pred_fallthru
      _
    // Predicated region
    $region166: #{fused_forward.1} parent=1 // pred_check
      _
    $region167: #{fused_forward.1} parent=1 // pred_check_branch
      %451 = sbr.rel (0) target = $region169
    $region168: #{fused_forward.1} parent=1 // pred_region
      _
    $region169: #{fused_forward.1} parent=1 // pred_fallthru
      _
    // Predicated region
    $region170: #{fused_forward.1} parent=1 // pred_check
      _
    $region171: #{fused_forward.1} parent=1 // pred_check_branch
      %453 = sbr.rel (0) target = $region173
    $region172: #{fused_forward.1} parent=1 // pred_region
      _
    $region173: #{fused_forward.1} parent=1 // pred_fallthru
      _
    // Predicated region
    $region174: #{fused_forward.1} parent=1 // pred_check
      _
    $region175: #{fused_forward.1} parent=1 // pred_check_branch
      %455 = sbr.rel (0) target = $region177
    $region176: #{fused_forward.1} parent=1 // pred_region
      %456 = dma.done [#allocation3], 1024
    $region177: #{fused_forward.1} parent=1 // pred_fallthru
      _
    // Predicated region
    $region178: #{fused_forward.1} parent=1 // pred_check
      _
    $region179: #{fused_forward.1} parent=1 // pred_check_branch
      %458 = sbr.rel (0) target = $region181
    $region180: #{fused_forward.1} parent=1 // pred_region
      %459 = dma.done [#allocation6], 16
    $region181: #{fused_forward.1} parent=1 // pred_fallthru
      _
    // Predicated region
    $region182: #{fused_forward.1} parent=1 // pred_check
      _
    $region183: #{fused_forward.1} parent=1 // pred_check_branch
      %461 = sbr.rel (0) target = $region185
    $region184: #{fused_forward.1} parent=1 // pred_region
      %462 = dma.done [#allocation6], 1024
    $region185: #{fused_forward.1} parent=1 // pred_fallthru
      _
    // Predicated region
    $region186: #{fused_forward.1} parent=1 // pred_check
      _
    $region187: #{fused_forward.1} parent=1 // pred_check_branch
      %464 = sbr.rel (0) target = $region189
    $region188: #{fused_forward.1} parent=1 // pred_region
      %465 = dma.done [#allocation9], 16
    $region189: #{fused_forward.1} parent=1 // pred_fallthru
      _
    // Predicated region
    $region190: #{fused_forward.1} parent=1 // pred_check
      _
    $region191: #{fused_forward.1} parent=1 // pred_check_branch
      %467 = sbr.rel (0) target = $region193
    $region192: #{fused_forward.1} parent=1 // pred_region
      %468 = dma.done [#allocation9], 16
    $region193: #{fused_forward.1} parent=1 // pred_fallthru
      _
    // Predicated region
    $region194: #{fused_forward.1} parent=1 // pred_check
      _
    $region195: #{fused_forward.1} parent=1 // pred_check_branch
      %470 = sbr.rel (0) target = $region197
    $region196: #{fused_forward.1} parent=1 // pred_region
      %471 = dma.done [#allocation12], 16
    $region197: #{fused_forward.1} parent=1 // pred_fallthru
      _
    // Predicated region
    $region198: #{fused_forward.1} parent=1 // pred_check
      _
    $region199: #{fused_forward.1} parent=1 // pred_check_branch
      %473 = sbr.rel (0) target = $region201
    $region200: #{fused_forward.1} parent=1 // pred_region
      %474 = dma.done [#allocation12], 256
    $region201: #{fused_forward.1} parent=1 // pred_fallthru
      _
    // Predicated region
    $region202: #{fused_forward.1} parent=1 // pred_check
      _
    $region203: #{fused_forward.1} parent=1 // pred_check_branch
      %476 = sbr.rel (0) target = $region205
    $region204: #{fused_forward.1} parent=1 // pred_region
      %477 = dma.done [#allocation15], 1024
    $region205: #{fused_forward.1} parent=1 // pred_fallthru
      _
    // Predicated region
    $region206: #{fused_forward.1} parent=1 // pred_check
      _
    $region207: #{fused_forward.1} parent=1 // pred_check_branch
      %479 = sbr.rel (0) target = $region209
    $region208: #{fused_forward.1} parent=1 // pred_region
      %480 = dma.done [#allocation15], 16
    $region209: #{fused_forward.1} parent=1 // pred_fallthru
      _
    // Predicated region
    $region210: #{fused_forward.1} parent=1 // pred_check
      _
    $region211: #{fused_forward.1} parent=1 // pred_check_branch
      %482 = sbr.rel (0) target = $region213
    $region212: #{fused_forward.1} parent=1 // pred_region
      %483 = dma.done [#allocation18], 1024
    $region213: #{fused_forward.1} parent=1 // pred_fallthru
      _
    // Predicated region
    $region214: #{fused_forward.1} parent=1 // pred_check
      _
    $region215: #{fused_forward.1} parent=1 // pred_check_branch
      %485 = sbr.rel (0) target = $region217
    $region216: #{fused_forward.1} parent=1 // pred_region
      %486 = dma.done [#allocation18], 16
    $region217: #{fused_forward.1} parent=1 // pred_fallthru
      _
    // Predicated region
    $region218: #{fused_forward.1} parent=1 // pred_check
      _
    $region219: #{fused_forward.1} parent=1 // pred_check_branch
      %488 = sbr.rel (0) target = $region221
    $region220: #{fused_forward.1} parent=1 // pred_region
      %489 = dma.done [#allocation21], 1024
    $region221: #{fused_forward.1} parent=1 // pred_fallthru
      _
    // Predicated region
    $region222: #{fused_forward.1} parent=1 // pred_check
      _
    $region223: #{fused_forward.1} parent=1 // pred_check_branch
      %491 = sbr.rel (0) target = $region225
    $region224: #{fused_forward.1} parent=1 // pred_region
      %492 = dma.done [#allocation21], 16
    $region225: #{fused_forward.1} parent=1 // pred_fallthru
      _
    // Predicated region
    $region226: #{fused_forward.1} parent=1 // pred_check
      _
    $region227: #{fused_forward.1} parent=1 // pred_check_branch
      %494 = sbr.rel (0) target = $region229
    $region228: #{fused_forward.1} parent=1 // pred_region
      %495 = dma.done [#allocation24], 16
    $region229: #{fused_forward.1} parent=1 // pred_fallthru
      _
    // Predicated region
    $region230: #{fused_forward.1} parent=1 // pred_check
      _
    $region231: #{fused_forward.1} parent=1 // pred_check_branch
      %497 = sbr.rel (0) target = $region233
    $region232: #{fused_forward.1} parent=1 // pred_region
      %498 = dma.done [#allocation24], 16
    $region233: #{fused_forward.1} parent=1 // pred_fallthru
      _
    // Predicated region
    $region234: #{fused_forward.1} parent=1 // pred_check
      _
    $region235: #{fused_forward.1} parent=1 // pred_check_branch
      %500 = sbr.rel (0) target = $region237
    $region236: #{fused_forward.1} parent=1 // pred_region
      %501 = dma.done [#allocation27], 1024
    $region237: #{fused_forward.1} parent=1 // pred_fallthru
      _
    // Predicated region
    $region238: #{fused_forward.1} parent=1 // pred_check
      _
    $region239: #{fused_forward.1} parent=1 // pred_check_branch
      %503 = sbr.rel (0) target = $region241
    $region240: #{fused_forward.1} parent=1 // pred_region
      %504 = dma.done [#allocation27], 1024
    $region241: #{fused_forward.1} parent=1 // pred_fallthru
      _
    // Predicated region
    $region242: #{fused_forward.1} parent=1 // pred_check
      _
    $region243: #{fused_forward.1} parent=1 // pred_check_branch
      %506 = sbr.rel (0) target = $region245
    $region244: #{fused_forward.1} parent=1 // pred_region
      %507 = dma.done [#allocation30], 16
    $region245: #{fused_forward.1} parent=1 // pred_fallthru
      _
    // Predicated region
    $region246: #{fused_forward.1} parent=1 // pred_check
      _
    $region247: #{fused_forward.1} parent=1 // pred_check_branch
      %509 = sbr.rel (0) target = $region249
    $region248: #{fused_forward.1} parent=1 // pred_region
      %510 = dma.done [#allocation30], 1024
    $region249: #{fused_forward.1} parent=1 // pred_fallthru
      _
    // Predicated region
    $region250: #{fused_forward.1} parent=1 // pred_check
      _
    $region251: #{fused_forward.1} parent=1 // pred_check_branch
      %512 = sbr.rel (0) target = $region253
    $region252: #{fused_forward.1} parent=1 // pred_region
      %513 = dma.done [#allocation33], 16
    $region253: #{fused_forward.1} parent=1 // pred_fallthru
      _
    // Predicated region
    $region254: #{fused_forward.1} parent=1 // pred_check
      _
    $region255: #{fused_forward.1} parent=1 // pred_check_branch
      %515 = sbr.rel (0) target = $region257
    $region256: #{fused_forward.1} parent=1 // pred_region
      %516 = dma.done [#allocation33], 1024
    $region257: #{fused_forward.1} parent=1 // pred_fallthru
      _
    // Predicated region
    $region258: #{fused_forward.1} parent=1 // pred_check
      _
    $region259: #{fused_forward.1} parent=1 // pred_check_branch
      %518 = sbr.rel (0) target = $region261
    $region260: #{fused_forward.1} parent=1 // pred_region
      %519 = dma.done [#allocation36], 16
    $region261: #{fused_forward.1} parent=1 // pred_fallthru
      _
    // Predicated region
    $region262: #{fused_forward.1} parent=1 // pred_check
      _
    $region263: #{fused_forward.1} parent=1 // pred_check_branch
      %521 = sbr.rel (0) target = $region265
    $region264: #{fused_forward.1} parent=1 // pred_region
      %522 = dma.done [#allocation36], 16
    $region265: #{fused_forward.1} parent=1 // pred_fallthru
      _
    // Predicated region
    $region266: #{fused_forward.1} parent=1 // pred_check
      _
    $region267: #{fused_forward.1} parent=1 // pred_check_branch
      %524 = sbr.rel (0) target = $region269
    $region268: #{fused_forward.1} parent=1 // pred_region
      %525 = dma.done [#allocation39], 16
    $region269: #{fused_forward.1} parent=1 // pred_fallthru
      _
    // Predicated region
    $region270: #{fused_forward.1} parent=1 // pred_check
      _
    $region271: #{fused_forward.1} parent=1 // pred_check_branch
      %527 = sbr.rel (0) target = $region273
    $region272: #{fused_forward.1} parent=1 // pred_region
      %528 = dma.done [#allocation39], 1024
    $region273: #{fused_forward.1} parent=1 // pred_fallthru
      _
    // Predicated region
    $region274: #{fused_forward.1} parent=1 // pred_check
      _
    $region275: #{fused_forward.1} parent=1 // pred_check_branch
      %530 = sbr.rel (0) target = $region277
    $region276: #{fused_forward.1} parent=1 // pred_region
      %531 = dma.done [#allocation42], 1024
    $region277: #{fused_forward.1} parent=1 // pred_fallthru
      _
    // Predicated region
    $region278: #{fused_forward.1} parent=1 // pred_check
      _
    $region279: #{fused_forward.1} parent=1 // pred_check_branch
      %533 = sbr.rel (0) target = $region281
    $region280: #{fused_forward.1} parent=1 // pred_region
      %534 = dma.done [#allocation42], 16
    $region281: #{fused_forward.1} parent=1 // pred_fallthru
      _
    // Predicated region
    $region282: #{fused_forward.1} parent=1 // pred_check
      _
    $region283: #{fused_forward.1} parent=1 // pred_check_branch
      %536 = sbr.rel (0) target = $region285
    $region284: #{fused_forward.1} parent=1 // pred_region
      %537 = dma.done [#allocation45], 1024
    $region285: #{fused_forward.1} parent=1 // pred_fallthru
      _
    // Predicated region
    $region286: #{fused_forward.1} parent=1 // pred_check
      _
    $region287: #{fused_forward.1} parent=1 // pred_check_branch
      %539 = sbr.rel (0) target = $region289
    $region288: #{fused_forward.1} parent=1 // pred_region
      %540 = dma.done [#allocation45], 1024
    $region289: #{fused_forward.1} parent=1 // pred_fallthru
      _
    %v541 = vld [vmem:[%s1] sm:$0xff]
    %v542 = vld [vmem:[%s1 + $0x8] sm:$0xff]
    %v543 = vld [vmem:[%s1 + $0x10] sm:$0xff]
    %v544 = vld [vmem:[%s1 + $0x18] sm:$0xff]
    %v545 = vld [vmem:[%s1 + $0x20] sm:$0xff]
    %v546 = vld [vmem:[%s1 + $0x28] sm:$0xff]
    %v547 = vld [vmem:[%s1 + $0x30] sm:$0xff]
    %v548 = vld [vmem:[%s1 + $0x38] sm:$0xff]
    %v549 = vld [vmem:[%s3] sm:$0xff]
    %v550 = vld [vmem:[%s3 + $0x8] sm:$0xff]
    %v551 = vld [vmem:[%s3 + $0x10] sm:$0xff]
    %v552 = vld [vmem:[%s3 + $0x18] sm:$0xff]
    %v553 = vld [vmem:[%s3 + $0x20] sm:$0xff]
    %v554 = vld [vmem:[%s3 + $0x28] sm:$0xff]
    %v555 = vld [vmem:[%s3 + $0x30] sm:$0xff]
    %v556 = vld [vmem:[%s3 + $0x38] sm:$0xff]
    %v557 = vld [vmem:[%s5] sm:$0x1]
    %v558 = vld [vmem:[#allocation2] sm:$0xff]
    %v559 = vld [vmem:[#allocation2 + $0x8] sm:$0xff]
    %v560 = vld [vmem:[#allocation2 + $0x10] sm:$0xff]
    %v561 = vld [vmem:[#allocation2 + $0x18] sm:$0xff]
    %v562 = vld [vmem:[#allocation2 + $0x20] sm:$0xff]
    %v563 = vld [vmem:[#allocation2 + $0x28] sm:$0xff]
    %v564 = vld [vmem:[#allocation2 + $0x30] sm:$0xff]
    %v565 = vld [vmem:[#allocation2 + $0x38] sm:$0xff]
    %v566 = vld [vmem:[#allocation5] sm:$0x1]
    %v567 = vld [vmem:[#allocation7] sm:$0xff]
    %v568 = vld [vmem:[#allocation7 + $0x8] sm:$0xff]
    %v569 = vld [vmem:[#allocation7 + $0x10] sm:$0xff]
    %v570 = vld [vmem:[#allocation7 + $0x18] sm:$0xff]
    %v571 = vld [vmem:[#allocation7 + $0x20] sm:$0xff]
    %v572 = vld [vmem:[#allocation7 + $0x28] sm:$0xff]
    %v573 = vld [vmem:[#allocation7 + $0x30] sm:$0xff]
    %v574 = vld [vmem:[#allocation7 + $0x38] sm:$0xff]
    %v575 = vld [vmem:[#allocation8] sm:$0x1]
    %v576 = vld [vmem:[#allocation10] sm:$0x1]
    %v577 = vld [vmem:[#allocation11] sm:$0x1]
    %vm578 = vcmask 523264
    %v580 = vsel %vm578, %v541, 0
    %v583 = vsel %vm578, %v542, 0
    %v586 = vsel %vm578, %v543, 0
    %v589 = vsel %vm578, %v544, 0
    %v592 = vsel %vm578, %v545, 0
    %v595 = vsel %vm578, %v546, 0
    %v598 = vsel %vm578, %v547, 0
    %v601 = vsel %vm578, %v548, 0
    %603 = vmatprep.subr.mxu0 0.0
    %604 = vmatpush1.msra.mxu0 %v549
    %605 = vmatprep.subr.mxu0 0.0
    %606 = vmatpush1.msra.mxu0 %v550
    %607 = vmatprep.subr.mxu0 0.0
    %608 = vmatpush1.msra.mxu0 %v551
    %609 = vmatprep.subr.mxu0 0.0
    %610 = vmatpush1.msra.mxu0 %v552
    %611 = vmatprep.subr.mxu0 0.0
    %612 = vmatpush1.msra.mxu0 %v553
    %613 = vmatprep.subr.mxu0 0.0
    %614 = vmatpush1.msra.mxu0 %v554
    %615 = vmatprep.subr.mxu0 0.0
    %616 = vmatpush1.msra.mxu0 %v555
    %617 = vmatprep.subr.mxu0 0.0
    %618 = vmatpush1.msra.mxu0 %v556
    %619 = vmatprep.subr.mxu0 0.0
    %620 = vmatpush1.msra.mxu0 0.0
    %621 = vmatprep.subr.mxu0 0.0
    %622 = vmatpush1.msra.mxu0 0.0
    %623 = vmatprep.subr.mxu0 0.0
    %624 = vmatpush1.msra.mxu0 0.0
    %625 = vmatprep.subr.mxu0 0.0
    %626 = vmatpush1.msra.mxu0 0.0
    %627 = vmatprep.subr.mxu0 0.0
    %628 = vmatpush1.msra.mxu0 0.0
    %629 = vmatprep.subr.mxu0 0.0
    %630 = vmatpush1.msra.mxu0 0.0
    %631 = vmatprep.subr.mxu0 0.0
    %632 = vmatpush1.msra.mxu0 0.0
    %633 = vmatprep.subr.mxu0 0.0
    %634 = vmatpush1.msra.mxu0 0.0
    %635 = vmatprep.subr.mxu0 0.0
    %636 = vmatpush1.msra.mxu0 0.0
    %637 = vmatprep.subr.mxu0 0.0
    %638 = vmatpush1.msra.mxu0 0.0
    %639 = vmatprep.subr.mxu0 0.0
    %640 = vmatpush1.msra.mxu0 0.0
    %641 = vmatprep.subr.mxu0 0.0
    %642 = vmatpush1.msra.mxu0 0.0
    %643 = vmatprep.subr.mxu0 0.0
    %644 = vmatpush1.msra.mxu0 0.0
    %645 = vmatprep.subr.mxu0 0.0
    %646 = vmatpush1.msra.mxu0 0.0
    %647 = vmatprep.subr.mxu0 0.0
    %648 = vmatpush1.msra.mxu0 0.0
    %649 = vmatprep.subr.mxu0 0.0
    %650 = vmatpush1.msra.mxu0 0.0
    %651 = vmatprep.subr.mxu0 0.0
    %652 = vmatpush1.msra.mxu0 0.0
    %653 = vmatprep.subr.mxu0 0.0
    %654 = vmatpush1.msra.mxu0 0.0
    %655 = vmatprep.subr.mxu0 0.0
    %656 = vmatpush1.msra.mxu0 0.0
    %657 = vmatprep.subr.mxu0 0.0
    %658 = vmatpush1.msra.mxu0 0.0
    %659 = vmatprep.subr.mxu0 0.0
    %660 = vmatpush1.msra.mxu0 0.0
    %661 = vmatprep.subr.mxu0 0.0
    %662 = vmatpush1.msra.mxu0 0.0
    %663 = vmatprep.subr.mxu0 0.0
    %664 = vmatpush1.msra.mxu0 0.0
    %665 = vmatprep.subr.mxu0 0.0
    %666 = vmatpush1.msra.mxu0 0.0
    %667 = vmatprep.mubr.f32.mxu0 0.0
    %668 = vmatmul.mubr.f32.gmra.mrb[0].mxu0 %v580
    %v669 = vpop.f32.mrb[0].mxu0
    %v670 = vadd.f32 0.0, %v669
    %v671 = vpop.f32.mrb[0].mxu0
    %672 = vmatprep.mubr.f32.mxu0 0.0
    %673 = vmatmul.mubr.f32.gmra.mrb[0].mxu0 %v583
    %v674 = vpop.f32.mrb[0].mxu0
    %v675 = vadd.f32 0.0, %v674
    %v676 = vpop.f32.mrb[0].mxu0
    %677 = vmatprep.mubr.f32.mxu0 0.0
    %678 = vmatmul.mubr.f32.gmra.mrb[0].mxu0 %v586
    %v679 = vpop.f32.mrb[0].mxu0
    %v680 = vadd.f32 0.0, %v679
    %v681 = vpop.f32.mrb[0].mxu0
    %682 = vmatprep.mubr.f32.mxu0 0.0
    %683 = vmatmul.mubr.f32.gmra.mrb[0].mxu0 %v589
    %v684 = vpop.f32.mrb[0].mxu0
    %v685 = vadd.f32 0.0, %v684
    %v686 = vpop.f32.mrb[0].mxu0
    %687 = vmatprep.mubr.f32.mxu0 0.0
    %688 = vmatmul.mubr.f32.gmra.mrb[0].mxu0 %v592
    %v689 = vpop.f32.mrb[0].mxu0
    %v690 = vadd.f32 0.0, %v689
    %v691 = vpop.f32.mrb[0].mxu0
    %692 = vmatprep.mubr.f32.mxu0 0.0
    %693 = vmatmul.mubr.f32.gmra.mrb[0].mxu0 %v595
    %v694 = vpop.f32.mrb[0].mxu0
    %v695 = vadd.f32 0.0, %v694
    %v696 = vpop.f32.mrb[0].mxu0
    %697 = vmatprep.mubr.f32.mxu0 0.0
    %698 = vmatmul.mubr.f32.gmra.mrb[0].mxu0 %v598
    %v699 = vpop.f32.mrb[0].mxu0
    %v700 = vadd.f32 0.0, %v699
    %v701 = vpop.f32.mrb[0].mxu0
    %702 = vmatprep.mubr.f32.mxu0 0.0
    %703 = vmatmul.mubr.f32.gmra.mrb[0].mxu0 %v601
    %v704 = vpop.f32.mrb[0].mxu0
    %v705 = vadd.f32 0.0, %v704
    %v706 = vpop.f32.mrb[0].mxu0
    %707 = vdwg.mxu0
    %v709 = vlaneseq
    %v710 = vshrl.u32 %v709, 7
    %v711 = vsub.s32 0, %v710
    %v712 = vrot.slane %v557, %v711
    %v714 = vadd.f32 %v670, %v712
    %v715 = vadd.f32 %v675, %v712
    %v716 = vadd.f32 %v680, %v712
    %v717 = vadd.f32 %v685, %v712
    %v718 = vadd.f32 %v690, %v712
    %v719 = vadd.f32 %v695, %v712
    %v720 = vadd.f32 %v700, %v712
    %v721 = vadd.f32 %v705, %v712
    %730 = vrot.lane.b32.xlu0 %v670, 64
    %v731 = vpop.permute.xlu0 %730
    %732 = vrot.lane.b32.xlu0 %v675, 64
    %v733 = vpop.permute.xlu0 %732
    %734 = vrot.lane.b32.xlu0 %v680, 64
    %v735 = vpop.permute.xlu0 %734
    %736 = vrot.lane.b32.xlu0 %v685, 64
    %v737 = vpop.permute.xlu0 %736
    %738 = vrot.lane.b32.xlu0 %v690, 64
    %v739 = vpop.permute.xlu0 %738
    %740 = vrot.lane.b32.xlu0 %v695, 64
    %v741 = vpop.permute.xlu0 %740
    %742 = vrot.lane.b32.xlu0 %v700, 64
    %v743 = vpop.permute.xlu0 %742
    %744 = vrot.lane.b32.xlu0 %v705, 64
    %v745 = vpop.permute.xlu0 %744
    %v754 = vrot.slane %v731, 6
    %v755 = vrot.slane %v733, 6
    %v756 = vrot.slane %v735, 6
    %v757 = vrot.slane %v737, 6
    %v758 = vrot.slane %v739, 6
    %v759 = vrot.slane %v741, 6
    %v760 = vrot.slane %v743, 6
    %v761 = vrot.slane %v745, 6
    %v762 = vlaneseq
    %v763 = vshrl.u32 %v762, 7
    %vm764 = vcmp.lt.s32.totalorder %v763, 2
    %v765 = vsel %vm764, %v760, %v761
    %v766 = vsel %vm764, %v759, %v760
    %v767 = vsel %vm764, %v758, %v759
    %v768 = vsel %vm764, %v757, %v758
    %v769 = vsel %vm764, %v756, %v757
    %v770 = vsel %vm764, %v755, %v756
    %v771 = vsel %vm764, %v754, %v755
    %v772 = vsel %vm764, %v761, %v754
    %v773 = vadd.f32 %v714, %v772
    %v774 = vadd.f32 %v715, %v771
    %v775 = vadd.f32 %v716, %v770
    %v776 = vadd.f32 %v717, %v769
    %v777 = vadd.f32 %v718, %v768
    %v778 = vadd.f32 %v719, %v767
    %v779 = vadd.f32 %v720, %v766
    %v780 = vadd.f32 %v721, %v765
    %v781 = vmax.f32 %v773, 0.0
    %v782 = vmax.f32 %v774, 0.0
    %v783 = vmax.f32 %v775, 0.0
    %v784 = vmax.f32 %v776, 0.0
    %v785 = vmax.f32 %v777, 0.0
    %v786 = vmax.f32 %v778, 0.0
    %v787 = vmax.f32 %v779, 0.0
    %v788 = vmax.f32 %v780, 0.0
    %v790 = vlaneseq
    %v791 = vshrl.u32 %v790, 7
    %v792 = vsub.s32 0, %v791
    %v793 = vrot.slane %v566, %v792
    %v796 = vsel %vm578, %v781, 0
    %v799 = vsel %vm578, %v782, 0
    %v802 = vsel %vm578, %v783, 0
    %v805 = vsel %vm578, %v784, 0
    %v808 = vsel %vm578, %v785, 0
    %v811 = vsel %vm578, %v786, 0
    %v814 = vsel %vm578, %v787, 0
    %v817 = vsel %vm578, %v788, 0
    %819 = vmatprep.subr.mxu0 0.0
    %820 = vmatpush1.msra.mxu0 %v558
    %821 = vmatprep.subr.mxu0 0.0
    %822 = vmatpush1.msra.mxu0 %v559
    %823 = vmatprep.subr.mxu0 0.0
    %824 = vmatpush1.msra.mxu0 %v560
    %825 = vmatprep.subr.mxu0 0.0
    %826 = vmatpush1.msra.mxu0 %v561
    %827 = vmatprep.subr.mxu0 0.0
    %828 = vmatpush1.msra.mxu0 %v562
    %829 = vmatprep.subr.mxu0 0.0
    %830 = vmatpush1.msra.mxu0 %v563
    %831 = vmatprep.subr.mxu0 0.0
    %832 = vmatpush1.msra.mxu0 %v564
    %833 = vmatprep.subr.mxu0 0.0
    %834 = vmatpush1.msra.mxu0 %v565
    %835 = vmatprep.subr.mxu0 0.0
    %836 = vmatpush1.msra.mxu0 0.0
    %837 = vmatprep.subr.mxu0 0.0
    %838 = vmatpush1.msra.mxu0 0.0
    %839 = vmatprep.subr.mxu0 0.0
    %840 = vmatpush1.msra.mxu0 0.0
    %841 = vmatprep.subr.mxu0 0.0
    %842 = vmatpush1.msra.mxu0 0.0
    %843 = vmatprep.subr.mxu0 0.0
    %844 = vmatpush1.msra.mxu0 0.0
    %845 = vmatprep.subr.mxu0 0.0
    %846 = vmatpush1.msra.mxu0 0.0
    %847 = vmatprep.subr.mxu0 0.0
    %848 = vmatpush1.msra.mxu0 0.0
    %849 = vmatprep.subr.mxu0 0.0
    %850 = vmatpush1.msra.mxu0 0.0
    %851 = vmatprep.subr.mxu0 0.0
    %852 = vmatpush1.msra.mxu0 0.0
    %853 = vmatprep.subr.mxu0 0.0
    %854 = vmatpush1.msra.mxu0 0.0
    %855 = vmatprep.subr.mxu0 0.0
    %856 = vmatpush1.msra.mxu0 0.0
    %857 = vmatprep.subr.mxu0 0.0
    %858 = vmatpush1.msra.mxu0 0.0
    %859 = vmatprep.subr.mxu0 0.0
    %860 = vmatpush1.msra.mxu0 0.0
    %861 = vmatprep.subr.mxu0 0.0
    %862 = vmatpush1.msra.mxu0 0.0
    %863 = vmatprep.subr.mxu0 0.0
    %864 = vmatpush1.msra.mxu0 0.0
    %865 = vmatprep.subr.mxu0 0.0
    %866 = vmatpush1.msra.mxu0 0.0
    %867 = vmatprep.subr.mxu0 0.0
    %868 = vmatpush1.msra.mxu0 0.0
    %869 = vmatprep.subr.mxu0 0.0
    %870 = vmatpush1.msra.mxu0 0.0
    %871 = vmatprep.subr.mxu0 0.0
    %872 = vmatpush1.msra.mxu0 0.0
    %873 = vmatprep.subr.mxu0 0.0
    %874 = vmatpush1.msra.mxu0 0.0
    %875 = vmatprep.subr.mxu0 0.0
    %876 = vmatpush1.msra.mxu0 0.0
    %877 = vmatprep.subr.mxu0 0.0
    %878 = vmatpush1.msra.mxu0 0.0
    %879 = vmatprep.subr.mxu0 0.0
    %880 = vmatpush1.msra.mxu0 0.0
    %881 = vmatprep.subr.mxu0 0.0
    %882 = vmatpush1.msra.mxu0 0.0
    %883 = vmatprep.mubr.f32.mxu0 0.0
    %884 = vmatmul.mubr.f32.gmra.mrb[0].mxu0 %v796
    %v885 = vpop.f32.mrb[0].mxu0
    %v886 = vadd.f32 %v793, %v885
    %v887 = vpop.f32.mrb[0].mxu0
    %888 = vmatprep.mubr.f32.mxu0 0.0
    %889 = vmatmul.mubr.f32.gmra.mrb[0].mxu0 %v799
    %v890 = vpop.f32.mrb[0].mxu0
    %v891 = vadd.f32 %v793, %v890
    %v892 = vpop.f32.mrb[0].mxu0
    %893 = vmatprep.mubr.f32.mxu0 0.0
    %894 = vmatmul.mubr.f32.gmra.mrb[0].mxu0 %v802
    %v895 = vpop.f32.mrb[0].mxu0
    %v896 = vadd.f32 %v793, %v895
    %v897 = vpop.f32.mrb[0].mxu0
    %898 = vmatprep.mubr.f32.mxu0 0.0
    %899 = vmatmul.mubr.f32.gmra.mrb[0].mxu0 %v805
    %v900 = vpop.f32.mrb[0].mxu0
    %v901 = vadd.f32 %v793, %v900
    %v902 = vpop.f32.mrb[0].mxu0
    %903 = vmatprep.mubr.f32.mxu0 0.0
    %904 = vmatmul.mubr.f32.gmra.mrb[0].mxu0 %v808
    %v905 = vpop.f32.mrb[0].mxu0
    %v906 = vadd.f32 %v793, %v905
    %v907 = vpop.f32.mrb[0].mxu0
    %908 = vmatprep.mubr.f32.mxu0 0.0
    %909 = vmatmul.mubr.f32.gmra.mrb[0].mxu0 %v811
    %v910 = vpop.f32.mrb[0].mxu0
    %v911 = vadd.f32 %v793, %v910
    %v912 = vpop.f32.mrb[0].mxu0
    %913 = vmatprep.mubr.f32.mxu0 0.0
    %914 = vmatmul.mubr.f32.gmra.mrb[0].mxu0 %v814
    %v915 = vpop.f32.mrb[0].mxu0
    %v916 = vadd.f32 %v793, %v915
    %v917 = vpop.f32.mrb[0].mxu0
    %918 = vmatprep.mubr.f32.mxu0 0.0
    %919 = vmatmul.mubr.f32.gmra.mrb[0].mxu0 %v817
    %v920 = vpop.f32.mrb[0].mxu0
    %v921 = vadd.f32 %v793, %v920
    %v922 = vpop.f32.mrb[0].mxu0
    %923 = vdwg.mxu0
    %v924 = vmax.f32 %v886, 0.0
    %v925 = vmax.f32 %v891, 0.0
    %v926 = vmax.f32 %v896, 0.0
    %v927 = vmax.f32 %v901, 0.0
    %v928 = vmax.f32 %v906, 0.0
    %v929 = vmax.f32 %v911, 0.0
    %v930 = vmax.f32 %v916, 0.0
    %v931 = vmax.f32 %v921, 0.0
    %v933 = vlaneseq
    %v934 = vshrl.u32 %v933, 7
    %v935 = vsub.s32 0, %v934
    %v936 = vrot.slane %v575, %v935
    %v939 = vsel %vm578, %v924, 0
    %v942 = vsel %vm578, %v925, 0
    %v945 = vsel %vm578, %v926, 0
    %v948 = vsel %vm578, %v927, 0
    %v951 = vsel %vm578, %v928, 0
    %v954 = vsel %vm578, %v929, 0
    %v957 = vsel %vm578, %v930, 0
    %v960 = vsel %vm578, %v931, 0
    %962 = vmatprep.subr.mxu0 0.0
    %963 = vmatpush1.msra.mxu0 %v567
    %964 = vmatprep.subr.mxu0 0.0
    %965 = vmatpush1.msra.mxu0 %v568
    %966 = vmatprep.subr.mxu0 0.0
    %967 = vmatpush1.msra.mxu0 %v569
    %968 = vmatprep.subr.mxu0 0.0
    %969 = vmatpush1.msra.mxu0 %v570
    %970 = vmatprep.subr.mxu0 0.0
    %971 = vmatpush1.msra.mxu0 %v571
    %972 = vmatprep.subr.mxu0 0.0
    %973 = vmatpush1.msra.mxu0 %v572
    %974 = vmatprep.subr.mxu0 0.0
    %975 = vmatpush1.msra.mxu0 %v573
    %976 = vmatprep.subr.mxu0 0.0
    %977 = vmatpush1.msra.mxu0 %v574
    %978 = vmatprep.subr.mxu0 0.0
    %979 = vmatpush1.msra.mxu0 0.0
    %980 = vmatprep.subr.mxu0 0.0
    %981 = vmatpush1.msra.mxu0 0.0
    %982 = vmatprep.subr.mxu0 0.0
    %983 = vmatpush1.msra.mxu0 0.0
    %984 = vmatprep.subr.mxu0 0.0
    %985 = vmatpush1.msra.mxu0 0.0
    %986 = vmatprep.subr.mxu0 0.0
    %987 = vmatpush1.msra.mxu0 0.0
    %988 = vmatprep.subr.mxu0 0.0
    %989 = vmatpush1.msra.mxu0 0.0
    %990 = vmatprep.subr.mxu0 0.0
    %991 = vmatpush1.msra.mxu0 0.0
    %992 = vmatprep.subr.mxu0 0.0
    %993 = vmatpush1.msra.mxu0 0.0
    %994 = vmatprep.subr.mxu0 0.0
    %995 = vmatpush1.msra.mxu0 0.0
    %996 = vmatprep.subr.mxu0 0.0
    %997 = vmatpush1.msra.mxu0 0.0
    %998 = vmatprep.subr.mxu0 0.0
    %999 = vmatpush1.msra.mxu0 0.0
    %1000 = vmatprep.subr.mxu0 0.0
    %1001 = vmatpush1.msra.mxu0 0.0
    %1002 = vmatprep.subr.mxu0 0.0
    %1003 = vmatpush1.msra.mxu0 0.0
    %1004 = vmatprep.subr.mxu0 0.0
    %1005 = vmatpush1.msra.mxu0 0.0
    %1006 = vmatprep.subr.mxu0 0.0
    %1007 = vmatpush1.msra.mxu0 0.0
    %1008 = vmatprep.subr.mxu0 0.0
    %1009 = vmatpush1.msra.mxu0 0.0
    %1010 = vmatprep.subr.mxu0 0.0
    %1011 = vmatpush1.msra.mxu0 0.0
    %1012 = vmatprep.subr.mxu0 0.0
    %1013 = vmatpush1.msra.mxu0 0.0
    %1014 = vmatprep.subr.mxu0 0.0
    %1015 = vmatpush1.msra.mxu0 0.0
    %1016 = vmatprep.subr.mxu0 0.0
    %1017 = vmatpush1.msra.mxu0 0.0
    %1018 = vmatprep.subr.mxu0 0.0
    %1019 = vmatpush1.msra.mxu0 0.0
    %1020 = vmatprep.subr.mxu0 0.0
    %1021 = vmatpush1.msra.mxu0 0.0
    %1022 = vmatprep.subr.mxu0 0.0
    %1023 = vmatpush1.msra.mxu0 0.0
    %1024 = vmatprep.subr.mxu0 0.0
    %1025 = vmatpush1.msra.mxu0 0.0
    %1026 = vmatprep.mubr.f32.mxu0 0.0
    %1027 = vmatmul.mubr.f32.gmra.mrb[0].mxu0 %v939
    %v1028 = vpop.f32.mrb[0].mxu0
    %v1029 = vadd.f32 %v936, %v1028
    %v1030 = vpop.f32.mrb[0].mxu0
    %1031 = vmatprep.mubr.f32.mxu0 0.0
    %1032 = vmatmul.mubr.f32.gmra.mrb[0].mxu0 %v942
    %v1033 = vpop.f32.mrb[0].mxu0
    %v1034 = vadd.f32 %v936, %v1033
    %v1035 = vpop.f32.mrb[0].mxu0
    %1036 = vmatprep.mubr.f32.mxu0 0.0
    %1037 = vmatmul.mubr.f32.gmra.mrb[0].mxu0 %v945
    %v1038 = vpop.f32.mrb[0].mxu0
    %v1039 = vadd.f32 %v936, %v1038
    %v1040 = vpop.f32.mrb[0].mxu0
    %1041 = vmatprep.mubr.f32.mxu0 0.0
    %1042 = vmatmul.mubr.f32.gmra.mrb[0].mxu0 %v948
    %v1043 = vpop.f32.mrb[0].mxu0
    %v1044 = vadd.f32 %v936, %v1043
    %v1045 = vpop.f32.mrb[0].mxu0
    %1046 = vmatprep.mubr.f32.mxu0 0.0
    %1047 = vmatmul.mubr.f32.gmra.mrb[0].mxu0 %v951
    %v1048 = vpop.f32.mrb[0].mxu0
    %v1049 = vadd.f32 %v936, %v1048
    %v1050 = vpop.f32.mrb[0].mxu0
    %1051 = vmatprep.mubr.f32.mxu0 0.0
    %1052 = vmatmul.mubr.f32.gmra.mrb[0].mxu0 %v954
    %v1053 = vpop.f32.mrb[0].mxu0
    %v1054 = vadd.f32 %v936, %v1053
    %v1055 = vpop.f32.mrb[0].mxu0
    %1056 = vmatprep.mubr.f32.mxu0 0.0
    %1057 = vmatmul.mubr.f32.gmra.mrb[0].mxu0 %v957
    %v1058 = vpop.f32.mrb[0].mxu0
    %v1059 = vadd.f32 %v936, %v1058
    %v1060 = vpop.f32.mrb[0].mxu0
    %1061 = vmatprep.mubr.f32.mxu0 0.0
    %1062 = vmatmul.mubr.f32.gmra.mrb[0].mxu0 %v960
    %v1063 = vpop.f32.mrb[0].mxu0
    %v1064 = vadd.f32 %v936, %v1063
    %v1065 = vpop.f32.mrb[0].mxu0
    %1066 = vdwg.mxu0
    %v1067 = vrot.slane %v731, 7
    %v1068 = vrot.slane %v733, 7
    %v1069 = vrot.slane %v735, 7
    %v1070 = vrot.slane %v737, 7
    %v1071 = vrot.slane %v739, 7
    %v1072 = vrot.slane %v741, 7
    %v1073 = vrot.slane %v743, 7
    %v1074 = vrot.slane %v745, 7
    %vm1075 = vcmp.lt.s32.totalorder %v763, 1
    %v1076 = vsel %vm1075, %v1073, %v1074
    %v1077 = vsel %vm1075, %v1072, %v1073
    %v1078 = vsel %vm1075, %v1071, %v1072
    %v1079 = vsel %vm1075, %v1070, %v1071
    %v1080 = vsel %vm1075, %v1069, %v1070
    %v1081 = vsel %vm1075, %v1068, %v1069
    %v1082 = vsel %vm1075, %v1067, %v1068
    %v1083 = vsel %vm1075, %v1074, %v1067
    %v1084 = vadd.f32 %v714, %v1083
    %v1085 = vadd.f32 %v715, %v1082
    %v1086 = vadd.f32 %v716, %v1081
    %v1087 = vadd.f32 %v717, %v1080
    %v1088 = vadd.f32 %v718, %v1079
    %v1089 = vadd.f32 %v719, %v1078
    %v1090 = vadd.f32 %v720, %v1077
    %v1091 = vadd.f32 %v721, %v1076
    %v1092 = vmax.f32 %v1084, 0.0
    %v1093 = vmax.f32 %v1085, 0.0
    %v1094 = vmax.f32 %v1086, 0.0
    %v1095 = vmax.f32 %v1087, 0.0
    %v1096 = vmax.f32 %v1088, 0.0
    %v1097 = vmax.f32 %v1089, 0.0
    %v1098 = vmax.f32 %v1090, 0.0
    %v1099 = vmax.f32 %v1091, 0.0
    %v1101 = vsel %vm578, %v1092, 0
    %v1104 = vsel %vm578, %v1093, 0
    %v1107 = vsel %vm578, %v1094, 0
    %v1110 = vsel %vm578, %v1095, 0
    %v1113 = vsel %vm578, %v1096, 0
    %v1116 = vsel %vm578, %v1097, 0
    %v1119 = vsel %vm578, %v1098, 0
    %v1122 = vsel %vm578, %v1099, 0
    %1124 = vmatprep.subr.mxu0 0.0
    %1125 = vmatpush1.msra.mxu0 %v558
    %1126 = vmatprep.subr.mxu0 0.0
    %1127 = vmatpush1.msra.mxu0 %v559
    %1128 = vmatprep.subr.mxu0 0.0
    %1129 = vmatpush1.msra.mxu0 %v560
    %1130 = vmatprep.subr.mxu0 0.0
    %1131 = vmatpush1.msra.mxu0 %v561
    %1132 = vmatprep.subr.mxu0 0.0
    %1133 = vmatpush1.msra.mxu0 %v562
    %1134 = vmatprep.subr.mxu0 0.0
    %1135 = vmatpush1.msra.mxu0 %v563
    %1136 = vmatprep.subr.mxu0 0.0
    %1137 = vmatpush1.msra.mxu0 %v564
    %1138 = vmatprep.subr.mxu0 0.0
    %1139 = vmatpush1.msra.mxu0 %v565
    %1140 = vmatprep.subr.mxu0 0.0
    %1141 = vmatpush1.msra.mxu0 0.0
    %1142 = vmatprep.subr.mxu0 0.0
    %1143 = vmatpush1.msra.mxu0 0.0
    %1144 = vmatprep.subr.mxu0 0.0
    %1145 = vmatpush1.msra.mxu0 0.0
    %1146 = vmatprep.subr.mxu0 0.0
    %1147 = vmatpush1.msra.mxu0 0.0
    %1148 = vmatprep.subr.mxu0 0.0
    %1149 = vmatpush1.msra.mxu0 0.0
    %1150 = vmatprep.subr.mxu0 0.0
    %1151 = vmatpush1.msra.mxu0 0.0
    %1152 = vmatprep.subr.mxu0 0.0
    %1153 = vmatpush1.msra.mxu0 0.0
    %1154 = vmatprep.subr.mxu0 0.0
    %1155 = vmatpush1.msra.mxu0 0.0
    %1156 = vmatprep.subr.mxu0 0.0
    %1157 = vmatpush1.msra.mxu0 0.0
    %1158 = vmatprep.subr.mxu0 0.0
    %1159 = vmatpush1.msra.mxu0 0.0
    %1160 = vmatprep.subr.mxu0 0.0
    %1161 = vmatpush1.msra.mxu0 0.0
    %1162 = vmatprep.subr.mxu0 0.0
    %1163 = vmatpush1.msra.mxu0 0.0
    %1164 = vmatprep.subr.mxu0 0.0
    %1165 = vmatpush1.msra.mxu0 0.0
    %1166 = vmatprep.subr.mxu0 0.0
    %1167 = vmatpush1.msra.mxu0 0.0
    %1168 = vmatprep.subr.mxu0 0.0
    %1169 = vmatpush1.msra.mxu0 0.0
    %1170 = vmatprep.subr.mxu0 0.0
    %1171 = vmatpush1.msra.mxu0 0.0
    %1172 = vmatprep.subr.mxu0 0.0
    %1173 = vmatpush1.msra.mxu0 0.0
    %1174 = vmatprep.subr.mxu0 0.0
    %1175 = vmatpush1.msra.mxu0 0.0
    %1176 = vmatprep.subr.mxu0 0.0
    %1177 = vmatpush1.msra.mxu0 0.0
    %1178 = vmatprep.subr.mxu0 0.0
    %1179 = vmatpush1.msra.mxu0 0.0
    %1180 = vmatprep.subr.mxu0 0.0
    %1181 = vmatpush1.msra.mxu0 0.0
    %1182 = vmatprep.subr.mxu0 0.0
    %1183 = vmatpush1.msra.mxu0 0.0
    %1184 = vmatprep.subr.mxu0 0.0
    %1185 = vmatpush1.msra.mxu0 0.0
    %1186 = vmatprep.subr.mxu0 0.0
    %1187 = vmatpush1.msra.mxu0 0.0
    %1188 = vmatprep.mubr.f32.mxu0 0.0
    %1189 = vmatmul.mubr.f32.gmra.mrb[0].mxu0 %v1101
    %v1190 = vpop.f32.mrb[0].mxu0
    %v1191 = vadd.f32 %v793, %v1190
    %v1192 = vpop.f32.mrb[0].mxu0
    %1193 = vmatprep.mubr.f32.mxu0 0.0
    %1194 = vmatmul.mubr.f32.gmra.mrb[0].mxu0 %v1104
    %v1195 = vpop.f32.mrb[0].mxu0
    %v1196 = vadd.f32 %v793, %v1195
    %v1197 = vpop.f32.mrb[0].mxu0
    %1198 = vmatprep.mubr.f32.mxu0 0.0
    %1199 = vmatmul.mubr.f32.gmra.mrb[0].mxu0 %v1107
    %v1200 = vpop.f32.mrb[0].mxu0
    %v1201 = vadd.f32 %v793, %v1200
    %v1202 = vpop.f32.mrb[0].mxu0
    %1203 = vmatprep.mubr.f32.mxu0 0.0
    %1204 = vmatmul.mubr.f32.gmra.mrb[0].mxu0 %v1110
    %v1205 = vpop.f32.mrb[0].mxu0
    %v1206 = vadd.f32 %v793, %v1205
    %v1207 = vpop.f32.mrb[0].mxu0
    %1208 = vmatprep.mubr.f32.mxu0 0.0
    %1209 = vmatmul.mubr.f32.gmra.mrb[0].mxu0 %v1113
    %v1210 = vpop.f32.mrb[0].mxu0
    %v1211 = vadd.f32 %v793, %v1210
    %v1212 = vpop.f32.mrb[0].mxu0
    %1213 = vmatprep.mubr.f32.mxu0 0.0
    %1214 = vmatmul.mubr.f32.gmra.mrb[0].mxu0 %v1116
    %v1215 = vpop.f32.mrb[0].mxu0
    %v1216 = vadd.f32 %v793, %v1215
    %v1217 = vpop.f32.mrb[0].mxu0
    %1218 = vmatprep.mubr.f32.mxu0 0.0
    %1219 = vmatmul.mubr.f32.gmra.mrb[0].mxu0 %v1119
    %v1220 = vpop.f32.mrb[0].mxu0
    %v1221 = vadd.f32 %v793, %v1220
    %v1222 = vpop.f32.mrb[0].mxu0
    %1223 = vmatprep.mubr.f32.mxu0 0.0
    %1224 = vmatmul.mubr.f32.gmra.mrb[0].mxu0 %v1122
    %v1225 = vpop.f32.mrb[0].mxu0
    %v1226 = vadd.f32 %v793, %v1225
    %v1227 = vpop.f32.mrb[0].mxu0
    %1228 = vdwg.mxu0
    %v1229 = vmax.f32 %v1191, 0.0
    %v1230 = vmax.f32 %v1196, 0.0
    %v1231 = vmax.f32 %v1201, 0.0
    %v1232 = vmax.f32 %v1206, 0.0
    %v1233 = vmax.f32 %v1211, 0.0
    %v1234 = vmax.f32 %v1216, 0.0
    %v1235 = vmax.f32 %v1221, 0.0
    %v1236 = vmax.f32 %v1226, 0.0
    %v1238 = vsel %vm578, %v1229, 0
    %v1241 = vsel %vm578, %v1230, 0
    %v1244 = vsel %vm578, %v1231, 0
    %v1247 = vsel %vm578, %v1232, 0
    %v1250 = vsel %vm578, %v1233, 0
    %v1253 = vsel %vm578, %v1234, 0
    %v1256 = vsel %vm578, %v1235, 0
    %v1259 = vsel %vm578, %v1236, 0
    %1261 = vmatprep.subr.mxu0 0.0
    %1262 = vmatpush1.msra.mxu0 %v567
    %1263 = vmatprep.subr.mxu0 0.0
    %1264 = vmatpush1.msra.mxu0 %v568
    %1265 = vmatprep.subr.mxu0 0.0
    %1266 = vmatpush1.msra.mxu0 %v569
    %1267 = vmatprep.subr.mxu0 0.0
    %1268 = vmatpush1.msra.mxu0 %v570
    %1269 = vmatprep.subr.mxu0 0.0
    %1270 = vmatpush1.msra.mxu0 %v571
    %1271 = vmatprep.subr.mxu0 0.0
    %1272 = vmatpush1.msra.mxu0 %v572
    %1273 = vmatprep.subr.mxu0 0.0
    %1274 = vmatpush1.msra.mxu0 %v573
    %1275 = vmatprep.subr.mxu0 0.0
    %1276 = vmatpush1.msra.mxu0 %v574
    %1277 = vmatprep.subr.mxu0 0.0
    %1278 = vmatpush1.msra.mxu0 0.0
    %1279 = vmatprep.subr.mxu0 0.0
    %1280 = vmatpush1.msra.mxu0 0.0
    %1281 = vmatprep.subr.mxu0 0.0
    %1282 = vmatpush1.msra.mxu0 0.0
    %1283 = vmatprep.subr.mxu0 0.0
    %1284 = vmatpush1.msra.mxu0 0.0
    %1285 = vmatprep.subr.mxu0 0.0
    %1286 = vmatpush1.msra.mxu0 0.0
    %1287 = vmatprep.subr.mxu0 0.0
    %1288 = vmatpush1.msra.mxu0 0.0
    %1289 = vmatprep.subr.mxu0 0.0
    %1290 = vmatpush1.msra.mxu0 0.0
    %1291 = vmatprep.subr.mxu0 0.0
    %1292 = vmatpush1.msra.mxu0 0.0
    %1293 = vmatprep.subr.mxu0 0.0
    %1294 = vmatpush1.msra.mxu0 0.0
    %1295 = vmatprep.subr.mxu0 0.0
    %1296 = vmatpush1.msra.mxu0 0.0
    %1297 = vmatprep.subr.mxu0 0.0
    %1298 = vmatpush1.msra.mxu0 0.0
    %1299 = vmatprep.subr.mxu0 0.0
    %1300 = vmatpush1.msra.mxu0 0.0
    %1301 = vmatprep.subr.mxu0 0.0
    %1302 = vmatpush1.msra.mxu0 0.0
    %1303 = vmatprep.subr.mxu0 0.0
    %1304 = vmatpush1.msra.mxu0 0.0
    %1305 = vmatprep.subr.mxu0 0.0
    %1306 = vmatpush1.msra.mxu0 0.0
    %1307 = vmatprep.subr.mxu0 0.0
    %1308 = vmatpush1.msra.mxu0 0.0
    %1309 = vmatprep.subr.mxu0 0.0
    %1310 = vmatpush1.msra.mxu0 0.0
    %1311 = vmatprep.subr.mxu0 0.0
    %1312 = vmatpush1.msra.mxu0 0.0
    %1313 = vmatprep.subr.mxu0 0.0
    %1314 = vmatpush1.msra.mxu0 0.0
    %1315 = vmatprep.subr.mxu0 0.0
    %1316 = vmatpush1.msra.mxu0 0.0
    %1317 = vmatprep.subr.mxu0 0.0
    %1318 = vmatpush1.msra.mxu0 0.0
    %1319 = vmatprep.subr.mxu0 0.0
    %1320 = vmatpush1.msra.mxu0 0.0
    %1321 = vmatprep.subr.mxu0 0.0
    %1322 = vmatpush1.msra.mxu0 0.0
    %1323 = vmatprep.subr.mxu0 0.0
    %1324 = vmatpush1.msra.mxu0 0.0
    %1325 = vmatprep.mubr.f32.mxu0 0.0
    %1326 = vmatmul.mubr.f32.gmra.mrb[0].mxu0 %v1238
    %v1327 = vpop.f32.mrb[0].mxu0
    %v1328 = vadd.f32 %v936, %v1327
    %v1329 = vpop.f32.mrb[0].mxu0
    %1330 = vmatprep.mubr.f32.mxu0 0.0
    %1331 = vmatmul.mubr.f32.gmra.mrb[0].mxu0 %v1241
    %v1332 = vpop.f32.mrb[0].mxu0
    %v1333 = vadd.f32 %v936, %v1332
    %v1334 = vpop.f32.mrb[0].mxu0
    %1335 = vmatprep.mubr.f32.mxu0 0.0
    %1336 = vmatmul.mubr.f32.gmra.mrb[0].mxu0 %v1244
    %v1337 = vpop.f32.mrb[0].mxu0
    %v1338 = vadd.f32 %v936, %v1337
    %v1339 = vpop.f32.mrb[0].mxu0
    %1340 = vmatprep.mubr.f32.mxu0 0.0
    %1341 = vmatmul.mubr.f32.gmra.mrb[0].mxu0 %v1247
    %v1342 = vpop.f32.mrb[0].mxu0
    %v1343 = vadd.f32 %v936, %v1342
    %v1344 = vpop.f32.mrb[0].mxu0
    %1345 = vmatprep.mubr.f32.mxu0 0.0
    %1346 = vmatmul.mubr.f32.gmra.mrb[0].mxu0 %v1250
    %v1347 = vpop.f32.mrb[0].mxu0
    %v1348 = vadd.f32 %v936, %v1347
    %v1349 = vpop.f32.mrb[0].mxu0
    %1350 = vmatprep.mubr.f32.mxu0 0.0
    %1351 = vmatmul.mubr.f32.gmra.mrb[0].mxu0 %v1253
    %v1352 = vpop.f32.mrb[0].mxu0
    %v1353 = vadd.f32 %v936, %v1352
    %v1354 = vpop.f32.mrb[0].mxu0
    %1355 = vmatprep.mubr.f32.mxu0 0.0
    %1356 = vmatmul.mubr.f32.gmra.mrb[0].mxu0 %v1256
    %v1357 = vpop.f32.mrb[0].mxu0
    %v1358 = vadd.f32 %v936, %v1357
    %v1359 = vpop.f32.mrb[0].mxu0
    %1360 = vmatprep.mubr.f32.mxu0 0.0
    %1361 = vmatmul.mubr.f32.gmra.mrb[0].mxu0 %v1259
    %v1362 = vpop.f32.mrb[0].mxu0
    %v1363 = vadd.f32 %v936, %v1362
    %v1364 = vpop.f32.mrb[0].mxu0
    %1365 = vdwg.mxu0
    %v1366 = vmax.f32 %v1029, %v1328
    %v1367 = vmax.f32 %v1034, %v1333
    %v1368 = vmax.f32 %v1039, %v1338
    %v1369 = vmax.f32 %v1044, %v1343
    %v1370 = vmax.f32 %v1049, %v1348
    %v1371 = vmax.f32 %v1054, %v1353
    %v1372 = vmax.f32 %v1059, %v1358
    %v1373 = vmax.f32 %v1064, %v1363
    %v1374 = vrot.slane %v731, 1
    %v1375 = vrot.slane %v733, 1
    %v1376 = vrot.slane %v735, 1
    %v1377 = vrot.slane %v737, 1
    %v1378 = vrot.slane %v739, 1
    %v1379 = vrot.slane %v741, 1
    %v1380 = vrot.slane %v743, 1
    %v1381 = vrot.slane %v745, 1
    %vm1382 = vcmp.lt.s32.totalorder %v763, 7
    %v1383 = vsel %vm1382, %v1380, %v1381
    %v1384 = vsel %vm1382, %v1379, %v1380
    %v1385 = vsel %vm1382, %v1378, %v1379
    %v1386 = vsel %vm1382, %v1377, %v1378
    %v1387 = vsel %vm1382, %v1376, %v1377
    %v1388 = vsel %vm1382, %v1375, %v1376
    %v1389 = vsel %vm1382, %v1374, %v1375
    %v1390 = vsel %vm1382, %v1381, %v1374
    %v1391 = vadd.f32 %v714, %v1389
    %v1392 = vadd.f32 %v715, %v1388
    %v1393 = vadd.f32 %v716, %v1387
    %v1394 = vadd.f32 %v717, %v1386
    %v1395 = vadd.f32 %v718, %v1385
    %v1396 = vadd.f32 %v719, %v1384
    %v1397 = vadd.f32 %v720, %v1383
    %v1398 = vadd.f32 %v721, %v1390
    %v1399 = vmax.f32 %v1391, 0.0
    %v1400 = vmax.f32 %v1392, 0.0
    %v1401 = vmax.f32 %v1393, 0.0
    %v1402 = vmax.f32 %v1394, 0.0
    %v1403 = vmax.f32 %v1395, 0.0
    %v1404 = vmax.f32 %v1396, 0.0
    %v1405 = vmax.f32 %v1397, 0.0
    %v1406 = vmax.f32 %v1398, 0.0
    %v1408 = vsel %vm578, %v1399, 0
    %v1411 = vsel %vm578, %v1400, 0
    %v1414 = vsel %vm578, %v1401, 0
    %v1417 = vsel %vm578, %v1402, 0
    %v1420 = vsel %vm578, %v1403, 0
    %v1423 = vsel %vm578, %v1404, 0
    %v1426 = vsel %vm578, %v1405, 0
    %v1429 = vsel %vm578, %v1406, 0
    %1431 = vmatprep.subr.mxu0 0.0
    %1432 = vmatpush1.msra.mxu0 %v558
    %1433 = vmatprep.subr.mxu0 0.0
    %1434 = vmatpush1.msra.mxu0 %v559
    %1435 = vmatprep.subr.mxu0 0.0
    %1436 = vmatpush1.msra.mxu0 %v560
    %1437 = vmatprep.subr.mxu0 0.0
    %1438 = vmatpush1.msra.mxu0 %v561
    %1439 = vmatprep.subr.mxu0 0.0
    %1440 = vmatpush1.msra.mxu0 %v562
    %1441 = vmatprep.subr.mxu0 0.0
    %1442 = vmatpush1.msra.mxu0 %v563
    %1443 = vmatprep.subr.mxu0 0.0
    %1444 = vmatpush1.msra.mxu0 %v564
    %1445 = vmatprep.subr.mxu0 0.0
    %1446 = vmatpush1.msra.mxu0 %v565
    %1447 = vmatprep.subr.mxu0 0.0
    %1448 = vmatpush1.msra.mxu0 0.0
    %1449 = vmatprep.subr.mxu0 0.0
    %1450 = vmatpush1.msra.mxu0 0.0
    %1451 = vmatprep.subr.mxu0 0.0
    %1452 = vmatpush1.msra.mxu0 0.0
    %1453 = vmatprep.subr.mxu0 0.0
    %1454 = vmatpush1.msra.mxu0 0.0
    %1455 = vmatprep.subr.mxu0 0.0
    %1456 = vmatpush1.msra.mxu0 0.0
    %1457 = vmatprep.subr.mxu0 0.0
    %1458 = vmatpush1.msra.mxu0 0.0
    %1459 = vmatprep.subr.mxu0 0.0
    %1460 = vmatpush1.msra.mxu0 0.0
    %1461 = vmatprep.subr.mxu0 0.0
    %1462 = vmatpush1.msra.mxu0 0.0
    %1463 = vmatprep.subr.mxu0 0.0
    %1464 = vmatpush1.msra.mxu0 0.0
    %1465 = vmatprep.subr.mxu0 0.0
    %1466 = vmatpush1.msra.mxu0 0.0
    %1467 = vmatprep.subr.mxu0 0.0
    %1468 = vmatpush1.msra.mxu0 0.0
    %1469 = vmatprep.subr.mxu0 0.0
    %1470 = vmatpush1.msra.mxu0 0.0
    %1471 = vmatprep.subr.mxu0 0.0
    %1472 = vmatpush1.msra.mxu0 0.0
    %1473 = vmatprep.subr.mxu0 0.0
    %1474 = vmatpush1.msra.mxu0 0.0
    %1475 = vmatprep.subr.mxu0 0.0
    %1476 = vmatpush1.msra.mxu0 0.0
    %1477 = vmatprep.subr.mxu0 0.0
    %1478 = vmatpush1.msra.mxu0 0.0
    %1479 = vmatprep.subr.mxu0 0.0
    %1480 = vmatpush1.msra.mxu0 0.0
    %1481 = vmatprep.subr.mxu0 0.0
    %1482 = vmatpush1.msra.mxu0 0.0
    %1483 = vmatprep.subr.mxu0 0.0
    %1484 = vmatpush1.msra.mxu0 0.0
    %1485 = vmatprep.subr.mxu0 0.0
    %1486 = vmatpush1.msra.mxu0 0.0
    %1487 = vmatprep.subr.mxu0 0.0
    %1488 = vmatpush1.msra.mxu0 0.0
    %1489 = vmatprep.subr.mxu0 0.0
    %1490 = vmatpush1.msra.mxu0 0.0
    %1491 = vmatprep.subr.mxu0 0.0
    %1492 = vmatpush1.msra.mxu0 0.0
    %1493 = vmatprep.subr.mxu0 0.0
    %1494 = vmatpush1.msra.mxu0 0.0
    %1495 = vmatprep.mubr.f32.mxu0 0.0
    %1496 = vmatmul.mubr.f32.gmra.mrb[0].mxu0 %v1408
    %v1497 = vpop.f32.mrb[0].mxu0
    %v1498 = vadd.f32 %v793, %v1497
    %v1499 = vpop.f32.mrb[0].mxu0
    %1500 = vmatprep.mubr.f32.mxu0 0.0
    %1501 = vmatmul.mubr.f32.gmra.mrb[0].mxu0 %v1411
    %v1502 = vpop.f32.mrb[0].mxu0
    %v1503 = vadd.f32 %v793, %v1502
    %v1504 = vpop.f32.mrb[0].mxu0
    %1505 = vmatprep.mubr.f32.mxu0 0.0
    %1506 = vmatmul.mubr.f32.gmra.mrb[0].mxu0 %v1414
    %v1507 = vpop.f32.mrb[0].mxu0
    %v1508 = vadd.f32 %v793, %v1507
    %v1509 = vpop.f32.mrb[0].mxu0
    %1510 = vmatprep.mubr.f32.mxu0 0.0
    %1511 = vmatmul.mubr.f32.gmra.mrb[0].mxu0 %v1417
    %v1512 = vpop.f32.mrb[0].mxu0
    %v1513 = vadd.f32 %v793, %v1512
    %v1514 = vpop.f32.mrb[0].mxu0
    %1515 = vmatprep.mubr.f32.mxu0 0.0
    %1516 = vmatmul.mubr.f32.gmra.mrb[0].mxu0 %v1420
    %v1517 = vpop.f32.mrb[0].mxu0
    %v1518 = vadd.f32 %v793, %v1517
    %v1519 = vpop.f32.mrb[0].mxu0
    %1520 = vmatprep.mubr.f32.mxu0 0.0
    %1521 = vmatmul.mubr.f32.gmra.mrb[0].mxu0 %v1423
    %v1522 = vpop.f32.mrb[0].mxu0
    %v1523 = vadd.f32 %v793, %v1522
    %v1524 = vpop.f32.mrb[0].mxu0
    %1525 = vmatprep.mubr.f32.mxu0 0.0
    %1526 = vmatmul.mubr.f32.gmra.mrb[0].mxu0 %v1426
    %v1527 = vpop.f32.mrb[0].mxu0
    %v1528 = vadd.f32 %v793, %v1527
    %v1529 = vpop.f32.mrb[0].mxu0
    %1530 = vmatprep.mubr.f32.mxu0 0.0
    %1531 = vmatmul.mubr.f32.gmra.mrb[0].mxu0 %v1429
    %v1532 = vpop.f32.mrb[0].mxu0
    %v1533 = vadd.f32 %v793, %v1532
    %v1534 = vpop.f32.mrb[0].mxu0
    %1535 = vdwg.mxu0
    %v1536 = vmax.f32 %v1498, 0.0
    %v1537 = vmax.f32 %v1503, 0.0
    %v1538 = vmax.f32 %v1508, 0.0
    %v1539 = vmax.f32 %v1513, 0.0
    %v1540 = vmax.f32 %v1518, 0.0
    %v1541 = vmax.f32 %v1523, 0.0
    %v1542 = vmax.f32 %v1528, 0.0
    %v1543 = vmax.f32 %v1533, 0.0
    %v1545 = vsel %vm578, %v1536, 0
    %v1548 = vsel %vm578, %v1537, 0
    %v1551 = vsel %vm578, %v1538, 0
    %v1554 = vsel %vm578, %v1539, 0
    %v1557 = vsel %vm578, %v1540, 0
    %v1560 = vsel %vm578, %v1541, 0
    %v1563 = vsel %vm578, %v1542, 0
    %v1566 = vsel %vm578, %v1543, 0
    %1568 = vmatprep.subr.mxu0 0.0
    %1569 = vmatpush1.msra.mxu0 %v567
    %1570 = vmatprep.subr.mxu0 0.0
    %1571 = vmatpush1.msra.mxu0 %v568
    %1572 = vmatprep.subr.mxu0 0.0
    %1573 = vmatpush1.msra.mxu0 %v569
    %1574 = vmatprep.subr.mxu0 0.0
    %1575 = vmatpush1.msra.mxu0 %v570
    %1576 = vmatprep.subr.mxu0 0.0
    %1577 = vmatpush1.msra.mxu0 %v571
    %1578 = vmatprep.subr.mxu0 0.0
    %1579 = vmatpush1.msra.mxu0 %v572
    %1580 = vmatprep.subr.mxu0 0.0
    %1581 = vmatpush1.msra.mxu0 %v573
    %1582 = vmatprep.subr.mxu0 0.0
    %1583 = vmatpush1.msra.mxu0 %v574
    %1584 = vmatprep.subr.mxu0 0.0
    %1585 = vmatpush1.msra.mxu0 0.0
    %1586 = vmatprep.subr.mxu0 0.0
    %1587 = vmatpush1.msra.mxu0 0.0
    %1588 = vmatprep.subr.mxu0 0.0
    %1589 = vmatpush1.msra.mxu0 0.0
    %1590 = vmatprep.subr.mxu0 0.0
    %1591 = vmatpush1.msra.mxu0 0.0
    %1592 = vmatprep.subr.mxu0 0.0
    %1593 = vmatpush1.msra.mxu0 0.0
    %1594 = vmatprep.subr.mxu0 0.0
    %1595 = vmatpush1.msra.mxu0 0.0
    %1596 = vmatprep.subr.mxu0 0.0
    %1597 = vmatpush1.msra.mxu0 0.0
    %1598 = vmatprep.subr.mxu0 0.0
    %1599 = vmatpush1.msra.mxu0 0.0
    %1600 = vmatprep.subr.mxu0 0.0
    %1601 = vmatpush1.msra.mxu0 0.0
    %1602 = vmatprep.subr.mxu0 0.0
    %1603 = vmatpush1.msra.mxu0 0.0
    %1604 = vmatprep.subr.mxu0 0.0
    %1605 = vmatpush1.msra.mxu0 0.0
    %1606 = vmatprep.subr.mxu0 0.0
    %1607 = vmatpush1.msra.mxu0 0.0
    %1608 = vmatprep.subr.mxu0 0.0
    %1609 = vmatpush1.msra.mxu0 0.0
    %1610 = vmatprep.subr.mxu0 0.0
    %1611 = vmatpush1.msra.mxu0 0.0
    %1612 = vmatprep.subr.mxu0 0.0
    %1613 = vmatpush1.msra.mxu0 0.0
    %1614 = vmatprep.subr.mxu0 0.0
    %1615 = vmatpush1.msra.mxu0 0.0
    %1616 = vmatprep.subr.mxu0 0.0
    %1617 = vmatpush1.msra.mxu0 0.0
    %1618 = vmatprep.subr.mxu0 0.0
    %1619 = vmatpush1.msra.mxu0 0.0
    %1620 = vmatprep.subr.mxu0 0.0
    %1621 = vmatpush1.msra.mxu0 0.0
    %1622 = vmatprep.subr.mxu0 0.0
    %1623 = vmatpush1.msra.mxu0 0.0
    %1624 = vmatprep.subr.mxu0 0.0
    %1625 = vmatpush1.msra.mxu0 0.0
    %1626 = vmatprep.subr.mxu0 0.0
    %1627 = vmatpush1.msra.mxu0 0.0
    %1628 = vmatprep.subr.mxu0 0.0
    %1629 = vmatpush1.msra.mxu0 0.0
    %1630 = vmatprep.subr.mxu0 0.0
    %1631 = vmatpush1.msra.mxu0 0.0
    %1632 = vmatprep.mubr.f32.mxu0 0.0
    %1633 = vmatmul.mubr.f32.gmra.mrb[0].mxu0 %v1545
    %v1634 = vpop.f32.mrb[0].mxu0
    %v1635 = vadd.f32 %v936, %v1634
    %v1636 = vpop.f32.mrb[0].mxu0
    %1637 = vmatprep.mubr.f32.mxu0 0.0
    %1638 = vmatmul.mubr.f32.gmra.mrb[0].mxu0 %v1548
    %v1639 = vpop.f32.mrb[0].mxu0
    %v1640 = vadd.f32 %v936, %v1639
    %v1641 = vpop.f32.mrb[0].mxu0
    %1642 = vmatprep.mubr.f32.mxu0 0.0
    %1643 = vmatmul.mubr.f32.gmra.mrb[0].mxu0 %v1551
    %v1644 = vpop.f32.mrb[0].mxu0
    %v1645 = vadd.f32 %v936, %v1644
    %v1646 = vpop.f32.mrb[0].mxu0
    %1647 = vmatprep.mubr.f32.mxu0 0.0
    %1648 = vmatmul.mubr.f32.gmra.mrb[0].mxu0 %v1554
    %v1649 = vpop.f32.mrb[0].mxu0
    %v1650 = vadd.f32 %v936, %v1649
    %v1651 = vpop.f32.mrb[0].mxu0
    %1652 = vmatprep.mubr.f32.mxu0 0.0
    %1653 = vmatmul.mubr.f32.gmra.mrb[0].mxu0 %v1557
    %v1654 = vpop.f32.mrb[0].mxu0
    %v1655 = vadd.f32 %v936, %v1654
    %v1656 = vpop.f32.mrb[0].mxu0
    %1657 = vmatprep.mubr.f32.mxu0 0.0
    %1658 = vmatmul.mubr.f32.gmra.mrb[0].mxu0 %v1560
    %v1659 = vpop.f32.mrb[0].mxu0
    %v1660 = vadd.f32 %v936, %v1659
    %v1661 = vpop.f32.mrb[0].mxu0
    %1662 = vmatprep.mubr.f32.mxu0 0.0
    %1663 = vmatmul.mubr.f32.gmra.mrb[0].mxu0 %v1563
    %v1664 = vpop.f32.mrb[0].mxu0
    %v1665 = vadd.f32 %v936, %v1664
    %v1666 = vpop.f32.mrb[0].mxu0
    %1667 = vmatprep.mubr.f32.mxu0 0.0
    %1668 = vmatmul.mubr.f32.gmra.mrb[0].mxu0 %v1566
    %v1669 = vpop.f32.mrb[0].mxu0
    %v1670 = vadd.f32 %v936, %v1669
    %v1671 = vpop.f32.mrb[0].mxu0
    %1672 = vdwg.mxu0
    %v1673 = vmax.f32 %v1366, %v1635
    %v1674 = vmax.f32 %v1367, %v1640
    %v1675 = vmax.f32 %v1368, %v1645
    %v1676 = vmax.f32 %v1369, %v1650
    %v1677 = vmax.f32 %v1370, %v1655
    %v1678 = vmax.f32 %v1371, %v1660
    %v1679 = vmax.f32 %v1372, %v1665
    %v1680 = vmax.f32 %v1373, %v1670
    %v1681 = vrot.slane %v731, 2
    %v1682 = vrot.slane %v733, 2
    %v1683 = vrot.slane %v735, 2
    %v1684 = vrot.slane %v737, 2
    %v1685 = vrot.slane %v739, 2
    %v1686 = vrot.slane %v741, 2
    %v1687 = vrot.slane %v743, 2
    %v1688 = vrot.slane %v745, 2
    %vm1689 = vcmp.lt.s32.totalorder %v763, 6
    %v1690 = vsel %vm1689, %v1687, %v1688
    %v1691 = vsel %vm1689, %v1686, %v1687
    %v1692 = vsel %vm1689, %v1685, %v1686
    %v1693 = vsel %vm1689, %v1684, %v1685
    %v1694 = vsel %vm1689, %v1683, %v1684
    %v1695 = vsel %vm1689, %v1682, %v1683
    %v1696 = vsel %vm1689, %v1681, %v1682
    %v1697 = vsel %vm1689, %v1688, %v1681
    %v1698 = vadd.f32 %v714, %v1696
    %v1699 = vadd.f32 %v715, %v1695
    %v1700 = vadd.f32 %v716, %v1694
    %v1701 = vadd.f32 %v717, %v1693
    %v1702 = vadd.f32 %v718, %v1692
    %v1703 = vadd.f32 %v719, %v1691
    %v1704 = vadd.f32 %v720, %v1690
    %v1705 = vadd.f32 %v721, %v1697
    %v1706 = vmax.f32 %v1698, 0.0
    %v1707 = vmax.f32 %v1699, 0.0
    %v1708 = vmax.f32 %v1700, 0.0
    %v1709 = vmax.f32 %v1701, 0.0
    %v1710 = vmax.f32 %v1702, 0.0
    %v1711 = vmax.f32 %v1703, 0.0
    %v1712 = vmax.f32 %v1704, 0.0
    %v1713 = vmax.f32 %v1705, 0.0
    %v1715 = vsel %vm578, %v1706, 0
    %v1718 = vsel %vm578, %v1707, 0
    %v1721 = vsel %vm578, %v1708, 0
    %v1724 = vsel %vm578, %v1709, 0
    %v1727 = vsel %vm578, %v1710, 0
    %v1730 = vsel %vm578, %v1711, 0
    %v1733 = vsel %vm578, %v1712, 0
    %v1736 = vsel %vm578, %v1713, 0
    %1738 = vmatprep.subr.mxu0 0.0
    %1739 = vmatpush1.msra.mxu0 %v558
    %1740 = vmatprep.subr.mxu0 0.0
    %1741 = vmatpush1.msra.mxu0 %v559
    %1742 = vmatprep.subr.mxu0 0.0
    %1743 = vmatpush1.msra.mxu0 %v560
    %1744 = vmatprep.subr.mxu0 0.0
    %1745 = vmatpush1.msra.mxu0 %v561
    %1746 = vmatprep.subr.mxu0 0.0
    %1747 = vmatpush1.msra.mxu0 %v562
    %1748 = vmatprep.subr.mxu0 0.0
    %1749 = vmatpush1.msra.mxu0 %v563
    %1750 = vmatprep.subr.mxu0 0.0
    %1751 = vmatpush1.msra.mxu0 %v564
    %1752 = vmatprep.subr.mxu0 0.0
    %1753 = vmatpush1.msra.mxu0 %v565
    %1754 = vmatprep.subr.mxu0 0.0
    %1755 = vmatpush1.msra.mxu0 0.0
    %1756 = vmatprep.subr.mxu0 0.0
    %1757 = vmatpush1.msra.mxu0 0.0
    %1758 = vmatprep.subr.mxu0 0.0
    %1759 = vmatpush1.msra.mxu0 0.0
    %1760 = vmatprep.subr.mxu0 0.0
    %1761 = vmatpush1.msra.mxu0 0.0
    %1762 = vmatprep.subr.mxu0 0.0
    %1763 = vmatpush1.msra.mxu0 0.0
    %1764 = vmatprep.subr.mxu0 0.0
    %1765 = vmatpush1.msra.mxu0 0.0
    %1766 = vmatprep.subr.mxu0 0.0
    %1767 = vmatpush1.msra.mxu0 0.0
    %1768 = vmatprep.subr.mxu0 0.0
    %1769 = vmatpush1.msra.mxu0 0.0
    %1770 = vmatprep.subr.mxu0 0.0
    %1771 = vmatpush1.msra.mxu0 0.0
    %1772 = vmatprep.subr.mxu0 0.0
    %1773 = vmatpush1.msra.mxu0 0.0
    %1774 = vmatprep.subr.mxu0 0.0
    %1775 = vmatpush1.msra.mxu0 0.0
    %1776 = vmatprep.subr.mxu0 0.0
    %1777 = vmatpush1.msra.mxu0 0.0
    %1778 = vmatprep.subr.mxu0 0.0
    %1779 = vmatpush1.msra.mxu0 0.0
    %1780 = vmatprep.subr.mxu0 0.0
    %1781 = vmatpush1.msra.mxu0 0.0
    %1782 = vmatprep.subr.mxu0 0.0
    %1783 = vmatpush1.msra.mxu0 0.0
    %1784 = vmatprep.subr.mxu0 0.0
    %1785 = vmatpush1.msra.mxu0 0.0
    %1786 = vmatprep.subr.mxu0 0.0
    %1787 = vmatpush1.msra.mxu0 0.0
    %1788 = vmatprep.subr.mxu0 0.0
    %1789 = vmatpush1.msra.mxu0 0.0
    %1790 = vmatprep.subr.mxu0 0.0
    %1791 = vmatpush1.msra.mxu0 0.0
    %1792 = vmatprep.subr.mxu0 0.0
    %1793 = vmatpush1.msra.mxu0 0.0
    %1794 = vmatprep.subr.mxu0 0.0
    %1795 = vmatpush1.msra.mxu0 0.0
    %1796 = vmatprep.subr.mxu0 0.0
    %1797 = vmatpush1.msra.mxu0 0.0
    %1798 = vmatprep.subr.mxu0 0.0
    %1799 = vmatpush1.msra.mxu0 0.0
    %1800 = vmatprep.subr.mxu0 0.0
    %1801 = vmatpush1.msra.mxu0 0.0
    %1802 = vmatprep.mubr.f32.mxu0 0.0
    %1803 = vmatmul.mubr.f32.gmra.mrb[0].mxu0 %v1715
    %v1804 = vpop.f32.mrb[0].mxu0
    %v1805 = vadd.f32 %v793, %v1804
    %v1806 = vpop.f32.mrb[0].mxu0
    %1807 = vmatprep.mubr.f32.mxu0 0.0
    %1808 = vmatmul.mubr.f32.gmra.mrb[0].mxu0 %v1718
    %v1809 = vpop.f32.mrb[0].mxu0
    %v1810 = vadd.f32 %v793, %v1809
    %v1811 = vpop.f32.mrb[0].mxu0
    %1812 = vmatprep.mubr.f32.mxu0 0.0
    %1813 = vmatmul.mubr.f32.gmra.mrb[0].mxu0 %v1721
    %v1814 = vpop.f32.mrb[0].mxu0
    %v1815 = vadd.f32 %v793, %v1814
    %v1816 = vpop.f32.mrb[0].mxu0
    %1817 = vmatprep.mubr.f32.mxu0 0.0
    %1818 = vmatmul.mubr.f32.gmra.mrb[0].mxu0 %v1724
    %v1819 = vpop.f32.mrb[0].mxu0
    %v1820 = vadd.f32 %v793, %v1819
    %v1821 = vpop.f32.mrb[0].mxu0
    %1822 = vmatprep.mubr.f32.mxu0 0.0
    %1823 = vmatmul.mubr.f32.gmra.mrb[0].mxu0 %v1727
    %v1824 = vpop.f32.mrb[0].mxu0
    %v1825 = vadd.f32 %v793, %v1824
    %v1826 = vpop.f32.mrb[0].mxu0
    %1827 = vmatprep.mubr.f32.mxu0 0.0
    %1828 = vmatmul.mubr.f32.gmra.mrb[0].mxu0 %v1730
    %v1829 = vpop.f32.mrb[0].mxu0
    %v1830 = vadd.f32 %v793, %v1829
    %v1831 = vpop.f32.mrb[0].mxu0
    %1832 = vmatprep.mubr.f32.mxu0 0.0
    %1833 = vmatmul.mubr.f32.gmra.mrb[0].mxu0 %v1733
    %v1834 = vpop.f32.mrb[0].mxu0
    %v1835 = vadd.f32 %v793, %v1834
    %v1836 = vpop.f32.mrb[0].mxu0
    %1837 = vmatprep.mubr.f32.mxu0 0.0
    %1838 = vmatmul.mubr.f32.gmra.mrb[0].mxu0 %v1736
    %v1839 = vpop.f32.mrb[0].mxu0
    %v1840 = vadd.f32 %v793, %v1839
    %v1841 = vpop.f32.mrb[0].mxu0
    %1842 = vdwg.mxu0
    %v1843 = vmax.f32 %v1805, 0.0
    %v1844 = vmax.f32 %v1810, 0.0
    %v1845 = vmax.f32 %v1815, 0.0
    %v1846 = vmax.f32 %v1820, 0.0
    %v1847 = vmax.f32 %v1825, 0.0
    %v1848 = vmax.f32 %v1830, 0.0
    %v1849 = vmax.f32 %v1835, 0.0
    %v1850 = vmax.f32 %v1840, 0.0
    %v1852 = vsel %vm578, %v1843, 0
    %v1855 = vsel %vm578, %v1844, 0
    %v1858 = vsel %vm578, %v1845, 0
    %v1861 = vsel %vm578, %v1846, 0
    %v1864 = vsel %vm578, %v1847, 0
    %v1867 = vsel %vm578, %v1848, 0
    %v1870 = vsel %vm578, %v1849, 0
    %v1873 = vsel %vm578, %v1850, 0
    %1875 = vmatprep.subr.mxu0 0.0
    %1876 = vmatpush1.msra.mxu0 %v567
    %1877 = vmatprep.subr.mxu0 0.0
    %1878 = vmatpush1.msra.mxu0 %v568
    %1879 = vmatprep.subr.mxu0 0.0
    %1880 = vmatpush1.msra.mxu0 %v569
    %1881 = vmatprep.subr.mxu0 0.0
    %1882 = vmatpush1.msra.mxu0 %v570
    %1883 = vmatprep.subr.mxu0 0.0
    %1884 = vmatpush1.msra.mxu0 %v571
    %1885 = vmatprep.subr.mxu0 0.0
    %1886 = vmatpush1.msra.mxu0 %v572
    %1887 = vmatprep.subr.mxu0 0.0
    %1888 = vmatpush1.msra.mxu0 %v573
    %1889 = vmatprep.subr.mxu0 0.0
    %1890 = vmatpush1.msra.mxu0 %v574
    %1891 = vmatprep.subr.mxu0 0.0
    %1892 = vmatpush1.msra.mxu0 0.0
    %1893 = vmatprep.subr.mxu0 0.0
    %1894 = vmatpush1.msra.mxu0 0.0
    %1895 = vmatprep.subr.mxu0 0.0
    %1896 = vmatpush1.msra.mxu0 0.0
    %1897 = vmatprep.subr.mxu0 0.0
    %1898 = vmatpush1.msra.mxu0 0.0
    %1899 = vmatprep.subr.mxu0 0.0
    %1900 = vmatpush1.msra.mxu0 0.0
    %1901 = vmatprep.subr.mxu0 0.0
    %1902 = vmatpush1.msra.mxu0 0.0
    %1903 = vmatprep.subr.mxu0 0.0
    %1904 = vmatpush1.msra.mxu0 0.0
    %1905 = vmatprep.subr.mxu0 0.0
    %1906 = vmatpush1.msra.mxu0 0.0
    %1907 = vmatprep.subr.mxu0 0.0
    %1908 = vmatpush1.msra.mxu0 0.0
    %1909 = vmatprep.subr.mxu0 0.0
    %1910 = vmatpush1.msra.mxu0 0.0
    %1911 = vmatprep.subr.mxu0 0.0
    %1912 = vmatpush1.msra.mxu0 0.0
    %1913 = vmatprep.subr.mxu0 0.0
    %1914 = vmatpush1.msra.mxu0 0.0
    %1915 = vmatprep.subr.mxu0 0.0
    %1916 = vmatpush1.msra.mxu0 0.0
    %1917 = vmatprep.subr.mxu0 0.0
    %1918 = vmatpush1.msra.mxu0 0.0
    %1919 = vmatprep.subr.mxu0 0.0
    %1920 = vmatpush1.msra.mxu0 0.0
    %1921 = vmatprep.subr.mxu0 0.0
    %1922 = vmatpush1.msra.mxu0 0.0
    %1923 = vmatprep.subr.mxu0 0.0
    %1924 = vmatpush1.msra.mxu0 0.0
    %1925 = vmatprep.subr.mxu0 0.0
    %1926 = vmatpush1.msra.mxu0 0.0
    %1927 = vmatprep.subr.mxu0 0.0
    %1928 = vmatpush1.msra.mxu0 0.0
    %1929 = vmatprep.subr.mxu0 0.0
    %1930 = vmatpush1.msra.mxu0 0.0
    %1931 = vmatprep.subr.mxu0 0.0
    %1932 = vmatpush1.msra.mxu0 0.0
    %1933 = vmatprep.subr.mxu0 0.0
    %1934 = vmatpush1.msra.mxu0 0.0
    %1935 = vmatprep.subr.mxu0 0.0
    %1936 = vmatpush1.msra.mxu0 0.0
    %1937 = vmatprep.subr.mxu0 0.0
    %1938 = vmatpush1.msra.mxu0 0.0
    %1939 = vmatprep.mubr.f32.mxu0 0.0
    %1940 = vmatmul.mubr.f32.gmra.mrb[0].mxu0 %v1852
    %v1941 = vpop.f32.mrb[0].mxu0
    %v1942 = vadd.f32 %v936, %v1941
    %v1943 = vpop.f32.mrb[0].mxu0
    %1944 = vmatprep.mubr.f32.mxu0 0.0
    %1945 = vmatmul.mubr.f32.gmra.mrb[0].mxu0 %v1855
    %v1946 = vpop.f32.mrb[0].mxu0
    %v1947 = vadd.f32 %v936, %v1946
    %v1948 = vpop.f32.mrb[0].mxu0
    %1949 = vmatprep.mubr.f32.mxu0 0.0
    %1950 = vmatmul.mubr.f32.gmra.mrb[0].mxu0 %v1858
    %v1951 = vpop.f32.mrb[0].mxu0
    %v1952 = vadd.f32 %v936, %v1951
    %v1953 = vpop.f32.mrb[0].mxu0
    %1954 = vmatprep.mubr.f32.mxu0 0.0
    %1955 = vmatmul.mubr.f32.gmra.mrb[0].mxu0 %v1861
    %v1956 = vpop.f32.mrb[0].mxu0
    %v1957 = vadd.f32 %v936, %v1956
    %v1958 = vpop.f32.mrb[0].mxu0
    %1959 = vmatprep.mubr.f32.mxu0 0.0
    %1960 = vmatmul.mubr.f32.gmra.mrb[0].mxu0 %v1864
    %v1961 = vpop.f32.mrb[0].mxu0
    %v1962 = vadd.f32 %v936, %v1961
    %v1963 = vpop.f32.mrb[0].mxu0
    %1964 = vmatprep.mubr.f32.mxu0 0.0
    %1965 = vmatmul.mubr.f32.gmra.mrb[0].mxu0 %v1867
    %v1966 = vpop.f32.mrb[0].mxu0
    %v1967 = vadd.f32 %v936, %v1966
    %v1968 = vpop.f32.mrb[0].mxu0
    %1969 = vmatprep.mubr.f32.mxu0 0.0
    %1970 = vmatmul.mubr.f32.gmra.mrb[0].mxu0 %v1870
    %v1971 = vpop.f32.mrb[0].mxu0
    %v1972 = vadd.f32 %v936, %v1971
    %v1973 = vpop.f32.mrb[0].mxu0
    %1974 = vmatprep.mubr.f32.mxu0 0.0
    %1975 = vmatmul.mubr.f32.gmra.mrb[0].mxu0 %v1873
    %v1976 = vpop.f32.mrb[0].mxu0
    %v1977 = vadd.f32 %v936, %v1976
    %v1978 = vpop.f32.mrb[0].mxu0
    %1979 = vdwg.mxu0
    %v1980 = vmax.f32 %v1673, %v1942
    %v1981 = vmax.f32 %v1674, %v1947
    %v1982 = vmax.f32 %v1675, %v1952
    %v1983 = vmax.f32 %v1676, %v1957
    %v1984 = vmax.f32 %v1677, %v1962
    %v1985 = vmax.f32 %v1678, %v1967
    %v1986 = vmax.f32 %v1679, %v1972
    %v1987 = vmax.f32 %v1680, %v1977
    %v1988 = vmax.f32 %v1980, 0.0
    %v1989 = vmax.f32 %v1981, 0.0
    %v1990 = vmax.f32 %v1982, 0.0
    %v1991 = vmax.f32 %v1983, 0.0
    %v1992 = vmax.f32 %v1984, 0.0
    %v1993 = vmax.f32 %v1985, 0.0
    %v1994 = vmax.f32 %v1986, 0.0
    %v1995 = vmax.f32 %v1987, 0.0
    %v1996 = vsel %vm578, %v1988, 0.0
    %v1997 = vsel %vm578, %v1989, 0.0
    %v1998 = vadd.f32 %v1996, %v1997
    %v1999 = vsel %vm578, %v1990, 0.0
    %v2000 = vadd.f32 %v1998, %v1999
    %v2001 = vsel %vm578, %v1991, 0.0
    %v2002 = vadd.f32 %v2000, %v2001
    %v2003 = vsel %vm578, %v1992, 0.0
    %v2004 = vadd.f32 %v2002, %v2003
    %v2005 = vsel %vm578, %v1993, 0.0
    %v2006 = vadd.f32 %v2004, %v2005
    %v2007 = vsel %vm578, %v1994, 0.0
    %v2008 = vadd.f32 %v2006, %v2007
    %v2009 = vsel %vm578, %v1995, 0.0
    %v2010 = vadd.f32 %v2008, %v2009
    %v2011 = vrot.slane %v2010, 4
    %v2012 = vadd.f32 %v2010, %v2011
    %v2013 = vrot.slane %v2012, 2
    %v2014 = vadd.f32 %v2012, %v2013
    %v2015 = vrot.slane %v2014, 1
    %v2016 = vadd.f32 %v2014, %v2015
    %v2017 = vmul.f32 %v1988, %v1988
    %v2018 = vmul.f32 %v1989, %v1989
    %v2019 = vmul.f32 %v1990, %v1990
    %v2020 = vmul.f32 %v1991, %v1991
    %v2021 = vmul.f32 %v1992, %v1992
    %v2022 = vmul.f32 %v1993, %v1993
    %v2023 = vmul.f32 %v1994, %v1994
    %v2024 = vmul.f32 %v1995, %v1995
    %v2025 = vsel %vm578, %v2017, 0.0
    %v2026 = vsel %vm578, %v2018, 0.0
    %v2027 = vadd.f32 %v2025, %v2026
    %v2028 = vsel %vm578, %v2019, 0.0
    %v2029 = vadd.f32 %v2027, %v2028
    %v2030 = vsel %vm578, %v2020, 0.0
    %v2031 = vadd.f32 %v2029, %v2030
    %v2032 = vsel %vm578, %v2021, 0.0
    %v2033 = vadd.f32 %v2031, %v2032
    %v2034 = vsel %vm578, %v2022, 0.0
    %v2035 = vadd.f32 %v2033, %v2034
    %v2036 = vsel %vm578, %v2023, 0.0
    %v2037 = vadd.f32 %v2035, %v2036
    %v2038 = vsel %vm578, %v2024, 0.0
    %v2039 = vadd.f32 %v2037, %v2038
    %v2040 = vrot.slane %v2039, 4
    %v2041 = vadd.f32 %v2039, %v2040
    %v2042 = vrot.slane %v2041, 2
    %v2043 = vadd.f32 %v2041, %v2042
    %v2044 = vrot.slane %v2043, 1
    %v2045 = vadd.f32 %v2043, %v2044
    %v2046 = vmul.f32 %v2016, 0.015625
    %v2047 = vmul.f32 %v2045, 0.015625
    %v2048 = vmul.f32 %v2046, %v2046
    %v2049 = vsub.f32 %v2047, %v2048
    %v2050 = vmax.f32 %v2049, 0.0
    %v2051 = vsub.f32 %v1988, %v2046
    %v2052 = vsub.f32 %v1989, %v2046
    %v2053 = vsub.f32 %v1990, %v2046
    %v2054 = vsub.f32 %v1991, %v2046
    %v2055 = vsub.f32 %v1992, %v2046
    %v2056 = vsub.f32 %v1993, %v2046
    %v2057 = vsub.f32 %v1994, %v2046
    %v2058 = vsub.f32 %v1995, %v2046
    %v2059 = vadd.f32 %v2050, 1e-05
    %v2060 = vrsqrt.pop %v2059
    %v2061 = vmul.f32 %v2051, %v2060
    %v2062 = vmul.f32 %v2052, %v2060
    %v2063 = vmul.f32 %v2053, %v2060
    %v2064 = vmul.f32 %v2054, %v2060
    %v2065 = vmul.f32 %v2055, %v2060
    %v2066 = vmul.f32 %v2056, %v2060
    %v2067 = vmul.f32 %v2057, %v2060
    %v2068 = vmul.f32 %v2058, %v2060
    %v2070 = vlaneseq
    %v2071 = vshrl.u32 %v2070, 7
    %v2072 = vsub.s32 0, %v2071
    %v2073 = vrot.slane %v576, %v2072
    %v2075 = vmul.f32 %v2061, %v2073
    %v2076 = vmul.f32 %v2062, %v2073
    %v2077 = vmul.f32 %v2063, %v2073
    %v2078 = vmul.f32 %v2064, %v2073
    %v2079 = vmul.f32 %v2065, %v2073
    %v2080 = vmul.f32 %v2066, %v2073
    %v2081 = vmul.f32 %v2067, %v2073
    %v2082 = vmul.f32 %v2068, %v2073
    %v2084 = vlaneseq
    %v2085 = vshrl.u32 %v2084, 7
    %v2086 = vsub.s32 0, %v2085
    %v2087 = vrot.slane %v577, %v2086
    %v2089 = vadd.f32 %v2075, %v2087
    %v2090 = vadd.f32 %v2076, %v2087
    %v2091 = vadd.f32 %v2077, %v2087
    %v2092 = vadd.f32 %v2078, %v2087
    %v2093 = vadd.f32 %v2079, %v2087
    %v2094 = vadd.f32 %v2080, %v2087
    %v2095 = vadd.f32 %v2081, %v2087
    %v2096 = vadd.f32 %v2082, %v2087
    %v2097 = vld [vmem:[#allocation13] sm:$0xff]
    %v2098 = vld [vmem:[#allocation13 + $0x8] sm:$0xff]
    %v2100 = vsel %vm578, %v2097, 0
    %v2103 = vsel %vm578, %v2098, 0
    %2105 = vmatprep.subr.mxu0 0.0
    %2106 = vmatpush1.msra.mxu0 %v2089
    %2107 = vmatprep.subr.mxu0 0.0
    %2108 = vmatpush1.msra.mxu0 %v2090
    %2109 = vmatprep.subr.mxu0 0.0
    %2110 = vmatpush1.msra.mxu0 %v2091
    %2111 = vmatprep.subr.mxu0 0.0
    %2112 = vmatpush1.msra.mxu0 %v2092
    %2113 = vmatprep.subr.mxu0 0.0
    %2114 = vmatpush1.msra.mxu0 %v2093
    %2115 = vmatprep.subr.mxu0 0.0
    %2116 = vmatpush1.msra.mxu0 %v2094
    %2117 = vmatprep.subr.mxu0 0.0
    %2118 = vmatpush1.msra.mxu0 %v2095
    %2119 = vmatprep.subr.mxu0 0.0
    %2120 = vmatpush1.msra.mxu0 %v2096
    %2121 = vmatprep.subr.mxu0 0.0
    %2122 = vmatpush1.msra.mxu0 0.0
    %2123 = vmatprep.subr.mxu0 0.0
    %2124 = vmatpush1.msra.mxu0 0.0
    %2125 = vmatprep.subr.mxu0 0.0
    %2126 = vmatpush1.msra.mxu0 0.0
    %2127 = vmatprep.subr.mxu0 0.0
    %2128 = vmatpush1.msra.mxu0 0.0
    %2129 = vmatprep.subr.mxu0 0.0
    %2130 = vmatpush1.msra.mxu0 0.0
    %2131 = vmatprep.subr.mxu0 0.0
    %2132 = vmatpush1.msra.mxu0 0.0
    %2133 = vmatprep.subr.mxu0 0.0
    %2134 = vmatpush1.msra.mxu0 0.0
    %2135 = vmatprep.subr.mxu0 0.0
    %2136 = vmatpush1.msra.mxu0 0.0
    %2137 = vmatprep.subr.mxu0 0.0
    %2138 = vmatpush1.msra.mxu0 0.0
    %2139 = vmatprep.subr.mxu0 0.0
    %2140 = vmatpush1.msra.mxu0 0.0
    %2141 = vmatprep.subr.mxu0 0.0
    %2142 = vmatpush1.msra.mxu0 0.0
    %2143 = vmatprep.subr.mxu0 0.0
    %2144 = vmatpush1.msra.mxu0 0.0
    %2145 = vmatprep.subr.mxu0 0.0
    %2146 = vmatpush1.msra.mxu0 0.0
    %2147 = vmatprep.subr.mxu0 0.0
    %2148 = vmatpush1.msra.mxu0 0.0
    %2149 = vmatprep.subr.mxu0 0.0
    %2150 = vmatpush1.msra.mxu0 0.0
    %2151 = vmatprep.subr.mxu0 0.0
    %2152 = vmatpush1.msra.mxu0 0.0
    %2153 = vmatprep.subr.mxu0 0.0
    %2154 = vmatpush1.msra.mxu0 0.0
    %2155 = vmatprep.subr.mxu0 0.0
    %2156 = vmatpush1.msra.mxu0 0.0
    %2157 = vmatprep.subr.mxu0 0.0
    %2158 = vmatpush1.msra.mxu0 0.0
    %2159 = vmatprep.subr.mxu0 0.0
    %2160 = vmatpush1.msra.mxu0 0.0
    %2161 = vmatprep.subr.mxu0 0.0
    %2162 = vmatpush1.msra.mxu0 0.0
    %2163 = vmatprep.subr.mxu0 0.0
    %2164 = vmatpush1.msra.mxu0 0.0
    %2165 = vmatprep.subr.mxu0 0.0
    %2166 = vmatpush1.msra.mxu0 0.0
    %2167 = vmatprep.subr.mxu0 0.0
    %2168 = vmatpush1.msra.mxu0 0.0
    %2169 = vmatprep.mubr.f32.mxu0 0.0
    %2170 = vmatmul.mubr.f32.gmra.mrb[0].mxu0 %v2100
    %v2171 = vpop.f32.mrb[0].mxu0
    %v2172 = vadd.f32 0.0, %v2171
    %v2173 = vpop.f32.mrb[0].mxu0
    %2174 = vmatprep.mubr.f32.mxu0 0.0
    %2175 = vmatmul.mubr.f32.gmra.mrb[0].mxu0 %v2103
    %v2176 = vpop.f32.mrb[0].mxu0
    %v2177 = vadd.f32 0.0, %v2176
    %v2178 = vpop.f32.mrb[0].mxu0
    %2179 = vdwg.mxu0
    %v2180 = vld [vmem:[#allocation14] sm:$0xff]
    %v2181 = vld [vmem:[#allocation14 + $0x8] sm:$0xff]
    %v2182 = vld [vmem:[#allocation14 + $0x10] sm:$0xff]
    %v2183 = vld [vmem:[#allocation14 + $0x18] sm:$0xff]
    %v2184 = vld [vmem:[#allocation14 + $0x20] sm:$0xff]
    %v2185 = vld [vmem:[#allocation14 + $0x28] sm:$0xff]
    %v2186 = vld [vmem:[#allocation14 + $0x30] sm:$0xff]
    %v2187 = vld [vmem:[#allocation14 + $0x38] sm:$0xff]
    %v2188 = vld [vmem:[#allocation16] sm:$0x1]
    %v2189 = vld [vmem:[#allocation17] sm:$0xff]
    %v2190 = vld [vmem:[#allocation17 + $0x8] sm:$0xff]
    %v2191 = vld [vmem:[#allocation17 + $0x10] sm:$0xff]
    %v2192 = vld [vmem:[#allocation17 + $0x18] sm:$0xff]
    %v2193 = vld [vmem:[#allocation17 + $0x20] sm:$0xff]
    %v2194 = vld [vmem:[#allocation17 + $0x28] sm:$0xff]
    %v2195 = vld [vmem:[#allocation17 + $0x30] sm:$0xff]
    %v2196 = vld [vmem:[#allocation17 + $0x38] sm:$0xff]
    %v2197 = vld [vmem:[#allocation19] sm:$0x1]
    %v2198 = vld [vmem:[#allocation20] sm:$0xff]
    %v2199 = vld [vmem:[#allocation20 + $0x8] sm:$0xff]
    %v2200 = vld [vmem:[#allocation20 + $0x10] sm:$0xff]
    %v2201 = vld [vmem:[#allocation20 + $0x18] sm:$0xff]
    %v2202 = vld [vmem:[#allocation20 + $0x20] sm:$0xff]
    %v2203 = vld [vmem:[#allocation20 + $0x28] sm:$0xff]
    %v2204 = vld [vmem:[#allocation20 + $0x30] sm:$0xff]
    %v2205 = vld [vmem:[#allocation20 + $0x38] sm:$0xff]
    %v2206 = vld [vmem:[#allocation22] sm:$0x1]
    %v2207 = vld [vmem:[#allocation23] sm:$0x1]
    %v2208 = vld [vmem:[#allocation25] sm:$0x1]
    %v2210 = vsel %vm578, %v2172, 0
    %v2213 = vsel %vm578, %v2177, 0
    %2215 = vmatprep.subr.mxu0 0.0
    %2216 = vmatpush1.msra.mxu0 %v2180
    %2217 = vmatprep.subr.mxu0 0.0
    %2218 = vmatpush1.msra.mxu0 %v2181
    %2219 = vmatprep.subr.mxu0 0.0
    %2220 = vmatpush1.msra.mxu0 %v2182
    %2221 = vmatprep.subr.mxu0 0.0
    %2222 = vmatpush1.msra.mxu0 %v2183
    %2223 = vmatprep.subr.mxu0 0.0
    %2224 = vmatpush1.msra.mxu0 %v2184
    %2225 = vmatprep.subr.mxu0 0.0
    %2226 = vmatpush1.msra.mxu0 %v2185
    %2227 = vmatprep.subr.mxu0 0.0
    %2228 = vmatpush1.msra.mxu0 %v2186
    %2229 = vmatprep.subr.mxu0 0.0
    %2230 = vmatpush1.msra.mxu0 %v2187
    %2231 = vmatprep.subr.mxu0 0.0
    %2232 = vmatpush1.msra.mxu0 0.0
    %2233 = vmatprep.subr.mxu0 0.0
    %2234 = vmatpush1.msra.mxu0 0.0
    %2235 = vmatprep.subr.mxu0 0.0
    %2236 = vmatpush1.msra.mxu0 0.0
    %2237 = vmatprep.subr.mxu0 0.0
    %2238 = vmatpush1.msra.mxu0 0.0
    %2239 = vmatprep.subr.mxu0 0.0
    %2240 = vmatpush1.msra.mxu0 0.0
    %2241 = vmatprep.subr.mxu0 0.0
    %2242 = vmatpush1.msra.mxu0 0.0
    %2243 = vmatprep.subr.mxu0 0.0
    %2244 = vmatpush1.msra.mxu0 0.0
    %2245 = vmatprep.subr.mxu0 0.0
    %2246 = vmatpush1.msra.mxu0 0.0
    %2247 = vmatprep.subr.mxu0 0.0
    %2248 = vmatpush1.msra.mxu0 0.0
    %2249 = vmatprep.subr.mxu0 0.0
    %2250 = vmatpush1.msra.mxu0 0.0
    %2251 = vmatprep.subr.mxu0 0.0
    %2252 = vmatpush1.msra.mxu0 0.0
    %2253 = vmatprep.subr.mxu0 0.0
    %2254 = vmatpush1.msra.mxu0 0.0
    %2255 = vmatprep.subr.mxu0 0.0
    %2256 = vmatpush1.msra.mxu0 0.0
    %2257 = vmatprep.subr.mxu0 0.0
    %2258 = vmatpush1.msra.mxu0 0.0
    %2259 = vmatprep.subr.mxu0 0.0
    %2260 = vmatpush1.msra.mxu0 0.0
    %2261 = vmatprep.subr.mxu0 0.0
    %2262 = vmatpush1.msra.mxu0 0.0
    %2263 = vmatprep.subr.mxu0 0.0
    %2264 = vmatpush1.msra.mxu0 0.0
    %2265 = vmatprep.subr.mxu0 0.0
    %2266 = vmatpush1.msra.mxu0 0.0
    %2267 = vmatprep.subr.mxu0 0.0
    %2268 = vmatpush1.msra.mxu0 0.0
    %2269 = vmatprep.subr.mxu0 0.0
    %2270 = vmatpush1.msra.mxu0 0.0
    %2271 = vmatprep.subr.mxu0 0.0
    %2272 = vmatpush1.msra.mxu0 0.0
    %2273 = vmatprep.subr.mxu0 0.0
    %2274 = vmatpush1.msra.mxu0 0.0
    %2275 = vmatprep.subr.mxu0 0.0
    %2276 = vmatpush1.msra.mxu0 0.0
    %2277 = vmatprep.subr.mxu0 0.0
    %2278 = vmatpush1.msra.mxu0 0.0
    %2279 = vmatprep.mubr.f32.mxu0 0.0
    %2280 = vmatmul.mubr.f32.gmra.mrb[0].mxu0 %v2210
    %v2281 = vpop.f32.mrb[0].mxu0
    %v2282 = vadd.f32 0.0, %v2281
    %v2283 = vpop.f32.mrb[0].mxu0
    %2284 = vmatprep.mubr.f32.mxu0 0.0
    %2285 = vmatmul.mubr.f32.gmra.mrb[0].mxu0 %v2213
    %v2286 = vpop.f32.mrb[0].mxu0
    %v2287 = vadd.f32 0.0, %v2286
    %v2288 = vpop.f32.mrb[0].mxu0
    %2289 = vdwg.mxu0
    %v2291 = vlaneseq
    %v2292 = vshrl.u32 %v2291, 7
    %v2293 = vsub.s32 0, %v2292
    %v2294 = vrot.slane %v2188, %v2293
    %v2296 = vadd.f32 %v2282, %v2294
    %v2297 = vadd.f32 %v2287, %v2294
    %2300 = vrot.lane.b32.xlu0 %v2282, 64
    %v2301 = vpop.permute.xlu0 %2300
    %2302 = vrot.lane.b32.xlu0 %v2287, 64
    %v2303 = vpop.permute.xlu0 %2302
    %v2306 = vrot.slane %v2301, 7
    %v2307 = vrot.slane %v2303, 7
    %v2308 = vsel %vm1075, %v2306, %v2307
    %v2309 = vsel %vm1075, %v2307, %v2306
    %v2310 = vadd.f32 %v2296, %v2309
    %v2311 = vadd.f32 %v2297, %v2308
    %v2312 = vmax.f32 %v2310, 0.0
    %v2313 = vmax.f32 %v2311, 0.0
    %v2315 = vlaneseq
    %v2316 = vshrl.u32 %v2315, 7
    %v2317 = vsub.s32 0, %v2316
    %v2318 = vrot.slane %v2197, %v2317
    %v2321 = vsel %vm578, %v2312, 0
    %v2324 = vsel %vm578, %v2313, 0
    %2326 = vmatprep.subr.mxu0 0.0
    %2327 = vmatpush1.msra.mxu0 %v2189
    %2328 = vmatprep.subr.mxu0 0.0
    %2329 = vmatpush1.msra.mxu0 %v2190
    %2330 = vmatprep.subr.mxu0 0.0
    %2331 = vmatpush1.msra.mxu0 %v2191
    %2332 = vmatprep.subr.mxu0 0.0
    %2333 = vmatpush1.msra.mxu0 %v2192
    %2334 = vmatprep.subr.mxu0 0.0
    %2335 = vmatpush1.msra.mxu0 %v2193
    %2336 = vmatprep.subr.mxu0 0.0
    %2337 = vmatpush1.msra.mxu0 %v2194
    %2338 = vmatprep.subr.mxu0 0.0
    %2339 = vmatpush1.msra.mxu0 %v2195
    %2340 = vmatprep.subr.mxu0 0.0
    %2341 = vmatpush1.msra.mxu0 %v2196
    %2342 = vmatprep.subr.mxu0 0.0
    %2343 = vmatpush1.msra.mxu0 0.0
    %2344 = vmatprep.subr.mxu0 0.0
    %2345 = vmatpush1.msra.mxu0 0.0
    %2346 = vmatprep.subr.mxu0 0.0
    %2347 = vmatpush1.msra.mxu0 0.0
    %2348 = vmatprep.subr.mxu0 0.0
    %2349 = vmatpush1.msra.mxu0 0.0
    %2350 = vmatprep.subr.mxu0 0.0
    %2351 = vmatpush1.msra.mxu0 0.0
    %2352 = vmatprep.subr.mxu0 0.0
    %2353 = vmatpush1.msra.mxu0 0.0
    %2354 = vmatprep.subr.mxu0 0.0
    %2355 = vmatpush1.msra.mxu0 0.0
    %2356 = vmatprep.subr.mxu0 0.0
    %2357 = vmatpush1.msra.mxu0 0.0
    %2358 = vmatprep.subr.mxu0 0.0
    %2359 = vmatpush1.msra.mxu0 0.0
    %2360 = vmatprep.subr.mxu0 0.0
    %2361 = vmatpush1.msra.mxu0 0.0
    %2362 = vmatprep.subr.mxu0 0.0
    %2363 = vmatpush1.msra.mxu0 0.0
    %2364 = vmatprep.subr.mxu0 0.0
    %2365 = vmatpush1.msra.mxu0 0.0
    %2366 = vmatprep.subr.mxu0 0.0
    %2367 = vmatpush1.msra.mxu0 0.0
    %2368 = vmatprep.subr.mxu0 0.0
    %2369 = vmatpush1.msra.mxu0 0.0
    %2370 = vmatprep.subr.mxu0 0.0
    %2371 = vmatpush1.msra.mxu0 0.0
    %2372 = vmatprep.subr.mxu0 0.0
    %2373 = vmatpush1.msra.mxu0 0.0
    %2374 = vmatprep.subr.mxu0 0.0
    %2375 = vmatpush1.msra.mxu0 0.0
    %2376 = vmatprep.subr.mxu0 0.0
    %2377 = vmatpush1.msra.mxu0 0.0
    %2378 = vmatprep.subr.mxu0 0.0
    %2379 = vmatpush1.msra.mxu0 0.0
    %2380 = vmatprep.subr.mxu0 0.0
    %2381 = vmatpush1.msra.mxu0 0.0
    %2382 = vmatprep.subr.mxu0 0.0
    %2383 = vmatpush1.msra.mxu0 0.0
    %2384 = vmatprep.subr.mxu0 0.0
    %2385 = vmatpush1.msra.mxu0 0.0
    %2386 = vmatprep.subr.mxu0 0.0
    %2387 = vmatpush1.msra.mxu0 0.0
    %2388 = vmatprep.subr.mxu0 0.0
    %2389 = vmatpush1.msra.mxu0 0.0
    %2390 = vmatprep.mubr.f32.mxu0 0.0
    %2391 = vmatmul.mubr.f32.gmra.mrb[0].mxu0 %v2321
    %v2392 = vpop.f32.mrb[0].mxu0
    %v2393 = vadd.f32 %v2318, %v2392
    %v2394 = vpop.f32.mrb[0].mxu0
    %2395 = vmatprep.mubr.f32.mxu0 0.0
    %2396 = vmatmul.mubr.f32.gmra.mrb[0].mxu0 %v2324
    %v2397 = vpop.f32.mrb[0].mxu0
    %v2398 = vadd.f32 %v2318, %v2397
    %v2399 = vpop.f32.mrb[0].mxu0
    %2400 = vdwg.mxu0
    %v2401 = vmax.f32 %v2393, 0.0
    %v2402 = vmax.f32 %v2398, 0.0
    %v2404 = vlaneseq
    %v2405 = vshrl.u32 %v2404, 7
    %v2406 = vsub.s32 0, %v2405
    %v2407 = vrot.slane %v2206, %v2406
    %v2410 = vsel %vm578, %v2401, 0
    %v2413 = vsel %vm578, %v2402, 0
    %2415 = vmatprep.subr.mxu0 0.0
    %2416 = vmatpush1.msra.mxu0 %v2198
    %2417 = vmatprep.subr.mxu0 0.0
    %2418 = vmatpush1.msra.mxu0 %v2199
    %2419 = vmatprep.subr.mxu0 0.0
    %2420 = vmatpush1.msra.mxu0 %v2200
    %2421 = vmatprep.subr.mxu0 0.0
    %2422 = vmatpush1.msra.mxu0 %v2201
    %2423 = vmatprep.subr.mxu0 0.0
    %2424 = vmatpush1.msra.mxu0 %v2202
    %2425 = vmatprep.subr.mxu0 0.0
    %2426 = vmatpush1.msra.mxu0 %v2203
    %2427 = vmatprep.subr.mxu0 0.0
    %2428 = vmatpush1.msra.mxu0 %v2204
    %2429 = vmatprep.subr.mxu0 0.0
    %2430 = vmatpush1.msra.mxu0 %v2205
    %2431 = vmatprep.subr.mxu0 0.0
    %2432 = vmatpush1.msra.mxu0 0.0
    %2433 = vmatprep.subr.mxu0 0.0
    %2434 = vmatpush1.msra.mxu0 0.0
    %2435 = vmatprep.subr.mxu0 0.0
    %2436 = vmatpush1.msra.mxu0 0.0
    %2437 = vmatprep.subr.mxu0 0.0
    %2438 = vmatpush1.msra.mxu0 0.0
    %2439 = vmatprep.subr.mxu0 0.0
    %2440 = vmatpush1.msra.mxu0 0.0
    %2441 = vmatprep.subr.mxu0 0.0
    %2442 = vmatpush1.msra.mxu0 0.0
    %2443 = vmatprep.subr.mxu0 0.0
    %2444 = vmatpush1.msra.mxu0 0.0
    %2445 = vmatprep.subr.mxu0 0.0
    %2446 = vmatpush1.msra.mxu0 0.0
    %2447 = vmatprep.subr.mxu0 0.0
    %2448 = vmatpush1.msra.mxu0 0.0
    %2449 = vmatprep.subr.mxu0 0.0
    %2450 = vmatpush1.msra.mxu0 0.0
    %2451 = vmatprep.subr.mxu0 0.0
    %2452 = vmatpush1.msra.mxu0 0.0
    %2453 = vmatprep.subr.mxu0 0.0
    %2454 = vmatpush1.msra.mxu0 0.0
    %2455 = vmatprep.subr.mxu0 0.0
    %2456 = vmatpush1.msra.mxu0 0.0
    %2457 = vmatprep.subr.mxu0 0.0
    %2458 = vmatpush1.msra.mxu0 0.0
    %2459 = vmatprep.subr.mxu0 0.0
    %2460 = vmatpush1.msra.mxu0 0.0
    %2461 = vmatprep.subr.mxu0 0.0
    %2462 = vmatpush1.msra.mxu0 0.0
    %2463 = vmatprep.subr.mxu0 0.0
    %2464 = vmatpush1.msra.mxu0 0.0
    %2465 = vmatprep.subr.mxu0 0.0
    %2466 = vmatpush1.msra.mxu0 0.0
    %2467 = vmatprep.subr.mxu0 0.0
    %2468 = vmatpush1.msra.mxu0 0.0
    %2469 = vmatprep.subr.mxu0 0.0
    %2470 = vmatpush1.msra.mxu0 0.0
    %2471 = vmatprep.subr.mxu0 0.0
    %2472 = vmatpush1.msra.mxu0 0.0
    %2473 = vmatprep.subr.mxu0 0.0
    %2474 = vmatpush1.msra.mxu0 0.0
    %2475 = vmatprep.subr.mxu0 0.0
    %2476 = vmatpush1.msra.mxu0 0.0
    %2477 = vmatprep.subr.mxu0 0.0
    %2478 = vmatpush1.msra.mxu0 0.0
    %2479 = vmatprep.mubr.f32.mxu0 0.0
    %2480 = vmatmul.mubr.f32.gmra.mrb[0].mxu0 %v2410
    %v2481 = vpop.f32.mrb[0].mxu0
    %v2482 = vadd.f32 %v2407, %v2481
    %v2483 = vpop.f32.mrb[0].mxu0
    %2484 = vmatprep.mubr.f32.mxu0 0.0
    %2485 = vmatmul.mubr.f32.gmra.mrb[0].mxu0 %v2413
    %v2486 = vpop.f32.mrb[0].mxu0
    %v2487 = vadd.f32 %v2407, %v2486
    %v2488 = vpop.f32.mrb[0].mxu0
    %2489 = vdwg.mxu0
    %v2490 = vrot.slane %v2301, 1
    %v2491 = vrot.slane %v2303, 1
    %v2492 = vsel %vm1382, %v2490, %v2491
    %v2493 = vsel %vm1382, %v2491, %v2490
    %v2494 = vadd.f32 %v2296, %v2492
    %v2495 = vadd.f32 %v2297, %v2493
    %v2496 = vmax.f32 %v2494, 0.0
    %v2497 = vmax.f32 %v2495, 0.0
    %v2499 = vsel %vm578, %v2496, 0
    %v2502 = vsel %vm578, %v2497, 0
    %2504 = vmatprep.subr.mxu0 0.0
    %2505 = vmatpush1.msra.mxu0 %v2189
    %2506 = vmatprep.subr.mxu0 0.0
    %2507 = vmatpush1.msra.mxu0 %v2190
    %2508 = vmatprep.subr.mxu0 0.0
    %2509 = vmatpush1.msra.mxu0 %v2191
    %2510 = vmatprep.subr.mxu0 0.0
    %2511 = vmatpush1.msra.mxu0 %v2192
    %2512 = vmatprep.subr.mxu0 0.0
    %2513 = vmatpush1.msra.mxu0 %v2193
    %2514 = vmatprep.subr.mxu0 0.0
    %2515 = vmatpush1.msra.mxu0 %v2194
    %2516 = vmatprep.subr.mxu0 0.0
    %2517 = vmatpush1.msra.mxu0 %v2195
    %2518 = vmatprep.subr.mxu0 0.0
    %2519 = vmatpush1.msra.mxu0 %v2196
    %2520 = vmatprep.subr.mxu0 0.0
    %2521 = vmatpush1.msra.mxu0 0.0
    %2522 = vmatprep.subr.mxu0 0.0
    %2523 = vmatpush1.msra.mxu0 0.0
    %2524 = vmatprep.subr.mxu0 0.0
    %2525 = vmatpush1.msra.mxu0 0.0
    %2526 = vmatprep.subr.mxu0 0.0
    %2527 = vmatpush1.msra.mxu0 0.0
    %2528 = vmatprep.subr.mxu0 0.0
    %2529 = vmatpush1.msra.mxu0 0.0
    %2530 = vmatprep.subr.mxu0 0.0
    %2531 = vmatpush1.msra.mxu0 0.0
    %2532 = vmatprep.subr.mxu0 0.0
    %2533 = vmatpush1.msra.mxu0 0.0
    %2534 = vmatprep.subr.mxu0 0.0
    %2535 = vmatpush1.msra.mxu0 0.0
    %2536 = vmatprep.subr.mxu0 0.0
    %2537 = vmatpush1.msra.mxu0 0.0
    %2538 = vmatprep.subr.mxu0 0.0
    %2539 = vmatpush1.msra.mxu0 0.0
    %2540 = vmatprep.subr.mxu0 0.0
    %2541 = vmatpush1.msra.mxu0 0.0
    %2542 = vmatprep.subr.mxu0 0.0
    %2543 = vmatpush1.msra.mxu0 0.0
    %2544 = vmatprep.subr.mxu0 0.0
    %2545 = vmatpush1.msra.mxu0 0.0
    %2546 = vmatprep.subr.mxu0 0.0
    %2547 = vmatpush1.msra.mxu0 0.0
    %2548 = vmatprep.subr.mxu0 0.0
    %2549 = vmatpush1.msra.mxu0 0.0
    %2550 = vmatprep.subr.mxu0 0.0
    %2551 = vmatpush1.msra.mxu0 0.0
    %2552 = vmatprep.subr.mxu0 0.0
    %2553 = vmatpush1.msra.mxu0 0.0
    %2554 = vmatprep.subr.mxu0 0.0
    %2555 = vmatpush1.msra.mxu0 0.0
    %2556 = vmatprep.subr.mxu0 0.0
    %2557 = vmatpush1.msra.mxu0 0.0
    %2558 = vmatprep.subr.mxu0 0.0
    %2559 = vmatpush1.msra.mxu0 0.0
    %2560 = vmatprep.subr.mxu0 0.0
    %2561 = vmatpush1.msra.mxu0 0.0
    %2562 = vmatprep.subr.mxu0 0.0
    %2563 = vmatpush1.msra.mxu0 0.0
    %2564 = vmatprep.subr.mxu0 0.0
    %2565 = vmatpush1.msra.mxu0 0.0
    %2566 = vmatprep.subr.mxu0 0.0
    %2567 = vmatpush1.msra.mxu0 0.0
    %2568 = vmatprep.mubr.f32.mxu0 0.0
    %2569 = vmatmul.mubr.f32.gmra.mrb[0].mxu0 %v2499
    %v2570 = vpop.f32.mrb[0].mxu0
    %v2571 = vadd.f32 %v2318, %v2570
    %v2572 = vpop.f32.mrb[0].mxu0
    %2573 = vmatprep.mubr.f32.mxu0 0.0
    %2574 = vmatmul.mubr.f32.gmra.mrb[0].mxu0 %v2502
    %v2575 = vpop.f32.mrb[0].mxu0
    %v2576 = vadd.f32 %v2318, %v2575
    %v2577 = vpop.f32.mrb[0].mxu0
    %2578 = vdwg.mxu0
    %v2579 = vmax.f32 %v2571, 0.0
    %v2580 = vmax.f32 %v2576, 0.0
    %v2582 = vsel %vm578, %v2579, 0
    %v2585 = vsel %vm578, %v2580, 0
    %2587 = vmatprep.subr.mxu0 0.0
    %2588 = vmatpush1.msra.mxu0 %v2198
    %2589 = vmatprep.subr.mxu0 0.0
    %2590 = vmatpush1.msra.mxu0 %v2199
    %2591 = vmatprep.subr.mxu0 0.0
    %2592 = vmatpush1.msra.mxu0 %v2200
    %2593 = vmatprep.subr.mxu0 0.0
    %2594 = vmatpush1.msra.mxu0 %v2201
    %2595 = vmatprep.subr.mxu0 0.0
    %2596 = vmatpush1.msra.mxu0 %v2202
    %2597 = vmatprep.subr.mxu0 0.0
    %2598 = vmatpush1.msra.mxu0 %v2203
    %2599 = vmatprep.subr.mxu0 0.0
    %2600 = vmatpush1.msra.mxu0 %v2204
    %2601 = vmatprep.subr.mxu0 0.0
    %2602 = vmatpush1.msra.mxu0 %v2205
    %2603 = vmatprep.subr.mxu0 0.0
    %2604 = vmatpush1.msra.mxu0 0.0
    %2605 = vmatprep.subr.mxu0 0.0
    %2606 = vmatpush1.msra.mxu0 0.0
    %2607 = vmatprep.subr.mxu0 0.0
    %2608 = vmatpush1.msra.mxu0 0.0
    %2609 = vmatprep.subr.mxu0 0.0
    %2610 = vmatpush1.msra.mxu0 0.0
    %2611 = vmatprep.subr.mxu0 0.0
    %2612 = vmatpush1.msra.mxu0 0.0
    %2613 = vmatprep.subr.mxu0 0.0
    %2614 = vmatpush1.msra.mxu0 0.0
    %2615 = vmatprep.subr.mxu0 0.0
    %2616 = vmatpush1.msra.mxu0 0.0
    %2617 = vmatprep.subr.mxu0 0.0
    %2618 = vmatpush1.msra.mxu0 0.0
    %2619 = vmatprep.subr.mxu0 0.0
    %2620 = vmatpush1.msra.mxu0 0.0
    %2621 = vmatprep.subr.mxu0 0.0
    %2622 = vmatpush1.msra.mxu0 0.0
    %2623 = vmatprep.subr.mxu0 0.0
    %2624 = vmatpush1.msra.mxu0 0.0
    %2625 = vmatprep.subr.mxu0 0.0
    %2626 = vmatpush1.msra.mxu0 0.0
    %2627 = vmatprep.subr.mxu0 0.0
    %2628 = vmatpush1.msra.mxu0 0.0
    %2629 = vmatprep.subr.mxu0 0.0
    %2630 = vmatpush1.msra.mxu0 0.0
    %2631 = vmatprep.subr.mxu0 0.0
    %2632 = vmatpush1.msra.mxu0 0.0
    %2633 = vmatprep.subr.mxu0 0.0
    %2634 = vmatpush1.msra.mxu0 0.0
    %2635 = vmatprep.subr.mxu0 0.0
    %2636 = vmatpush1.msra.mxu0 0.0
    %2637 = vmatprep.subr.mxu0 0.0
    %2638 = vmatpush1.msra.mxu0 0.0
    %2639 = vmatprep.subr.mxu0 0.0
    %2640 = vmatpush1.msra.mxu0 0.0
    %2641 = vmatprep.subr.mxu0 0.0
    %2642 = vmatpush1.msra.mxu0 0.0
    %2643 = vmatprep.subr.mxu0 0.0
    %2644 = vmatpush1.msra.mxu0 0.0
    %2645 = vmatprep.subr.mxu0 0.0
    %2646 = vmatpush1.msra.mxu0 0.0
    %2647 = vmatprep.subr.mxu0 0.0
    %2648 = vmatpush1.msra.mxu0 0.0
    %2649 = vmatprep.subr.mxu0 0.0
    %2650 = vmatpush1.msra.mxu0 0.0
    %2651 = vmatprep.mubr.f32.mxu0 0.0
    %2652 = vmatmul.mubr.f32.gmra.mrb[0].mxu0 %v2582
    %v2653 = vpop.f32.mrb[0].mxu0
    %v2654 = vadd.f32 %v2407, %v2653
    %v2655 = vpop.f32.mrb[0].mxu0
    %2656 = vmatprep.mubr.f32.mxu0 0.0
    %2657 = vmatmul.mubr.f32.gmra.mrb[0].mxu0 %v2585
    %v2658 = vpop.f32.mrb[0].mxu0
    %v2659 = vadd.f32 %v2407, %v2658
    %v2660 = vpop.f32.mrb[0].mxu0
    %2661 = vdwg.mxu0
    %v2662 = vmax.f32 %v2482, %v2654
    %v2663 = vmax.f32 %v2487, %v2659
    %v2664 = vmax.f32 %v2662, 0.0
    %v2665 = vmax.f32 %v2663, 0.0
    %v2666 = vsel %vm578, %v2664, 0.0
    %v2667 = vsel %vm578, %v2665, 0.0
    %v2668 = vadd.f32 %v2666, %v2667
    %v2669 = vrot.slane %v2668, 4
    %v2670 = vadd.f32 %v2668, %v2669
    %v2671 = vrot.slane %v2670, 2
    %v2672 = vadd.f32 %v2670, %v2671
    %v2673 = vrot.slane %v2672, 1
    %v2674 = vadd.f32 %v2672, %v2673
    %v2675 = vmul.f32 %v2664, %v2664
    %v2676 = vmul.f32 %v2665, %v2665
    %v2677 = vsel %vm578, %v2675, 0.0
    %v2678 = vsel %vm578, %v2676, 0.0
    %v2679 = vadd.f32 %v2677, %v2678
    %v2680 = vrot.slane %v2679, 4
    %v2681 = vadd.f32 %v2679, %v2680
    %v2682 = vrot.slane %v2681, 2
    %v2683 = vadd.f32 %v2681, %v2682
    %v2684 = vrot.slane %v2683, 1
    %v2685 = vadd.f32 %v2683, %v2684
    %v2686 = vmul.f32 %v2674, 0.0625
    %v2687 = vmul.f32 %v2685, 0.0625
    %v2688 = vmul.f32 %v2686, %v2686
    %v2689 = vsub.f32 %v2687, %v2688
    %v2690 = vmax.f32 %v2689, 0.0
    %v2691 = vsub.f32 %v2664, %v2686
    %v2692 = vsub.f32 %v2665, %v2686
    %v2693 = vadd.f32 %v2690, 1e-05
    %v2694 = vrsqrt.pop %v2693
    %v2695 = vmul.f32 %v2691, %v2694
    %v2696 = vmul.f32 %v2692, %v2694
    %v2698 = vlaneseq
    %v2699 = vshrl.u32 %v2698, 7
    %v2700 = vsub.s32 0, %v2699
    %v2701 = vrot.slane %v2207, %v2700
    %v2703 = vmul.f32 %v2695, %v2701
    %v2704 = vmul.f32 %v2696, %v2701
    %v2706 = vlaneseq
    %v2707 = vshrl.u32 %v2706, 7
    %v2708 = vsub.s32 0, %v2707
    %v2709 = vrot.slane %v2208, %v2708
    %v2711 = vadd.f32 %v2703, %v2709
    %v2712 = vadd.f32 %v2704, %v2709
    %v2713 = vld [vmem:[#allocation26] sm:$0xff]
    %v2714 = vld [vmem:[#allocation26 + $0x8] sm:$0xff]
    %v2715 = vld [vmem:[#allocation26 + $0x10] sm:$0xff]
    %v2716 = vld [vmem:[#allocation26 + $0x18] sm:$0xff]
    %v2717 = vld [vmem:[#allocation26 + $0x20] sm:$0xff]
    %v2718 = vld [vmem:[#allocation26 + $0x28] sm:$0xff]
    %v2719 = vld [vmem:[#allocation26 + $0x30] sm:$0xff]
    %v2720 = vld [vmem:[#allocation26 + $0x38] sm:$0xff]
    %v2721 = vld [vmem:[#allocation28] sm:$0xff]
    %v2722 = vld [vmem:[#allocation28 + $0x8] sm:$0xff]
    %v2723 = vld [vmem:[#allocation28 + $0x10] sm:$0xff]
    %v2724 = vld [vmem:[#allocation28 + $0x18] sm:$0xff]
    %v2725 = vld [vmem:[#allocation28 + $0x20] sm:$0xff]
    %v2726 = vld [vmem:[#allocation28 + $0x28] sm:$0xff]
    %v2727 = vld [vmem:[#allocation28 + $0x30] sm:$0xff]
    %v2728 = vld [vmem:[#allocation28 + $0x38] sm:$0xff]
    %v2729 = vld [vmem:[#allocation29] sm:$0x1]
    %v2730 = vld [vmem:[#allocation31] sm:$0xff]
    %v2731 = vld [vmem:[#allocation31 + $0x8] sm:$0xff]
    %v2732 = vld [vmem:[#allocation31 + $0x10] sm:$0xff]
    %v2733 = vld [vmem:[#allocation31 + $0x18] sm:$0xff]
    %v2734 = vld [vmem:[#allocation31 + $0x20] sm:$0xff]
    %v2735 = vld [vmem:[#allocation31 + $0x28] sm:$0xff]
    %v2736 = vld [vmem:[#allocation31 + $0x30] sm:$0xff]
    %v2737 = vld [vmem:[#allocation31 + $0x38] sm:$0xff]
    %v2738 = vld [vmem:[#allocation32] sm:$0x1]
    %v2739 = vld [vmem:[#allocation34] sm:$0xff]
    %v2740 = vld [vmem:[#allocation34 + $0x8] sm:$0xff]
    %v2741 = vld [vmem:[#allocation34 + $0x10] sm:$0xff]
    %v2742 = vld [vmem:[#allocation34 + $0x18] sm:$0xff]
    %v2743 = vld [vmem:[#allocation34 + $0x20] sm:$0xff]
    %v2744 = vld [vmem:[#allocation34 + $0x28] sm:$0xff]
    %v2745 = vld [vmem:[#allocation34 + $0x30] sm:$0xff]
    %v2746 = vld [vmem:[#allocation34 + $0x38] sm:$0xff]
    %v2747 = vld [vmem:[#allocation35] sm:$0x1]
    %v2748 = vld [vmem:[#allocation37] sm:$0x1]
    %v2749 = vld [vmem:[#allocation38] sm:$0x1]
    %v2751 = vsel %vm578, %v2711, 0
    %v2754 = vsel %vm578, %v2712, 0
    %2756 = vmatprep.subr.mxu0 0.0
    %2757 = vmatpush1.msra.mxu0 %v2721
    %2758 = vmatprep.subr.mxu0 0.0
    %2759 = vmatpush1.msra.mxu0 %v2722
    %2760 = vmatprep.subr.mxu0 0.0
    %2761 = vmatpush1.msra.mxu0 %v2723
    %2762 = vmatprep.subr.mxu0 0.0
    %2763 = vmatpush1.msra.mxu0 %v2724
    %2764 = vmatprep.subr.mxu0 0.0
    %2765 = vmatpush1.msra.mxu0 %v2725
    %2766 = vmatprep.subr.mxu0 0.0
    %2767 = vmatpush1.msra.mxu0 %v2726
    %2768 = vmatprep.subr.mxu0 0.0
    %2769 = vmatpush1.msra.mxu0 %v2727
    %2770 = vmatprep.subr.mxu0 0.0
    %2771 = vmatpush1.msra.mxu0 %v2728
    %2772 = vmatprep.subr.mxu0 0.0
    %2773 = vmatpush1.msra.mxu0 0.0
    %2774 = vmatprep.subr.mxu0 0.0
    %2775 = vmatpush1.msra.mxu0 0.0
    %2776 = vmatprep.subr.mxu0 0.0
    %2777 = vmatpush1.msra.mxu0 0.0
    %2778 = vmatprep.subr.mxu0 0.0
    %2779 = vmatpush1.msra.mxu0 0.0
    %2780 = vmatprep.subr.mxu0 0.0
    %2781 = vmatpush1.msra.mxu0 0.0
    %2782 = vmatprep.subr.mxu0 0.0
    %2783 = vmatpush1.msra.mxu0 0.0
    %2784 = vmatprep.subr.mxu0 0.0
    %2785 = vmatpush1.msra.mxu0 0.0
    %2786 = vmatprep.subr.mxu0 0.0
    %2787 = vmatpush1.msra.mxu0 0.0
    %2788 = vmatprep.subr.mxu0 0.0
    %2789 = vmatpush1.msra.mxu0 0.0
    %2790 = vmatprep.subr.mxu0 0.0
    %2791 = vmatpush1.msra.mxu0 0.0
    %2792 = vmatprep.subr.mxu0 0.0
    %2793 = vmatpush1.msra.mxu0 0.0
    %2794 = vmatprep.subr.mxu0 0.0
    %2795 = vmatpush1.msra.mxu0 0.0
    %2796 = vmatprep.subr.mxu0 0.0
    %2797 = vmatpush1.msra.mxu0 0.0
    %2798 = vmatprep.subr.mxu0 0.0
    %2799 = vmatpush1.msra.mxu0 0.0
    %2800 = vmatprep.subr.mxu0 0.0
    %2801 = vmatpush1.msra.mxu0 0.0
    %2802 = vmatprep.subr.mxu0 0.0
    %2803 = vmatpush1.msra.mxu0 0.0
    %2804 = vmatprep.subr.mxu0 0.0
    %2805 = vmatpush1.msra.mxu0 0.0
    %2806 = vmatprep.subr.mxu0 0.0
    %2807 = vmatpush1.msra.mxu0 0.0
    %2808 = vmatprep.subr.mxu0 0.0
    %2809 = vmatpush1.msra.mxu0 0.0
    %2810 = vmatprep.subr.mxu0 0.0
    %2811 = vmatpush1.msra.mxu0 0.0
    %2812 = vmatprep.subr.mxu0 0.0
    %2813 = vmatpush1.msra.mxu0 0.0
    %2814 = vmatprep.subr.mxu0 0.0
    %2815 = vmatpush1.msra.mxu0 0.0
    %2816 = vmatprep.subr.mxu0 0.0
    %2817 = vmatpush1.msra.mxu0 0.0
    %2818 = vmatprep.subr.mxu0 0.0
    %2819 = vmatpush1.msra.mxu0 0.0
    %2820 = vmatprep.mubr.f32.mxu0 0.0
    %2821 = vmatmul.mubr.f32.gmra.mrb[0].mxu0 %v2751
    %v2822 = vpop.f32.mrb[0].mxu0
    %v2823 = vadd.f32 0.0, %v2822
    %v2824 = vpop.f32.mrb[0].mxu0
    %2825 = vmatprep.mubr.f32.mxu0 0.0
    %2826 = vmatmul.mubr.f32.gmra.mrb[0].mxu0 %v2754
    %v2827 = vpop.f32.mrb[0].mxu0
    %v2828 = vadd.f32 0.0, %v2827
    %v2829 = vpop.f32.mrb[0].mxu0
    %2830 = vdwg.mxu0
    %2831 = vmatprep.subr.mxu0 0.0
    %2832 = vmatpush1.msra.mxu0 %v2713
    %2833 = vmatprep.subr.mxu0 0.0
    %2834 = vmatpush1.msra.mxu0 %v2714
    %2835 = vmatprep.subr.mxu0 0.0
    %2836 = vmatpush1.msra.mxu0 %v2715
    %2837 = vmatprep.subr.mxu0 0.0
    %2838 = vmatpush1.msra.mxu0 %v2716
    %2839 = vmatprep.subr.mxu0 0.0
    %2840 = vmatpush1.msra.mxu0 %v2717
    %2841 = vmatprep.subr.mxu0 0.0
    %2842 = vmatpush1.msra.mxu0 %v2718
    %2843 = vmatprep.subr.mxu0 0.0
    %2844 = vmatpush1.msra.mxu0 %v2719
    %2845 = vmatprep.subr.mxu0 0.0
    %2846 = vmatpush1.msra.mxu0 %v2720
    %2847 = vmatprep.subr.mxu0 0.0
    %2848 = vmatpush1.msra.mxu0 0.0
    %2849 = vmatprep.subr.mxu0 0.0
    %2850 = vmatpush1.msra.mxu0 0.0
    %2851 = vmatprep.subr.mxu0 0.0
    %2852 = vmatpush1.msra.mxu0 0.0
    %2853 = vmatprep.subr.mxu0 0.0
    %2854 = vmatpush1.msra.mxu0 0.0
    %2855 = vmatprep.subr.mxu0 0.0
    %2856 = vmatpush1.msra.mxu0 0.0
    %2857 = vmatprep.subr.mxu0 0.0
    %2858 = vmatpush1.msra.mxu0 0.0
    %2859 = vmatprep.subr.mxu0 0.0
    %2860 = vmatpush1.msra.mxu0 0.0
    %2861 = vmatprep.subr.mxu0 0.0
    %2862 = vmatpush1.msra.mxu0 0.0
    %2863 = vmatprep.subr.mxu0 0.0
    %2864 = vmatpush1.msra.mxu0 0.0
    %2865 = vmatprep.subr.mxu0 0.0
    %2866 = vmatpush1.msra.mxu0 0.0
    %2867 = vmatprep.subr.mxu0 0.0
    %2868 = vmatpush1.msra.mxu0 0.0
    %2869 = vmatprep.subr.mxu0 0.0
    %2870 = vmatpush1.msra.mxu0 0.0
    %2871 = vmatprep.subr.mxu0 0.0
    %2872 = vmatpush1.msra.mxu0 0.0
    %2873 = vmatprep.subr.mxu0 0.0
    %2874 = vmatpush1.msra.mxu0 0.0
    %2875 = vmatprep.subr.mxu0 0.0
    %2876 = vmatpush1.msra.mxu0 0.0
    %2877 = vmatprep.subr.mxu0 0.0
    %2878 = vmatpush1.msra.mxu0 0.0
    %2879 = vmatprep.subr.mxu0 0.0
    %2880 = vmatpush1.msra.mxu0 0.0
    %2881 = vmatprep.subr.mxu0 0.0
    %2882 = vmatpush1.msra.mxu0 0.0
    %2883 = vmatprep.subr.mxu0 0.0
    %2884 = vmatpush1.msra.mxu0 0.0
    %2885 = vmatprep.subr.mxu0 0.0
    %2886 = vmatpush1.msra.mxu0 0.0
    %2887 = vmatprep.subr.mxu0 0.0
    %2888 = vmatpush1.msra.mxu0 0.0
    %2889 = vmatprep.subr.mxu0 0.0
    %2890 = vmatpush1.msra.mxu0 0.0
    %2891 = vmatprep.subr.mxu0 0.0
    %2892 = vmatpush1.msra.mxu0 0.0
    %2893 = vmatprep.subr.mxu0 0.0
    %2894 = vmatpush1.msra.mxu0 0.0
    %2895 = vmatprep.mubr.f32.mxu0 0.0
    %2896 = vmatmul.mubr.f32.gmra.mrb[0].mxu0 %v2751
    %v2897 = vpop.f32.mrb[0].mxu0
    %v2898 = vadd.f32 %v2823, %v2897
    %v2899 = vpop.f32.mrb[0].mxu0
    %2900 = vmatprep.mubr.f32.mxu0 0.0
    %2901 = vmatmul.mubr.f32.gmra.mrb[0].mxu0 %v2754
    %v2902 = vpop.f32.mrb[0].mxu0
    %v2903 = vadd.f32 %v2828, %v2902
    %v2904 = vpop.f32.mrb[0].mxu0
    %2905 = vdwg.mxu0
    %v2907 = vlaneseq
    %v2908 = vshrl.u32 %v2907, 7
    %v2909 = vsub.s32 0, %v2908
    %v2910 = vrot.slane %v2729, %v2909
    %v2912 = vadd.f32 %v2898, %v2910
    %v2913 = vadd.f32 %v2903, %v2910
    %2916 = vrot.lane.b32.xlu0 %v2898, 64
    %v2917 = vpop.permute.xlu0 %2916
    %2918 = vrot.lane.b32.xlu0 %v2903, 64
    %v2919 = vpop.permute.xlu0 %2918
    %v2922 = vrot.slane %v2917, 7
    %v2923 = vrot.slane %v2919, 7
    %v2924 = vsel %vm1075, %v2922, %v2923
    %v2925 = vsel %vm1075, %v2923, %v2922
    %v2926 = vadd.f32 %v2912, %v2925
    %v2927 = vadd.f32 %v2913, %v2924
    %v2928 = vmax.f32 %v2926, 0.0
    %v2929 = vmax.f32 %v2927, 0.0
    %v2931 = vlaneseq
    %v2932 = vshrl.u32 %v2931, 7
    %v2933 = vsub.s32 0, %v2932
    %v2934 = vrot.slane %v2738, %v2933
    %v2937 = vsel %vm578, %v2928, 0
    %v2940 = vsel %vm578, %v2929, 0
    %2942 = vmatprep.subr.mxu0 0.0
    %2943 = vmatpush1.msra.mxu0 %v2730
    %2944 = vmatprep.subr.mxu0 0.0
    %2945 = vmatpush1.msra.mxu0 %v2731
    %2946 = vmatprep.subr.mxu0 0.0
    %2947 = vmatpush1.msra.mxu0 %v2732
    %2948 = vmatprep.subr.mxu0 0.0
    %2949 = vmatpush1.msra.mxu0 %v2733
    %2950 = vmatprep.subr.mxu0 0.0
    %2951 = vmatpush1.msra.mxu0 %v2734
    %2952 = vmatprep.subr.mxu0 0.0
    %2953 = vmatpush1.msra.mxu0 %v2735
    %2954 = vmatprep.subr.mxu0 0.0
    %2955 = vmatpush1.msra.mxu0 %v2736
    %2956 = vmatprep.subr.mxu0 0.0
    %2957 = vmatpush1.msra.mxu0 %v2737
    %2958 = vmatprep.subr.mxu0 0.0
    %2959 = vmatpush1.msra.mxu0 0.0
    %2960 = vmatprep.subr.mxu0 0.0
    %2961 = vmatpush1.msra.mxu0 0.0
    %2962 = vmatprep.subr.mxu0 0.0
    %2963 = vmatpush1.msra.mxu0 0.0
    %2964 = vmatprep.subr.mxu0 0.0
    %2965 = vmatpush1.msra.mxu0 0.0
    %2966 = vmatprep.subr.mxu0 0.0
    %2967 = vmatpush1.msra.mxu0 0.0
    %2968 = vmatprep.subr.mxu0 0.0
    %2969 = vmatpush1.msra.mxu0 0.0
    %2970 = vmatprep.subr.mxu0 0.0
    %2971 = vmatpush1.msra.mxu0 0.0
    %2972 = vmatprep.subr.mxu0 0.0
    %2973 = vmatpush1.msra.mxu0 0.0
    %2974 = vmatprep.subr.mxu0 0.0
    %2975 = vmatpush1.msra.mxu0 0.0
    %2976 = vmatprep.subr.mxu0 0.0
    %2977 = vmatpush1.msra.mxu0 0.0
    %2978 = vmatprep.subr.mxu0 0.0
    %2979 = vmatpush1.msra.mxu0 0.0
    %2980 = vmatprep.subr.mxu0 0.0
    %2981 = vmatpush1.msra.mxu0 0.0
    %2982 = vmatprep.subr.mxu0 0.0
    %2983 = vmatpush1.msra.mxu0 0.0
    %2984 = vmatprep.subr.mxu0 0.0
    %2985 = vmatpush1.msra.mxu0 0.0
    %2986 = vmatprep.subr.mxu0 0.0
    %2987 = vmatpush1.msra.mxu0 0.0
    %2988 = vmatprep.subr.mxu0 0.0
    %2989 = vmatpush1.msra.mxu0 0.0
    %2990 = vmatprep.subr.mxu0 0.0
    %2991 = vmatpush1.msra.mxu0 0.0
    %2992 = vmatprep.subr.mxu0 0.0
    %2993 = vmatpush1.msra.mxu0 0.0
    %2994 = vmatprep.subr.mxu0 0.0
    %2995 = vmatpush1.msra.mxu0 0.0
    %2996 = vmatprep.subr.mxu0 0.0
    %2997 = vmatpush1.msra.mxu0 0.0
    %2998 = vmatprep.subr.mxu0 0.0
    %2999 = vmatpush1.msra.mxu0 0.0
    %3000 = vmatprep.subr.mxu0 0.0
    %3001 = vmatpush1.msra.mxu0 0.0
    %3002 = vmatprep.subr.mxu0 0.0
    %3003 = vmatpush1.msra.mxu0 0.0
    %3004 = vmatprep.subr.mxu0 0.0
    %3005 = vmatpush1.msra.mxu0 0.0
    %3006 = vmatprep.mubr.f32.mxu0 0.0
    %3007 = vmatmul.mubr.f32.gmra.mrb[0].mxu0 %v2937
    %v3008 = vpop.f32.mrb[0].mxu0
    %v3009 = vadd.f32 %v2934, %v3008
    %v3010 = vpop.f32.mrb[0].mxu0
    %3011 = vmatprep.mubr.f32.mxu0 0.0
    %3012 = vmatmul.mubr.f32.gmra.mrb[0].mxu0 %v2940
    %v3013 = vpop.f32.mrb[0].mxu0
    %v3014 = vadd.f32 %v2934, %v3013
    %v3015 = vpop.f32.mrb[0].mxu0
    %3016 = vdwg.mxu0
    %v3017 = vmax.f32 %v3009, 0.0
    %v3018 = vmax.f32 %v3014, 0.0
    %v3020 = vlaneseq
    %v3021 = vshrl.u32 %v3020, 7
    %v3022 = vsub.s32 0, %v3021
    %v3023 = vrot.slane %v2747, %v3022
    %v3026 = vsel %vm578, %v3017, 0
    %v3029 = vsel %vm578, %v3018, 0
    %3031 = vmatprep.subr.mxu0 0.0
    %3032 = vmatpush1.msra.mxu0 %v2739
    %3033 = vmatprep.subr.mxu0 0.0
    %3034 = vmatpush1.msra.mxu0 %v2740
    %3035 = vmatprep.subr.mxu0 0.0
    %3036 = vmatpush1.msra.mxu0 %v2741
    %3037 = vmatprep.subr.mxu0 0.0
    %3038 = vmatpush1.msra.mxu0 %v2742
    %3039 = vmatprep.subr.mxu0 0.0
    %3040 = vmatpush1.msra.mxu0 %v2743
    %3041 = vmatprep.subr.mxu0 0.0
    %3042 = vmatpush1.msra.mxu0 %v2744
    %3043 = vmatprep.subr.mxu0 0.0
    %3044 = vmatpush1.msra.mxu0 %v2745
    %3045 = vmatprep.subr.mxu0 0.0
    %3046 = vmatpush1.msra.mxu0 %v2746
    %3047 = vmatprep.subr.mxu0 0.0
    %3048 = vmatpush1.msra.mxu0 0.0
    %3049 = vmatprep.subr.mxu0 0.0
    %3050 = vmatpush1.msra.mxu0 0.0
    %3051 = vmatprep.subr.mxu0 0.0
    %3052 = vmatpush1.msra.mxu0 0.0
    %3053 = vmatprep.subr.mxu0 0.0
    %3054 = vmatpush1.msra.mxu0 0.0
    %3055 = vmatprep.subr.mxu0 0.0
    %3056 = vmatpush1.msra.mxu0 0.0
    %3057 = vmatprep.subr.mxu0 0.0
    %3058 = vmatpush1.msra.mxu0 0.0
    %3059 = vmatprep.subr.mxu0 0.0
    %3060 = vmatpush1.msra.mxu0 0.0
    %3061 = vmatprep.subr.mxu0 0.0
    %3062 = vmatpush1.msra.mxu0 0.0
    %3063 = vmatprep.subr.mxu0 0.0
    %3064 = vmatpush1.msra.mxu0 0.0
    %3065 = vmatprep.subr.mxu0 0.0
    %3066 = vmatpush1.msra.mxu0 0.0
    %3067 = vmatprep.subr.mxu0 0.0
    %3068 = vmatpush1.msra.mxu0 0.0
    %3069 = vmatprep.subr.mxu0 0.0
    %3070 = vmatpush1.msra.mxu0 0.0
    %3071 = vmatprep.subr.mxu0 0.0
    %3072 = vmatpush1.msra.mxu0 0.0
    %3073 = vmatprep.subr.mxu0 0.0
    %3074 = vmatpush1.msra.mxu0 0.0
    %3075 = vmatprep.subr.mxu0 0.0
    %3076 = vmatpush1.msra.mxu0 0.0
    %3077 = vmatprep.subr.mxu0 0.0
    %3078 = vmatpush1.msra.mxu0 0.0
    %3079 = vmatprep.subr.mxu0 0.0
    %3080 = vmatpush1.msra.mxu0 0.0
    %3081 = vmatprep.subr.mxu0 0.0
    %3082 = vmatpush1.msra.mxu0 0.0
    %3083 = vmatprep.subr.mxu0 0.0
    %3084 = vmatpush1.msra.mxu0 0.0
    %3085 = vmatprep.subr.mxu0 0.0
    %3086 = vmatpush1.msra.mxu0 0.0
    %3087 = vmatprep.subr.mxu0 0.0
    %3088 = vmatpush1.msra.mxu0 0.0
    %3089 = vmatprep.subr.mxu0 0.0
    %3090 = vmatpush1.msra.mxu0 0.0
    %3091 = vmatprep.subr.mxu0 0.0
    %3092 = vmatpush1.msra.mxu0 0.0
    %3093 = vmatprep.subr.mxu0 0.0
    %3094 = vmatpush1.msra.mxu0 0.0
    %3095 = vmatprep.mubr.f32.mxu0 0.0
    %3096 = vmatmul.mubr.f32.gmra.mrb[0].mxu0 %v3026
    %v3097 = vpop.f32.mrb[0].mxu0
    %v3098 = vadd.f32 %v3023, %v3097
    %v3099 = vpop.f32.mrb[0].mxu0
    %3100 = vmatprep.mubr.f32.mxu0 0.0
    %3101 = vmatmul.mubr.f32.gmra.mrb[0].mxu0 %v3029
    %v3102 = vpop.f32.mrb[0].mxu0
    %v3103 = vadd.f32 %v3023, %v3102
    %v3104 = vpop.f32.mrb[0].mxu0
    %3105 = vdwg.mxu0
    %v3106 = vrot.slane %v2917, 1
    %v3107 = vrot.slane %v2919, 1
    %v3108 = vsel %vm1382, %v3106, %v3107
    %v3109 = vsel %vm1382, %v3107, %v3106
    %v3110 = vadd.f32 %v2912, %v3108
    %v3111 = vadd.f32 %v2913, %v3109
    %v3112 = vmax.f32 %v3110, 0.0
    %v3113 = vmax.f32 %v3111, 0.0
    %v3115 = vsel %vm578, %v3112, 0
    %v3118 = vsel %vm578, %v3113, 0
    %3120 = vmatprep.subr.mxu0 0.0
    %3121 = vmatpush1.msra.mxu0 %v2730
    %3122 = vmatprep.subr.mxu0 0.0
    %3123 = vmatpush1.msra.mxu0 %v2731
    %3124 = vmatprep.subr.mxu0 0.0
    %3125 = vmatpush1.msra.mxu0 %v2732
    %3126 = vmatprep.subr.mxu0 0.0
    %3127 = vmatpush1.msra.mxu0 %v2733
    %3128 = vmatprep.subr.mxu0 0.0
    %3129 = vmatpush1.msra.mxu0 %v2734
    %3130 = vmatprep.subr.mxu0 0.0
    %3131 = vmatpush1.msra.mxu0 %v2735
    %3132 = vmatprep.subr.mxu0 0.0
    %3133 = vmatpush1.msra.mxu0 %v2736
    %3134 = vmatprep.subr.mxu0 0.0
    %3135 = vmatpush1.msra.mxu0 %v2737
    %3136 = vmatprep.subr.mxu0 0.0
    %3137 = vmatpush1.msra.mxu0 0.0
    %3138 = vmatprep.subr.mxu0 0.0
    %3139 = vmatpush1.msra.mxu0 0.0
    %3140 = vmatprep.subr.mxu0 0.0
    %3141 = vmatpush1.msra.mxu0 0.0
    %3142 = vmatprep.subr.mxu0 0.0
    %3143 = vmatpush1.msra.mxu0 0.0
    %3144 = vmatprep.subr.mxu0 0.0
    %3145 = vmatpush1.msra.mxu0 0.0
    %3146 = vmatprep.subr.mxu0 0.0
    %3147 = vmatpush1.msra.mxu0 0.0
    %3148 = vmatprep.subr.mxu0 0.0
    %3149 = vmatpush1.msra.mxu0 0.0
    %3150 = vmatprep.subr.mxu0 0.0
    %3151 = vmatpush1.msra.mxu0 0.0
    %3152 = vmatprep.subr.mxu0 0.0
    %3153 = vmatpush1.msra.mxu0 0.0
    %3154 = vmatprep.subr.mxu0 0.0
    %3155 = vmatpush1.msra.mxu0 0.0
    %3156 = vmatprep.subr.mxu0 0.0
    %3157 = vmatpush1.msra.mxu0 0.0
    %3158 = vmatprep.subr.mxu0 0.0
    %3159 = vmatpush1.msra.mxu0 0.0
    %3160 = vmatprep.subr.mxu0 0.0
    %3161 = vmatpush1.msra.mxu0 0.0
    %3162 = vmatprep.subr.mxu0 0.0
    %3163 = vmatpush1.msra.mxu0 0.0
    %3164 = vmatprep.subr.mxu0 0.0
    %3165 = vmatpush1.msra.mxu0 0.0
    %3166 = vmatprep.subr.mxu0 0.0
    %3167 = vmatpush1.msra.mxu0 0.0
    %3168 = vmatprep.subr.mxu0 0.0
    %3169 = vmatpush1.msra.mxu0 0.0
    %3170 = vmatprep.subr.mxu0 0.0
    %3171 = vmatpush1.msra.mxu0 0.0
    %3172 = vmatprep.subr.mxu0 0.0
    %3173 = vmatpush1.msra.mxu0 0.0
    %3174 = vmatprep.subr.mxu0 0.0
    %3175 = vmatpush1.msra.mxu0 0.0
    %3176 = vmatprep.subr.mxu0 0.0
    %3177 = vmatpush1.msra.mxu0 0.0
    %3178 = vmatprep.subr.mxu0 0.0
    %3179 = vmatpush1.msra.mxu0 0.0
    %3180 = vmatprep.subr.mxu0 0.0
    %3181 = vmatpush1.msra.mxu0 0.0
    %3182 = vmatprep.subr.mxu0 0.0
    %3183 = vmatpush1.msra.mxu0 0.0
    %3184 = vmatprep.mubr.f32.mxu0 0.0
    %3185 = vmatmul.mubr.f32.gmra.mrb[0].mxu0 %v3115
    %v3186 = vpop.f32.mrb[0].mxu0
    %v3187 = vadd.f32 %v2934, %v3186
    %v3188 = vpop.f32.mrb[0].mxu0
    %3189 = vmatprep.mubr.f32.mxu0 0.0
    %3190 = vmatmul.mubr.f32.gmra.mrb[0].mxu0 %v3118
    %v3191 = vpop.f32.mrb[0].mxu0
    %v3192 = vadd.f32 %v2934, %v3191
    %v3193 = vpop.f32.mrb[0].mxu0
    %3194 = vdwg.mxu0
    %v3195 = vmax.f32 %v3187, 0.0
    %v3196 = vmax.f32 %v3192, 0.0
    %v3198 = vsel %vm578, %v3195, 0
    %v3201 = vsel %vm578, %v3196, 0
    %3203 = vmatprep.subr.mxu0 0.0
    %3204 = vmatpush1.msra.mxu0 %v2739
    %3205 = vmatprep.subr.mxu0 0.0
    %3206 = vmatpush1.msra.mxu0 %v2740
    %3207 = vmatprep.subr.mxu0 0.0
    %3208 = vmatpush1.msra.mxu0 %v2741
    %3209 = vmatprep.subr.mxu0 0.0
    %3210 = vmatpush1.msra.mxu0 %v2742
    %3211 = vmatprep.subr.mxu0 0.0
    %3212 = vmatpush1.msra.mxu0 %v2743
    %3213 = vmatprep.subr.mxu0 0.0
    %3214 = vmatpush1.msra.mxu0 %v2744
    %3215 = vmatprep.subr.mxu0 0.0
    %3216 = vmatpush1.msra.mxu0 %v2745
    %3217 = vmatprep.subr.mxu0 0.0
    %3218 = vmatpush1.msra.mxu0 %v2746
    %3219 = vmatprep.subr.mxu0 0.0
    %3220 = vmatpush1.msra.mxu0 0.0
    %3221 = vmatprep.subr.mxu0 0.0
    %3222 = vmatpush1.msra.mxu0 0.0
    %3223 = vmatprep.subr.mxu0 0.0
    %3224 = vmatpush1.msra.mxu0 0.0
    %3225 = vmatprep.subr.mxu0 0.0
    %3226 = vmatpush1.msra.mxu0 0.0
    %3227 = vmatprep.subr.mxu0 0.0
    %3228 = vmatpush1.msra.mxu0 0.0
    %3229 = vmatprep.subr.mxu0 0.0
    %3230 = vmatpush1.msra.mxu0 0.0
    %3231 = vmatprep.subr.mxu0 0.0
    %3232 = vmatpush1.msra.mxu0 0.0
    %3233 = vmatprep.subr.mxu0 0.0
    %3234 = vmatpush1.msra.mxu0 0.0
    %3235 = vmatprep.subr.mxu0 0.0
    %3236 = vmatpush1.msra.mxu0 0.0
    %3237 = vmatprep.subr.mxu0 0.0
    %3238 = vmatpush1.msra.mxu0 0.0
    %3239 = vmatprep.subr.mxu0 0.0
    %3240 = vmatpush1.msra.mxu0 0.0
    %3241 = vmatprep.subr.mxu0 0.0
    %3242 = vmatpush1.msra.mxu0 0.0
    %3243 = vmatprep.subr.mxu0 0.0
    %3244 = vmatpush1.msra.mxu0 0.0
    %3245 = vmatprep.subr.mxu0 0.0
    %3246 = vmatpush1.msra.mxu0 0.0
    %3247 = vmatprep.subr.mxu0 0.0
    %3248 = vmatpush1.msra.mxu0 0.0
    %3249 = vmatprep.subr.mxu0 0.0
    %3250 = vmatpush1.msra.mxu0 0.0
    %3251 = vmatprep.subr.mxu0 0.0
    %3252 = vmatpush1.msra.mxu0 0.0
    %3253 = vmatprep.subr.mxu0 0.0
    %3254 = vmatpush1.msra.mxu0 0.0
    %3255 = vmatprep.subr.mxu0 0.0
    %3256 = vmatpush1.msra.mxu0 0.0
    %3257 = vmatprep.subr.mxu0 0.0
    %3258 = vmatpush1.msra.mxu0 0.0
    %3259 = vmatprep.subr.mxu0 0.0
    %3260 = vmatpush1.msra.mxu0 0.0
    %3261 = vmatprep.subr.mxu0 0.0
    %3262 = vmatpush1.msra.mxu0 0.0
    %3263 = vmatprep.subr.mxu0 0.0
    %3264 = vmatpush1.msra.mxu0 0.0
    %3265 = vmatprep.subr.mxu0 0.0
    %3266 = vmatpush1.msra.mxu0 0.0
    %3267 = vmatprep.mubr.f32.mxu0 0.0
    %3268 = vmatmul.mubr.f32.gmra.mrb[0].mxu0 %v3198
    %v3269 = vpop.f32.mrb[0].mxu0
    %v3270 = vadd.f32 %v3023, %v3269
    %v3271 = vpop.f32.mrb[0].mxu0
    %3272 = vmatprep.mubr.f32.mxu0 0.0
    %3273 = vmatmul.mubr.f32.gmra.mrb[0].mxu0 %v3201
    %v3274 = vpop.f32.mrb[0].mxu0
    %v3275 = vadd.f32 %v3023, %v3274
    %v3276 = vpop.f32.mrb[0].mxu0
    %3277 = vdwg.mxu0
    %v3278 = vmax.f32 %v3098, %v3270
    %v3279 = vmax.f32 %v3103, %v3275
    %v3280 = vmax.f32 %v3278, 0.0
    %v3281 = vmax.f32 %v3279, 0.0
    %v3282 = vsel %vm578, %v3280, 0.0
    %v3283 = vsel %vm578, %v3281, 0.0
    %v3284 = vadd.f32 %v3282, %v3283
    %v3285 = vrot.slane %v3284, 4
    %v3286 = vadd.f32 %v3284, %v3285
    %v3287 = vrot.slane %v3286, 2
    %v3288 = vadd.f32 %v3286, %v3287
    %v3289 = vrot.slane %v3288, 1
    %v3290 = vadd.f32 %v3288, %v3289
    %v3291 = vmul.f32 %v3280, %v3280
    %v3292 = vmul.f32 %v3281, %v3281
    %v3293 = vsel %vm578, %v3291, 0.0
    %v3294 = vsel %vm578, %v3292, 0.0
    %v3295 = vadd.f32 %v3293, %v3294
    %v3296 = vrot.slane %v3295, 4
    %v3297 = vadd.f32 %v3295, %v3296
    %v3298 = vrot.slane %v3297, 2
    %v3299 = vadd.f32 %v3297, %v3298
    %v3300 = vrot.slane %v3299, 1
    %v3301 = vadd.f32 %v3299, %v3300
    %v3302 = vmul.f32 %v3290, 0.0625
    %v3303 = vmul.f32 %v3301, 0.0625
    %v3304 = vmul.f32 %v3302, %v3302
    %v3305 = vsub.f32 %v3303, %v3304
    %v3306 = vmax.f32 %v3305, 0.0
    %v3307 = vsub.f32 %v3280, %v3302
    %v3308 = vsub.f32 %v3281, %v3302
    %v3309 = vadd.f32 %v3306, 1e-05
    %v3310 = vrsqrt.pop %v3309
    %v3311 = vmul.f32 %v3307, %v3310
    %v3312 = vmul.f32 %v3308, %v3310
    %v3314 = vlaneseq
    %v3315 = vshrl.u32 %v3314, 7
    %v3316 = vsub.s32 0, %v3315
    %v3317 = vrot.slane %v2748, %v3316
    %v3319 = vmul.f32 %v3311, %v3317
    %v3320 = vmul.f32 %v3312, %v3317
    %v3322 = vlaneseq
    %v3323 = vshrl.u32 %v3322, 7
    %v3324 = vsub.s32 0, %v3323
    %v3325 = vrot.slane %v2749, %v3324
    %v3327 = vadd.f32 %v3319, %v3325
    %v3328 = vadd.f32 %v3320, %v3325
    %v3329 = vld [vmem:[%s55] sm:$0xff]
    %v3330 = vld [vmem:[%s55 + $0x8] sm:$0xff]
    %v3331 = vld [vmem:[%s55 + $0x10] sm:$0xff]
    %v3332 = vld [vmem:[%s55 + $0x18] sm:$0xff]
    %v3333 = vld [vmem:[%s55 + $0x20] sm:$0xff]
    %v3334 = vld [vmem:[%s55 + $0x28] sm:$0xff]
    %v3335 = vld [vmem:[%s55 + $0x30] sm:$0xff]
    %v3336 = vld [vmem:[%s55 + $0x38] sm:$0xff]
    %vm3337 = vcmask 130048
    %v3339 = vsel %vm3337, %v3329, 0
    %v3342 = vsel %vm3337, %v3330, 0
    %v3345 = vsel %vm3337, %v3331, 0
    %v3348 = vsel %vm3337, %v3332, 0
    %v3351 = vsel %vm3337, %v3333, 0
    %v3354 = vsel %vm3337, %v3334, 0
    %v3357 = vsel %vm3337, %v3335, 0
    %v3360 = vsel %vm3337, %v3336, 0
    %3362 = vmatprep.subr.mxu0 0.0
    %3363 = vmatpush1.msra.mxu0 %v3327
    %3364 = vmatprep.subr.mxu0 0.0
    %3365 = vmatpush1.msra.mxu0 %v3328
    %3366 = vmatprep.subr.mxu0 0.0
    %3367 = vmatpush1.msra.mxu0 0.0
    %3368 = vmatprep.subr.mxu0 0.0
    %3369 = vmatpush1.msra.mxu0 0.0
    %3370 = vmatprep.subr.mxu0 0.0
    %3371 = vmatpush1.msra.mxu0 0.0
    %3372 = vmatprep.subr.mxu0 0.0
    %3373 = vmatpush1.msra.mxu0 0.0
    %3374 = vmatprep.subr.mxu0 0.0
    %3375 = vmatpush1.msra.mxu0 0.0
    %3376 = vmatprep.subr.mxu0 0.0
    %3377 = vmatpush1.msra.mxu0 0.0
    %3378 = vmatprep.subr.mxu0 0.0
    %3379 = vmatpush1.msra.mxu0 0.0
    %3380 = vmatprep.subr.mxu0 0.0
    %3381 = vmatpush1.msra.mxu0 0.0
    %3382 = vmatprep.subr.mxu0 0.0
    %3383 = vmatpush1.msra.mxu0 0.0
    %3384 = vmatprep.subr.mxu0 0.0
    %3385 = vmatpush1.msra.mxu0 0.0
    %3386 = vmatprep.subr.mxu0 0.0
    %3387 = vmatpush1.msra.mxu0 0.0
    %3388 = vmatprep.subr.mxu0 0.0
    %3389 = vmatpush1.msra.mxu0 0.0
    %3390 = vmatprep.subr.mxu0 0.0
    %3391 = vmatpush1.msra.mxu0 0.0
    %3392 = vmatprep.subr.mxu0 0.0
    %3393 = vmatpush1.msra.mxu0 0.0
    %3394 = vmatprep.subr.mxu0 0.0
    %3395 = vmatpush1.msra.mxu0 0.0
    %3396 = vmatprep.subr.mxu0 0.0
    %3397 = vmatpush1.msra.mxu0 0.0
    %3398 = vmatprep.subr.mxu0 0.0
    %3399 = vmatpush1.msra.mxu0 0.0
    %3400 = vmatprep.subr.mxu0 0.0
    %3401 = vmatpush1.msra.mxu0 0.0
    %3402 = vmatprep.subr.mxu0 0.0
    %3403 = vmatpush1.msra.mxu0 0.0
    %3404 = vmatprep.subr.mxu0 0.0
    %3405 = vmatpush1.msra.mxu0 0.0
    %3406 = vmatprep.subr.mxu0 0.0
    %3407 = vmatpush1.msra.mxu0 0.0
    %3408 = vmatprep.subr.mxu0 0.0
    %3409 = vmatpush1.msra.mxu0 0.0
    %3410 = vmatprep.subr.mxu0 0.0
    %3411 = vmatpush1.msra.mxu0 0.0
    %3412 = vmatprep.subr.mxu0 0.0
    %3413 = vmatpush1.msra.mxu0 0.0
    %3414 = vmatprep.subr.mxu0 0.0
    %3415 = vmatpush1.msra.mxu0 0.0
    %3416 = vmatprep.subr.mxu0 0.0
    %3417 = vmatpush1.msra.mxu0 0.0
    %3418 = vmatprep.subr.mxu0 0.0
    %3419 = vmatpush1.msra.mxu0 0.0
    %3420 = vmatprep.subr.mxu0 0.0
    %3421 = vmatpush1.msra.mxu0 0.0
    %3422 = vmatprep.subr.mxu0 0.0
    %3423 = vmatpush1.msra.mxu0 0.0
    %3424 = vmatprep.subr.mxu0 0.0
    %3425 = vmatpush1.msra.mxu0 0.0
    %3426 = vmatprep.mubr.f32.mxu0 0.0
    %3427 = vmatmul.mubr.f32.gmra.mrb[0].mxu0 %v3339
    %v3428 = vpop.f32.mrb[0].mxu0
    %v3429 = vadd.f32 0.0, %v3428
    %v3430 = vpop.f32.mrb[0].mxu0
    %3431 = vmatprep.mubr.f32.mxu0 0.0
    %3432 = vmatmul.mubr.f32.gmra.mrb[0].mxu0 %v3342
    %v3433 = vpop.f32.mrb[0].mxu0
    %v3434 = vadd.f32 0.0, %v3433
    %v3435 = vpop.f32.mrb[0].mxu0
    %3436 = vmatprep.mubr.f32.mxu0 0.0
    %3437 = vmatmul.mubr.f32.gmra.mrb[0].mxu0 %v3345
    %v3438 = vpop.f32.mrb[0].mxu0
    %v3439 = vadd.f32 0.0, %v3438
    %v3440 = vpop.f32.mrb[0].mxu0
    %3441 = vmatprep.mubr.f32.mxu0 0.0
    %3442 = vmatmul.mubr.f32.gmra.mrb[0].mxu0 %v3348
    %v3443 = vpop.f32.mrb[0].mxu0
    %v3444 = vadd.f32 0.0, %v3443
    %v3445 = vpop.f32.mrb[0].mxu0
    %3446 = vmatprep.mubr.f32.mxu0 0.0
    %3447 = vmatmul.mubr.f32.gmra.mrb[0].mxu0 %v3351
    %v3448 = vpop.f32.mrb[0].mxu0
    %v3449 = vadd.f32 0.0, %v3448
    %v3450 = vpop.f32.mrb[0].mxu0
    %3451 = vmatprep.mubr.f32.mxu0 0.0
    %3452 = vmatmul.mubr.f32.gmra.mrb[0].mxu0 %v3354
    %v3453 = vpop.f32.mrb[0].mxu0
    %v3454 = vadd.f32 0.0, %v3453
    %v3455 = vpop.f32.mrb[0].mxu0
    %3456 = vmatprep.mubr.f32.mxu0 0.0
    %3457 = vmatmul.mubr.f32.gmra.mrb[0].mxu0 %v3357
    %v3458 = vpop.f32.mrb[0].mxu0
    %v3459 = vadd.f32 0.0, %v3458
    %v3460 = vpop.f32.mrb[0].mxu0
    %3461 = vmatprep.mubr.f32.mxu0 0.0
    %3462 = vmatmul.mubr.f32.gmra.mrb[0].mxu0 %v3360
    %v3463 = vpop.f32.mrb[0].mxu0
    %v3464 = vadd.f32 0.0, %v3463
    %v3465 = vpop.f32.mrb[0].mxu0
    %3466 = vdwg.mxu0
    %v3467 = vld [vmem:[#allocation40] sm:$0xff]
    %v3468 = vld [vmem:[#allocation40 + $0x8] sm:$0xff]
    %v3469 = vld [vmem:[#allocation40 + $0x10] sm:$0xff]
    %v3470 = vld [vmem:[#allocation40 + $0x18] sm:$0xff]
    %v3471 = vld [vmem:[#allocation40 + $0x20] sm:$0xff]
    %v3472 = vld [vmem:[#allocation40 + $0x28] sm:$0xff]
    %v3473 = vld [vmem:[#allocation40 + $0x30] sm:$0xff]
    %v3474 = vld [vmem:[#allocation40 + $0x38] sm:$0xff]
    %v3475 = vld [vmem:[#allocation41] sm:$0xff]
    %v3476 = vld [vmem:[#allocation41 + $0x8] sm:$0xff]
    %v3477 = vld [vmem:[#allocation41 + $0x10] sm:$0xff]
    %v3478 = vld [vmem:[#allocation41 + $0x18] sm:$0xff]
    %v3479 = vld [vmem:[#allocation41 + $0x20] sm:$0xff]
    %v3480 = vld [vmem:[#allocation41 + $0x28] sm:$0xff]
    %v3481 = vld [vmem:[#allocation41 + $0x30] sm:$0xff]
    %v3482 = vld [vmem:[#allocation41 + $0x38] sm:$0xff]
    %v3483 = vld [vmem:[#allocation43] sm:$0x1]
    %v3484 = vld [vmem:[%s63] sm:$0xff]
    %v3485 = vld [vmem:[%s63 + $0x8] sm:$0xff]
    %v3486 = vld [vmem:[%s63 + $0x10] sm:$0xff]
    %v3487 = vld [vmem:[%s63 + $0x18] sm:$0xff]
    %v3488 = vld [vmem:[%s63 + $0x20] sm:$0xff]
    %v3489 = vld [vmem:[%s63 + $0x28] sm:$0xff]
    %v3490 = vld [vmem:[%s63 + $0x30] sm:$0xff]
    %v3491 = vld [vmem:[%s63 + $0x38] sm:$0xff]
    %v3492 = vld [vmem:[%s65] sm:$0x1]
    %v3493 = vld [vmem:[#allocation44] sm:$0xff]
    %v3494 = vld [vmem:[#allocation44 + $0x8] sm:$0xff]
    %v3495 = vld [vmem:[#allocation44 + $0x10] sm:$0xff]
    %v3496 = vld [vmem:[#allocation44 + $0x18] sm:$0xff]
    %v3497 = vld [vmem:[#allocation44 + $0x20] sm:$0xff]
    %v3498 = vld [vmem:[#allocation44 + $0x28] sm:$0xff]
    %v3499 = vld [vmem:[#allocation44 + $0x30] sm:$0xff]
    %v3500 = vld [vmem:[#allocation44 + $0x38] sm:$0xff]
    %v3501 = vld [vmem:[%s69] sm:$0x1]
    %v3502 = vld [vmem:[%s71] sm:$0x1]
    %v3503 = vld [vmem:[%s73] sm:$0x1]
    %v3505 = vsel %vm578, %v3429, 0
    %v3508 = vsel %vm578, %v3434, 0
    %v3511 = vsel %vm578, %v3439, 0
    %v3514 = vsel %vm578, %v3444, 0
    %v3517 = vsel %vm578, %v3449, 0
    %v3520 = vsel %vm578, %v3454, 0
    %v3523 = vsel %vm578, %v3459, 0
    %v3526 = vsel %vm578, %v3464, 0
    %3528 = vmatprep.subr.mxu0 0.0
    %3529 = vmatpush1.msra.mxu0 %v3475
    %3530 = vmatprep.subr.mxu0 0.0
    %3531 = vmatpush1.msra.mxu0 %v3476
    %3532 = vmatprep.subr.mxu0 0.0
    %3533 = vmatpush1.msra.mxu0 %v3477
    %3534 = vmatprep.subr.mxu0 0.0
    %3535 = vmatpush1.msra.mxu0 %v3478
    %3536 = vmatprep.subr.mxu0 0.0
    %3537 = vmatpush1.msra.mxu0 %v3479
    %3538 = vmatprep.subr.mxu0 0.0
    %3539 = vmatpush1.msra.mxu0 %v3480
    %3540 = vmatprep.subr.mxu0 0.0
    %3541 = vmatpush1.msra.mxu0 %v3481
    %3542 = vmatprep.subr.mxu0 0.0
    %3543 = vmatpush1.msra.mxu0 %v3482
    %3544 = vmatprep.subr.mxu0 0.0
    %3545 = vmatpush1.msra.mxu0 0.0
    %3546 = vmatprep.subr.mxu0 0.0
    %3547 = vmatpush1.msra.mxu0 0.0
    %3548 = vmatprep.subr.mxu0 0.0
    %3549 = vmatpush1.msra.mxu0 0.0
    %3550 = vmatprep.subr.mxu0 0.0
    %3551 = vmatpush1.msra.mxu0 0.0
    %3552 = vmatprep.subr.mxu0 0.0
    %3553 = vmatpush1.msra.mxu0 0.0
    %3554 = vmatprep.subr.mxu0 0.0
    %3555 = vmatpush1.msra.mxu0 0.0
    %3556 = vmatprep.subr.mxu0 0.0
    %3557 = vmatpush1.msra.mxu0 0.0
    %3558 = vmatprep.subr.mxu0 0.0
    %3559 = vmatpush1.msra.mxu0 0.0
    %3560 = vmatprep.subr.mxu0 0.0
    %3561 = vmatpush1.msra.mxu0 0.0
    %3562 = vmatprep.subr.mxu0 0.0
    %3563 = vmatpush1.msra.mxu0 0.0
    %3564 = vmatprep.subr.mxu0 0.0
    %3565 = vmatpush1.msra.mxu0 0.0
    %3566 = vmatprep.subr.mxu0 0.0
    %3567 = vmatpush1.msra.mxu0 0.0
    %3568 = vmatprep.subr.mxu0 0.0
    %3569 = vmatpush1.msra.mxu0 0.0
    %3570 = vmatprep.subr.mxu0 0.0
    %3571 = vmatpush1.msra.mxu0 0.0
    %3572 = vmatprep.subr.mxu0 0.0
    %3573 = vmatpush1.msra.mxu0 0.0
    %3574 = vmatprep.subr.mxu0 0.0
    %3575 = vmatpush1.msra.mxu0 0.0
    %3576 = vmatprep.subr.mxu0 0.0
    %3577 = vmatpush1.msra.mxu0 0.0
    %3578 = vmatprep.subr.mxu0 0.0
    %3579 = vmatpush1.msra.mxu0 0.0
    %3580 = vmatprep.subr.mxu0 0.0
    %3581 = vmatpush1.msra.mxu0 0.0
    %3582 = vmatprep.subr.mxu0 0.0
    %3583 = vmatpush1.msra.mxu0 0.0
    %3584 = vmatprep.subr.mxu0 0.0
    %3585 = vmatpush1.msra.mxu0 0.0
    %3586 = vmatprep.subr.mxu0 0.0
    %3587 = vmatpush1.msra.mxu0 0.0
    %3588 = vmatprep.subr.mxu0 0.0
    %3589 = vmatpush1.msra.mxu0 0.0
    %3590 = vmatprep.subr.mxu0 0.0
    %3591 = vmatpush1.msra.mxu0 0.0
    %3592 = vmatprep.mubr.f32.mxu0 0.0
    %3593 = vmatmul.mubr.f32.gmra.mrb[0].mxu0 %v3505
    %v3594 = vpop.f32.mrb[0].mxu0
    %v3595 = vadd.f32 0.0, %v3594
    %v3596 = vpop.f32.mrb[0].mxu0
    %3597 = vmatprep.mubr.f32.mxu0 0.0
    %3598 = vmatmul.mubr.f32.gmra.mrb[0].mxu0 %v3508
    %v3599 = vpop.f32.mrb[0].mxu0
    %v3600 = vadd.f32 0.0, %v3599
    %v3601 = vpop.f32.mrb[0].mxu0
    %3602 = vmatprep.mubr.f32.mxu0 0.0
    %3603 = vmatmul.mubr.f32.gmra.mrb[0].mxu0 %v3511
    %v3604 = vpop.f32.mrb[0].mxu0
    %v3605 = vadd.f32 0.0, %v3604
    %v3606 = vpop.f32.mrb[0].mxu0
    %3607 = vmatprep.mubr.f32.mxu0 0.0
    %3608 = vmatmul.mubr.f32.gmra.mrb[0].mxu0 %v3514
    %v3609 = vpop.f32.mrb[0].mxu0
    %v3610 = vadd.f32 0.0, %v3609
    %v3611 = vpop.f32.mrb[0].mxu0
    %3612 = vmatprep.mubr.f32.mxu0 0.0
    %3613 = vmatmul.mubr.f32.gmra.mrb[0].mxu0 %v3517
    %v3614 = vpop.f32.mrb[0].mxu0
    %v3615 = vadd.f32 0.0, %v3614
    %v3616 = vpop.f32.mrb[0].mxu0
    %3617 = vmatprep.mubr.f32.mxu0 0.0
    %3618 = vmatmul.mubr.f32.gmra.mrb[0].mxu0 %v3520
    %v3619 = vpop.f32.mrb[0].mxu0
    %v3620 = vadd.f32 0.0, %v3619
    %v3621 = vpop.f32.mrb[0].mxu0
    %3622 = vmatprep.mubr.f32.mxu0 0.0
    %3623 = vmatmul.mubr.f32.gmra.mrb[0].mxu0 %v3523
    %v3624 = vpop.f32.mrb[0].mxu0
    %v3625 = vadd.f32 0.0, %v3624
    %v3626 = vpop.f32.mrb[0].mxu0
    %3627 = vmatprep.mubr.f32.mxu0 0.0
    %3628 = vmatmul.mubr.f32.gmra.mrb[0].mxu0 %v3526
    %v3629 = vpop.f32.mrb[0].mxu0
    %v3630 = vadd.f32 0.0, %v3629
    %v3631 = vpop.f32.mrb[0].mxu0
    %3632 = vdwg.mxu0
    %v3634 = vsel %vm578, %v2089, 0
    %v3637 = vsel %vm578, %v2090, 0
    %v3640 = vsel %vm578, %v2091, 0
    %v3643 = vsel %vm578, %v2092, 0
    %v3646 = vsel %vm578, %v2093, 0
    %v3649 = vsel %vm578, %v2094, 0
    %v3652 = vsel %vm578, %v2095, 0
    %v3655 = vsel %vm578, %v2096, 0
    %3657 = vmatprep.subr.mxu0 0.0
    %3658 = vmatpush1.msra.mxu0 %v3467
    %3659 = vmatprep.subr.mxu0 0.0
    %3660 = vmatpush1.msra.mxu0 %v3468
    %3661 = vmatprep.subr.mxu0 0.0
    %3662 = vmatpush1.msra.mxu0 %v3469
    %3663 = vmatprep.subr.mxu0 0.0
    %3664 = vmatpush1.msra.mxu0 %v3470
    %3665 = vmatprep.subr.mxu0 0.0
    %3666 = vmatpush1.msra.mxu0 %v3471
    %3667 = vmatprep.subr.mxu0 0.0
    %3668 = vmatpush1.msra.mxu0 %v3472
    %3669 = vmatprep.subr.mxu0 0.0
    %3670 = vmatpush1.msra.mxu0 %v3473
    %3671 = vmatprep.subr.mxu0 0.0
    %3672 = vmatpush1.msra.mxu0 %v3474
    %3673 = vmatprep.subr.mxu0 0.0
    %3674 = vmatpush1.msra.mxu0 0.0
    %3675 = vmatprep.subr.mxu0 0.0
    %3676 = vmatpush1.msra.mxu0 0.0
    %3677 = vmatprep.subr.mxu0 0.0
    %3678 = vmatpush1.msra.mxu0 0.0
    %3679 = vmatprep.subr.mxu0 0.0
    %3680 = vmatpush1.msra.mxu0 0.0
    %3681 = vmatprep.subr.mxu0 0.0
    %3682 = vmatpush1.msra.mxu0 0.0
    %3683 = vmatprep.subr.mxu0 0.0
    %3684 = vmatpush1.msra.mxu0 0.0
    %3685 = vmatprep.subr.mxu0 0.0
    %3686 = vmatpush1.msra.mxu0 0.0
    %3687 = vmatprep.subr.mxu0 0.0
    %3688 = vmatpush1.msra.mxu0 0.0
    %3689 = vmatprep.subr.mxu0 0.0
    %3690 = vmatpush1.msra.mxu0 0.0
    %3691 = vmatprep.subr.mxu0 0.0
    %3692 = vmatpush1.msra.mxu0 0.0
    %3693 = vmatprep.subr.mxu0 0.0
    %3694 = vmatpush1.msra.mxu0 0.0
    %3695 = vmatprep.subr.mxu0 0.0
    %3696 = vmatpush1.msra.mxu0 0.0
    %3697 = vmatprep.subr.mxu0 0.0
    %3698 = vmatpush1.msra.mxu0 0.0
    %3699 = vmatprep.subr.mxu0 0.0
    %3700 = vmatpush1.msra.mxu0 0.0
    %3701 = vmatprep.subr.mxu0 0.0
    %3702 = vmatpush1.msra.mxu0 0.0
    %3703 = vmatprep.subr.mxu0 0.0
    %3704 = vmatpush1.msra.mxu0 0.0
    %3705 = vmatprep.subr.mxu0 0.0
    %3706 = vmatpush1.msra.mxu0 0.0
    %3707 = vmatprep.subr.mxu0 0.0
    %3708 = vmatpush1.msra.mxu0 0.0
    %3709 = vmatprep.subr.mxu0 0.0
    %3710 = vmatpush1.msra.mxu0 0.0
    %3711 = vmatprep.subr.mxu0 0.0
    %3712 = vmatpush1.msra.mxu0 0.0
    %3713 = vmatprep.subr.mxu0 0.0
    %3714 = vmatpush1.msra.mxu0 0.0
    %3715 = vmatprep.subr.mxu0 0.0
    %3716 = vmatpush1.msra.mxu0 0.0
    %3717 = vmatprep.subr.mxu0 0.0
    %3718 = vmatpush1.msra.mxu0 0.0
    %3719 = vmatprep.subr.mxu0 0.0
    %3720 = vmatpush1.msra.mxu0 0.0
    %3721 = vmatprep.mubr.f32.mxu0 0.0
    %3722 = vmatmul.mubr.f32.gmra.mrb[0].mxu0 %v3634
    %v3723 = vpop.f32.mrb[0].mxu0
    %v3724 = vadd.f32 %v3595, %v3723
    %v3725 = vpop.f32.mrb[0].mxu0
    %3726 = vmatprep.mubr.f32.mxu0 0.0
    %3727 = vmatmul.mubr.f32.gmra.mrb[0].mxu0 %v3637
    %v3728 = vpop.f32.mrb[0].mxu0
    %v3729 = vadd.f32 %v3600, %v3728
    %v3730 = vpop.f32.mrb[0].mxu0
    %3731 = vmatprep.mubr.f32.mxu0 0.0
    %3732 = vmatmul.mubr.f32.gmra.mrb[0].mxu0 %v3640
    %v3733 = vpop.f32.mrb[0].mxu0
    %v3734 = vadd.f32 %v3605, %v3733
    %v3735 = vpop.f32.mrb[0].mxu0
    %3736 = vmatprep.mubr.f32.mxu0 0.0
    %3737 = vmatmul.mubr.f32.gmra.mrb[0].mxu0 %v3643
    %v3738 = vpop.f32.mrb[0].mxu0
    %v3739 = vadd.f32 %v3610, %v3738
    %v3740 = vpop.f32.mrb[0].mxu0
    %3741 = vmatprep.mubr.f32.mxu0 0.0
    %3742 = vmatmul.mubr.f32.gmra.mrb[0].mxu0 %v3646
    %v3743 = vpop.f32.mrb[0].mxu0
    %v3744 = vadd.f32 %v3615, %v3743
    %v3745 = vpop.f32.mrb[0].mxu0
    %3746 = vmatprep.mubr.f32.mxu0 0.0
    %3747 = vmatmul.mubr.f32.gmra.mrb[0].mxu0 %v3649
    %v3748 = vpop.f32.mrb[0].mxu0
    %v3749 = vadd.f32 %v3620, %v3748
    %v3750 = vpop.f32.mrb[0].mxu0
    %3751 = vmatprep.mubr.f32.mxu0 0.0
    %3752 = vmatmul.mubr.f32.gmra.mrb[0].mxu0 %v3652
    %v3753 = vpop.f32.mrb[0].mxu0
    %v3754 = vadd.f32 %v3625, %v3753
    %v3755 = vpop.f32.mrb[0].mxu0
    %3756 = vmatprep.mubr.f32.mxu0 0.0
    %3757 = vmatmul.mubr.f32.gmra.mrb[0].mxu0 %v3655
    %v3758 = vpop.f32.mrb[0].mxu0
    %v3759 = vadd.f32 %v3630, %v3758
    %v3760 = vpop.f32.mrb[0].mxu0
    %3761 = vdwg.mxu0
    %v3763 = vlaneseq
    %v3764 = vshrl.u32 %v3763, 7
    %v3765 = vsub.s32 0, %v3764
    %v3766 = vrot.slane %v3483, %v3765
    %v3768 = vadd.f32 %v3724, %v3766
    %v3769 = vadd.f32 %v3729, %v3766
    %v3770 = vadd.f32 %v3734, %v3766
    %v3771 = vadd.f32 %v3739, %v3766
    %v3772 = vadd.f32 %v3744, %v3766
    %v3773 = vadd.f32 %v3749, %v3766
    %v3774 = vadd.f32 %v3754, %v3766
    %v3775 = vadd.f32 %v3759, %v3766
    %3784 = vrot.lane.b32.xlu0 %v3724, 64
    %v3785 = vpop.permute.xlu0 %3784
    %3786 = vrot.lane.b32.xlu0 %v3729, 64
    %v3787 = vpop.permute.xlu0 %3786
    %3788 = vrot.lane.b32.xlu0 %v3734, 64
    %v3789 = vpop.permute.xlu0 %3788
    %3790 = vrot.lane.b32.xlu0 %v3739, 64
    %v3791 = vpop.permute.xlu0 %3790
    %3792 = vrot.lane.b32.xlu0 %v3744, 64
    %v3793 = vpop.permute.xlu0 %3792
    %3794 = vrot.lane.b32.xlu0 %v3749, 64
    %v3795 = vpop.permute.xlu0 %3794
    %3796 = vrot.lane.b32.xlu0 %v3754, 64
    %v3797 = vpop.permute.xlu0 %3796
    %3798 = vrot.lane.b32.xlu0 %v3759, 64
    %v3799 = vpop.permute.xlu0 %3798
    %v3808 = vrot.slane %v3785, 6
    %v3809 = vrot.slane %v3787, 6
    %v3810 = vrot.slane %v3789, 6
    %v3811 = vrot.slane %v3791, 6
    %v3812 = vrot.slane %v3793, 6
    %v3813 = vrot.slane %v3795, 6
    %v3814 = vrot.slane %v3797, 6
    %v3815 = vrot.slane %v3799, 6
    %v3816 = vsel %vm764, %v3814, %v3815
    %v3817 = vsel %vm764, %v3813, %v3814
    %v3818 = vsel %vm764, %v3812, %v3813
    %v3819 = vsel %vm764, %v3811, %v3812
    %v3820 = vsel %vm764, %v3810, %v3811
    %v3821 = vsel %vm764, %v3809, %v3810
    %v3822 = vsel %vm764, %v3808, %v3809
    %v3823 = vsel %vm764, %v3815, %v3808
    %v3824 = vadd.f32 %v3768, %v3823
    %v3825 = vadd.f32 %v3769, %v3822
    %v3826 = vadd.f32 %v3770, %v3821
    %v3827 = vadd.f32 %v3771, %v3820
    %v3828 = vadd.f32 %v3772, %v3819
    %v3829 = vadd.f32 %v3773, %v3818
    %v3830 = vadd.f32 %v3774, %v3817
    %v3831 = vadd.f32 %v3775, %v3816
    %v3832 = vmax.f32 %v3824, 0.0
    %v3833 = vmax.f32 %v3825, 0.0
    %v3834 = vmax.f32 %v3826, 0.0
    %v3835 = vmax.f32 %v3827, 0.0
    %v3836 = vmax.f32 %v3828, 0.0
    %v3837 = vmax.f32 %v3829, 0.0
    %v3838 = vmax.f32 %v3830, 0.0
    %v3839 = vmax.f32 %v3831, 0.0
    %v3841 = vlaneseq
    %v3842 = vshrl.u32 %v3841, 7
    %v3843 = vsub.s32 0, %v3842
    %v3844 = vrot.slane %v3492, %v3843
    %v3847 = vsel %vm578, %v3832, 0
    %v3850 = vsel %vm578, %v3833, 0
    %v3853 = vsel %vm578, %v3834, 0
    %v3856 = vsel %vm578, %v3835, 0
    %v3859 = vsel %vm578, %v3836, 0
    %v3862 = vsel %vm578, %v3837, 0
    %v3865 = vsel %vm578, %v3838, 0
    %v3868 = vsel %vm578, %v3839, 0
    %3870 = vmatprep.subr.mxu0 0.0
    %3871 = vmatpush1.msra.mxu0 %v3484
    %3872 = vmatprep.subr.mxu0 0.0
    %3873 = vmatpush1.msra.mxu0 %v3485
    %3874 = vmatprep.subr.mxu0 0.0
    %3875 = vmatpush1.msra.mxu0 %v3486
    %3876 = vmatprep.subr.mxu0 0.0
    %3877 = vmatpush1.msra.mxu0 %v3487
    %3878 = vmatprep.subr.mxu0 0.0
    %3879 = vmatpush1.msra.mxu0 %v3488
    %3880 = vmatprep.subr.mxu0 0.0
    %3881 = vmatpush1.msra.mxu0 %v3489
    %3882 = vmatprep.subr.mxu0 0.0
    %3883 = vmatpush1.msra.mxu0 %v3490
    %3884 = vmatprep.subr.mxu0 0.0
    %3885 = vmatpush1.msra.mxu0 %v3491
    %3886 = vmatprep.subr.mxu0 0.0
    %3887 = vmatpush1.msra.mxu0 0.0
    %3888 = vmatprep.subr.mxu0 0.0
    %3889 = vmatpush1.msra.mxu0 0.0
    %3890 = vmatprep.subr.mxu0 0.0
    %3891 = vmatpush1.msra.mxu0 0.0
    %3892 = vmatprep.subr.mxu0 0.0
    %3893 = vmatpush1.msra.mxu0 0.0
    %3894 = vmatprep.subr.mxu0 0.0
    %3895 = vmatpush1.msra.mxu0 0.0
    %3896 = vmatprep.subr.mxu0 0.0
    %3897 = vmatpush1.msra.mxu0 0.0
    %3898 = vmatprep.subr.mxu0 0.0
    %3899 = vmatpush1.msra.mxu0 0.0
    %3900 = vmatprep.subr.mxu0 0.0
    %3901 = vmatpush1.msra.mxu0 0.0
    %3902 = vmatprep.subr.mxu0 0.0
    %3903 = vmatpush1.msra.mxu0 0.0
    %3904 = vmatprep.subr.mxu0 0.0
    %3905 = vmatpush1.msra.mxu0 0.0
    %3906 = vmatprep.subr.mxu0 0.0
    %3907 = vmatpush1.msra.mxu0 0.0
    %3908 = vmatprep.subr.mxu0 0.0
    %3909 = vmatpush1.msra.mxu0 0.0
    %3910 = vmatprep.subr.mxu0 0.0
    %3911 = vmatpush1.msra.mxu0 0.0
    %3912 = vmatprep.subr.mxu0 0.0
    %3913 = vmatpush1.msra.mxu0 0.0
    %3914 = vmatprep.subr.mxu0 0.0
    %3915 = vmatpush1.msra.mxu0 0.0
    %3916 = vmatprep.subr.mxu0 0.0
    %3917 = vmatpush1.msra.mxu0 0.0
    %3918 = vmatprep.subr.mxu0 0.0
    %3919 = vmatpush1.msra.mxu0 0.0
    %3920 = vmatprep.subr.mxu0 0.0
    %3921 = vmatpush1.msra.mxu0 0.0
    %3922 = vmatprep.subr.mxu0 0.0
    %3923 = vmatpush1.msra.mxu0 0.0
    %3924 = vmatprep.subr.mxu0 0.0
    %3925 = vmatpush1.msra.mxu0 0.0
    %3926 = vmatprep.subr.mxu0 0.0
    %3927 = vmatpush1.msra.mxu0 0.0
    %3928 = vmatprep.subr.mxu0 0.0
    %3929 = vmatpush1.msra.mxu0 0.0
    %3930 = vmatprep.subr.mxu0 0.0
    %3931 = vmatpush1.msra.mxu0 0.0
    %3932 = vmatprep.subr.mxu0 0.0
    %3933 = vmatpush1.msra.mxu0 0.0
    %3934 = vmatprep.mubr.f32.mxu0 0.0
    %3935 = vmatmul.mubr.f32.gmra.mrb[0].mxu0 %v3847
    %v3936 = vpop.f32.mrb[0].mxu0
    %v3937 = vadd.f32 %v3844, %v3936
    %v3938 = vpop.f32.mrb[0].mxu0
    %3939 = vmatprep.mubr.f32.mxu0 0.0
    %3940 = vmatmul.mubr.f32.gmra.mrb[0].mxu0 %v3850
    %v3941 = vpop.f32.mrb[0].mxu0
    %v3942 = vadd.f32 %v3844, %v3941
    %v3943 = vpop.f32.mrb[0].mxu0
    %3944 = vmatprep.mubr.f32.mxu0 0.0
    %3945 = vmatmul.mubr.f32.gmra.mrb[0].mxu0 %v3853
    %v3946 = vpop.f32.mrb[0].mxu0
    %v3947 = vadd.f32 %v3844, %v3946
    %v3948 = vpop.f32.mrb[0].mxu0
    %3949 = vmatprep.mubr.f32.mxu0 0.0
    %3950 = vmatmul.mubr.f32.gmra.mrb[0].mxu0 %v3856
    %v3951 = vpop.f32.mrb[0].mxu0
    %v3952 = vadd.f32 %v3844, %v3951
    %v3953 = vpop.f32.mrb[0].mxu0
    %3954 = vmatprep.mubr.f32.mxu0 0.0
    %3955 = vmatmul.mubr.f32.gmra.mrb[0].mxu0 %v3859
    %v3956 = vpop.f32.mrb[0].mxu0
    %v3957 = vadd.f32 %v3844, %v3956
    %v3958 = vpop.f32.mrb[0].mxu0
    %3959 = vmatprep.mubr.f32.mxu0 0.0
    %3960 = vmatmul.mubr.f32.gmra.mrb[0].mxu0 %v3862
    %v3961 = vpop.f32.mrb[0].mxu0
    %v3962 = vadd.f32 %v3844, %v3961
    %v3963 = vpop.f32.mrb[0].mxu0
    %3964 = vmatprep.mubr.f32.mxu0 0.0
    %3965 = vmatmul.mubr.f32.gmra.mrb[0].mxu0 %v3865
    %v3966 = vpop.f32.mrb[0].mxu0
    %v3967 = vadd.f32 %v3844, %v3966
    %v3968 = vpop.f32.mrb[0].mxu0
    %3969 = vmatprep.mubr.f32.mxu0 0.0
    %3970 = vmatmul.mubr.f32.gmra.mrb[0].mxu0 %v3868
    %v3971 = vpop.f32.mrb[0].mxu0
    %v3972 = vadd.f32 %v3844, %v3971
    %v3973 = vpop.f32.mrb[0].mxu0
    %3974 = vdwg.mxu0
    %v3975 = vmax.f32 %v3937, 0.0
    %v3976 = vmax.f32 %v3942, 0.0
    %v3977 = vmax.f32 %v3947, 0.0
    %v3978 = vmax.f32 %v3952, 0.0
    %v3979 = vmax.f32 %v3957, 0.0
    %v3980 = vmax.f32 %v3962, 0.0
    %v3981 = vmax.f32 %v3967, 0.0
    %v3982 = vmax.f32 %v3972, 0.0
    %v3984 = vlaneseq
    %v3985 = vshrl.u32 %v3984, 7
    %v3986 = vsub.s32 0, %v3985
    %v3987 = vrot.slane %v3501, %v3986
    %v3990 = vsel %vm578, %v3975, 0
    %v3993 = vsel %vm578, %v3976, 0
    %v3996 = vsel %vm578, %v3977, 0
    %v3999 = vsel %vm578, %v3978, 0
    %v4002 = vsel %vm578, %v3979, 0
    %v4005 = vsel %vm578, %v3980, 0
    %v4008 = vsel %vm578, %v3981, 0
    %v4011 = vsel %vm578, %v3982, 0
    %4013 = vmatprep.subr.mxu0 0.0
    %4014 = vmatpush1.msra.mxu0 %v3493
    %4015 = vmatprep.subr.mxu0 0.0
    %4016 = vmatpush1.msra.mxu0 %v3494
    %4017 = vmatprep.subr.mxu0 0.0
    %4018 = vmatpush1.msra.mxu0 %v3495
    %4019 = vmatprep.subr.mxu0 0.0
    %4020 = vmatpush1.msra.mxu0 %v3496
    %4021 = vmatprep.subr.mxu0 0.0
    %4022 = vmatpush1.msra.mxu0 %v3497
    %4023 = vmatprep.subr.mxu0 0.0
    %4024 = vmatpush1.msra.mxu0 %v3498
    %4025 = vmatprep.subr.mxu0 0.0
    %4026 = vmatpush1.msra.mxu0 %v3499
    %4027 = vmatprep.subr.mxu0 0.0
    %4028 = vmatpush1.msra.mxu0 %v3500
    %4029 = vmatprep.subr.mxu0 0.0
    %4030 = vmatpush1.msra.mxu0 0.0
    %4031 = vmatprep.subr.mxu0 0.0
    %4032 = vmatpush1.msra.mxu0 0.0
    %4033 = vmatprep.subr.mxu0 0.0
    %4034 = vmatpush1.msra.mxu0 0.0
    %4035 = vmatprep.subr.mxu0 0.0
    %4036 = vmatpush1.msra.mxu0 0.0
    %4037 = vmatprep.subr.mxu0 0.0
    %4038 = vmatpush1.msra.mxu0 0.0
    %4039 = vmatprep.subr.mxu0 0.0
    %4040 = vmatpush1.msra.mxu0 0.0
    %4041 = vmatprep.subr.mxu0 0.0
    %4042 = vmatpush1.msra.mxu0 0.0
    %4043 = vmatprep.subr.mxu0 0.0
    %4044 = vmatpush1.msra.mxu0 0.0
    %4045 = vmatprep.subr.mxu0 0.0
    %4046 = vmatpush1.msra.mxu0 0.0
    %4047 = vmatprep.subr.mxu0 0.0
    %4048 = vmatpush1.msra.mxu0 0.0
    %4049 = vmatprep.subr.mxu0 0.0
    %4050 = vmatpush1.msra.mxu0 0.0
    %4051 = vmatprep.subr.mxu0 0.0
    %4052 = vmatpush1.msra.mxu0 0.0
    %4053 = vmatprep.subr.mxu0 0.0
    %4054 = vmatpush1.msra.mxu0 0.0
    %4055 = vmatprep.subr.mxu0 0.0
    %4056 = vmatpush1.msra.mxu0 0.0
    %4057 = vmatprep.subr.mxu0 0.0
    %4058 = vmatpush1.msra.mxu0 0.0
    %4059 = vmatprep.subr.mxu0 0.0
    %4060 = vmatpush1.msra.mxu0 0.0
    %4061 = vmatprep.subr.mxu0 0.0
    %4062 = vmatpush1.msra.mxu0 0.0
    %4063 = vmatprep.subr.mxu0 0.0
    %4064 = vmatpush1.msra.mxu0 0.0
    %4065 = vmatprep.subr.mxu0 0.0
    %4066 = vmatpush1.msra.mxu0 0.0
    %4067 = vmatprep.subr.mxu0 0.0
    %4068 = vmatpush1.msra.mxu0 0.0
    %4069 = vmatprep.subr.mxu0 0.0
    %4070 = vmatpush1.msra.mxu0 0.0
    %4071 = vmatprep.subr.mxu0 0.0
    %4072 = vmatpush1.msra.mxu0 0.0
    %4073 = vmatprep.subr.mxu0 0.0
    %4074 = vmatpush1.msra.mxu0 0.0
    %4075 = vmatprep.subr.mxu0 0.0
    %4076 = vmatpush1.msra.mxu0 0.0
    %4077 = vmatprep.mubr.f32.mxu0 0.0
    %4078 = vmatmul.mubr.f32.gmra.mrb[0].mxu0 %v3990
    %v4079 = vpop.f32.mrb[0].mxu0
    %v4080 = vadd.f32 %v3987, %v4079
    %v4081 = vpop.f32.mrb[0].mxu0
    %4082 = vmatprep.mubr.f32.mxu0 0.0
    %4083 = vmatmul.mubr.f32.gmra.mrb[0].mxu0 %v3993
    %v4084 = vpop.f32.mrb[0].mxu0
    %v4085 = vadd.f32 %v3987, %v4084
    %v4086 = vpop.f32.mrb[0].mxu0
    %4087 = vmatprep.mubr.f32.mxu0 0.0
    %4088 = vmatmul.mubr.f32.gmra.mrb[0].mxu0 %v3996
    %v4089 = vpop.f32.mrb[0].mxu0
    %v4090 = vadd.f32 %v3987, %v4089
    %v4091 = vpop.f32.mrb[0].mxu0
    %4092 = vmatprep.mubr.f32.mxu0 0.0
    %4093 = vmatmul.mubr.f32.gmra.mrb[0].mxu0 %v3999
    %v4094 = vpop.f32.mrb[0].mxu0
    %v4095 = vadd.f32 %v3987, %v4094
    %v4096 = vpop.f32.mrb[0].mxu0
    %4097 = vmatprep.mubr.f32.mxu0 0.0
    %4098 = vmatmul.mubr.f32.gmra.mrb[0].mxu0 %v4002
    %v4099 = vpop.f32.mrb[0].mxu0
    %v4100 = vadd.f32 %v3987, %v4099
    %v4101 = vpop.f32.mrb[0].mxu0
    %4102 = vmatprep.mubr.f32.mxu0 0.0
    %4103 = vmatmul.mubr.f32.gmra.mrb[0].mxu0 %v4005
    %v4104 = vpop.f32.mrb[0].mxu0
    %v4105 = vadd.f32 %v3987, %v4104
    %v4106 = vpop.f32.mrb[0].mxu0
    %4107 = vmatprep.mubr.f32.mxu0 0.0
    %4108 = vmatmul.mubr.f32.gmra.mrb[0].mxu0 %v4008
    %v4109 = vpop.f32.mrb[0].mxu0
    %v4110 = vadd.f32 %v3987, %v4109
    %v4111 = vpop.f32.mrb[0].mxu0
    %4112 = vmatprep.mubr.f32.mxu0 0.0
    %4113 = vmatmul.mubr.f32.gmra.mrb[0].mxu0 %v4011
    %v4114 = vpop.f32.mrb[0].mxu0
    %v4115 = vadd.f32 %v3987, %v4114
    %v4116 = vpop.f32.mrb[0].mxu0
    %4117 = vdwg.mxu0
    %v4118 = vrot.slane %v3785, 7
    %v4119 = vrot.slane %v3787, 7
    %v4120 = vrot.slane %v3789, 7
    %v4121 = vrot.slane %v3791, 7
    %v4122 = vrot.slane %v3793, 7
    %v4123 = vrot.slane %v3795, 7
    %v4124 = vrot.slane %v3797, 7
    %v4125 = vrot.slane %v3799, 7
    %v4126 = vsel %vm1075, %v4124, %v4125
    %v4127 = vsel %vm1075, %v4123, %v4124
    %v4128 = vsel %vm1075, %v4122, %v4123
    %v4129 = vsel %vm1075, %v4121, %v4122
    %v4130 = vsel %vm1075, %v4120, %v4121
    %v4131 = vsel %vm1075, %v4119, %v4120
    %v4132 = vsel %vm1075, %v4118, %v4119
    %v4133 = vsel %vm1075, %v4125, %v4118
    %v4134 = vadd.f32 %v3768, %v4133
    %v4135 = vadd.f32 %v3769, %v4132
    %v4136 = vadd.f32 %v3770, %v4131
    %v4137 = vadd.f32 %v3771, %v4130
    %v4138 = vadd.f32 %v3772, %v4129
    %v4139 = vadd.f32 %v3773, %v4128
    %v4140 = vadd.f32 %v3774, %v4127
    %v4141 = vadd.f32 %v3775, %v4126
    %v4142 = vmax.f32 %v4134, 0.0
    %v4143 = vmax.f32 %v4135, 0.0
    %v4144 = vmax.f32 %v4136, 0.0
    %v4145 = vmax.f32 %v4137, 0.0
    %v4146 = vmax.f32 %v4138, 0.0
    %v4147 = vmax.f32 %v4139, 0.0
    %v4148 = vmax.f32 %v4140, 0.0
    %v4149 = vmax.f32 %v4141, 0.0
    %v4151 = vsel %vm578, %v4142, 0
    %v4154 = vsel %vm578, %v4143, 0
    %v4157 = vsel %vm578, %v4144, 0
    %v4160 = vsel %vm578, %v4145, 0
    %v4163 = vsel %vm578, %v4146, 0
    %v4166 = vsel %vm578, %v4147, 0
    %v4169 = vsel %vm578, %v4148, 0
    %v4172 = vsel %vm578, %v4149, 0
    %4174 = vmatprep.subr.mxu0 0.0
    %4175 = vmatpush1.msra.mxu0 %v3484
    %4176 = vmatprep.subr.mxu0 0.0
    %4177 = vmatpush1.msra.mxu0 %v3485
    %4178 = vmatprep.subr.mxu0 0.0
    %4179 = vmatpush1.msra.mxu0 %v3486
    %4180 = vmatprep.subr.mxu0 0.0
    %4181 = vmatpush1.msra.mxu0 %v3487
    %4182 = vmatprep.subr.mxu0 0.0
    %4183 = vmatpush1.msra.mxu0 %v3488
    %4184 = vmatprep.subr.mxu0 0.0
    %4185 = vmatpush1.msra.mxu0 %v3489
    %4186 = vmatprep.subr.mxu0 0.0
    %4187 = vmatpush1.msra.mxu0 %v3490
    %4188 = vmatprep.subr.mxu0 0.0
    %4189 = vmatpush1.msra.mxu0 %v3491
    %4190 = vmatprep.subr.mxu0 0.0
    %4191 = vmatpush1.msra.mxu0 0.0
    %4192 = vmatprep.subr.mxu0 0.0
    %4193 = vmatpush1.msra.mxu0 0.0
    %4194 = vmatprep.subr.mxu0 0.0
    %4195 = vmatpush1.msra.mxu0 0.0
    %4196 = vmatprep.subr.mxu0 0.0
    %4197 = vmatpush1.msra.mxu0 0.0
    %4198 = vmatprep.subr.mxu0 0.0
    %4199 = vmatpush1.msra.mxu0 0.0
    %4200 = vmatprep.subr.mxu0 0.0
    %4201 = vmatpush1.msra.mxu0 0.0
    %4202 = vmatprep.subr.mxu0 0.0
    %4203 = vmatpush1.msra.mxu0 0.0
    %4204 = vmatprep.subr.mxu0 0.0
    %4205 = vmatpush1.msra.mxu0 0.0
    %4206 = vmatprep.subr.mxu0 0.0
    %4207 = vmatpush1.msra.mxu0 0.0
    %4208 = vmatprep.subr.mxu0 0.0
    %4209 = vmatpush1.msra.mxu0 0.0
    %4210 = vmatprep.subr.mxu0 0.0
    %4211 = vmatpush1.msra.mxu0 0.0
    %4212 = vmatprep.subr.mxu0 0.0
    %4213 = vmatpush1.msra.mxu0 0.0
    %4214 = vmatprep.subr.mxu0 0.0
    %4215 = vmatpush1.msra.mxu0 0.0
    %4216 = vmatprep.subr.mxu0 0.0
    %4217 = vmatpush1.msra.mxu0 0.0
    %4218 = vmatprep.subr.mxu0 0.0
    %4219 = vmatpush1.msra.mxu0 0.0
    %4220 = vmatprep.subr.mxu0 0.0
    %4221 = vmatpush1.msra.mxu0 0.0
    %4222 = vmatprep.subr.mxu0 0.0
    %4223 = vmatpush1.msra.mxu0 0.0
    %4224 = vmatprep.subr.mxu0 0.0
    %4225 = vmatpush1.msra.mxu0 0.0
    %4226 = vmatprep.subr.mxu0 0.0
    %4227 = vmatpush1.msra.mxu0 0.0
    %4228 = vmatprep.subr.mxu0 0.0
    %4229 = vmatpush1.msra.mxu0 0.0
    %4230 = vmatprep.subr.mxu0 0.0
    %4231 = vmatpush1.msra.mxu0 0.0
    %4232 = vmatprep.subr.mxu0 0.0
    %4233 = vmatpush1.msra.mxu0 0.0
    %4234 = vmatprep.subr.mxu0 0.0
    %4235 = vmatpush1.msra.mxu0 0.0
    %4236 = vmatprep.subr.mxu0 0.0
    %4237 = vmatpush1.msra.mxu0 0.0
    %4238 = vmatprep.mubr.f32.mxu0 0.0
    %4239 = vmatmul.mubr.f32.gmra.mrb[0].mxu0 %v4151
    %v4240 = vpop.f32.mrb[0].mxu0
    %v4241 = vadd.f32 %v3844, %v4240
    %v4242 = vpop.f32.mrb[0].mxu0
    %4243 = vmatprep.mubr.f32.mxu0 0.0
    %4244 = vmatmul.mubr.f32.gmra.mrb[0].mxu0 %v4154
    %v4245 = vpop.f32.mrb[0].mxu0
    %v4246 = vadd.f32 %v3844, %v4245
    %v4247 = vpop.f32.mrb[0].mxu0
    %4248 = vmatprep.mubr.f32.mxu0 0.0
    %4249 = vmatmul.mubr.f32.gmra.mrb[0].mxu0 %v4157
    %v4250 = vpop.f32.mrb[0].mxu0
    %v4251 = vadd.f32 %v3844, %v4250
    %v4252 = vpop.f32.mrb[0].mxu0
    %4253 = vmatprep.mubr.f32.mxu0 0.0
    %4254 = vmatmul.mubr.f32.gmra.mrb[0].mxu0 %v4160
    %v4255 = vpop.f32.mrb[0].mxu0
    %v4256 = vadd.f32 %v3844, %v4255
    %v4257 = vpop.f32.mrb[0].mxu0
    %4258 = vmatprep.mubr.f32.mxu0 0.0
    %4259 = vmatmul.mubr.f32.gmra.mrb[0].mxu0 %v4163
    %v4260 = vpop.f32.mrb[0].mxu0
    %v4261 = vadd.f32 %v3844, %v4260
    %v4262 = vpop.f32.mrb[0].mxu0
    %4263 = vmatprep.mubr.f32.mxu0 0.0
    %4264 = vmatmul.mubr.f32.gmra.mrb[0].mxu0 %v4166
    %v4265 = vpop.f32.mrb[0].mxu0
    %v4266 = vadd.f32 %v3844, %v4265
    %v4267 = vpop.f32.mrb[0].mxu0
    %4268 = vmatprep.mubr.f32.mxu0 0.0
    %4269 = vmatmul.mubr.f32.gmra.mrb[0].mxu0 %v4169
    %v4270 = vpop.f32.mrb[0].mxu0
    %v4271 = vadd.f32 %v3844, %v4270
    %v4272 = vpop.f32.mrb[0].mxu0
    %4273 = vmatprep.mubr.f32.mxu0 0.0
    %4274 = vmatmul.mubr.f32.gmra.mrb[0].mxu0 %v4172
    %v4275 = vpop.f32.mrb[0].mxu0
    %v4276 = vadd.f32 %v3844, %v4275
    %v4277 = vpop.f32.mrb[0].mxu0
    %4278 = vdwg.mxu0
    %v4279 = vmax.f32 %v4241, 0.0
    %v4280 = vmax.f32 %v4246, 0.0
    %v4281 = vmax.f32 %v4251, 0.0
    %v4282 = vmax.f32 %v4256, 0.0
    %v4283 = vmax.f32 %v4261, 0.0
    %v4284 = vmax.f32 %v4266, 0.0
    %v4285 = vmax.f32 %v4271, 0.0
    %v4286 = vmax.f32 %v4276, 0.0
    %v4288 = vsel %vm578, %v4279, 0
    %v4291 = vsel %vm578, %v4280, 0
    %v4294 = vsel %vm578, %v4281, 0
    %v4297 = vsel %vm578, %v4282, 0
    %v4300 = vsel %vm578, %v4283, 0
    %v4303 = vsel %vm578, %v4284, 0
    %v4306 = vsel %vm578, %v4285, 0
    %v4309 = vsel %vm578, %v4286, 0
    %4311 = vmatprep.subr.mxu0 0.0
    %4312 = vmatpush1.msra.mxu0 %v3493
    %4313 = vmatprep.subr.mxu0 0.0
    %4314 = vmatpush1.msra.mxu0 %v3494
    %4315 = vmatprep.subr.mxu0 0.0
    %4316 = vmatpush1.msra.mxu0 %v3495
    %4317 = vmatprep.subr.mxu0 0.0
    %4318 = vmatpush1.msra.mxu0 %v3496
    %4319 = vmatprep.subr.mxu0 0.0
    %4320 = vmatpush1.msra.mxu0 %v3497
    %4321 = vmatprep.subr.mxu0 0.0
    %4322 = vmatpush1.msra.mxu0 %v3498
    %4323 = vmatprep.subr.mxu0 0.0
    %4324 = vmatpush1.msra.mxu0 %v3499
    %4325 = vmatprep.subr.mxu0 0.0
    %4326 = vmatpush1.msra.mxu0 %v3500
    %4327 = vmatprep.subr.mxu0 0.0
    %4328 = vmatpush1.msra.mxu0 0.0
    %4329 = vmatprep.subr.mxu0 0.0
    %4330 = vmatpush1.msra.mxu0 0.0
    %4331 = vmatprep.subr.mxu0 0.0
    %4332 = vmatpush1.msra.mxu0 0.0
    %4333 = vmatprep.subr.mxu0 0.0
    %4334 = vmatpush1.msra.mxu0 0.0
    %4335 = vmatprep.subr.mxu0 0.0
    %4336 = vmatpush1.msra.mxu0 0.0
    %4337 = vmatprep.subr.mxu0 0.0
    %4338 = vmatpush1.msra.mxu0 0.0
    %4339 = vmatprep.subr.mxu0 0.0
    %4340 = vmatpush1.msra.mxu0 0.0
    %4341 = vmatprep.subr.mxu0 0.0
    %4342 = vmatpush1.msra.mxu0 0.0
    %4343 = vmatprep.subr.mxu0 0.0
    %4344 = vmatpush1.msra.mxu0 0.0
    %4345 = vmatprep.subr.mxu0 0.0
    %4346 = vmatpush1.msra.mxu0 0.0
    %4347 = vmatprep.subr.mxu0 0.0
    %4348 = vmatpush1.msra.mxu0 0.0
    %4349 = vmatprep.subr.mxu0 0.0
    %4350 = vmatpush1.msra.mxu0 0.0
    %4351 = vmatprep.subr.mxu0 0.0
    %4352 = vmatpush1.msra.mxu0 0.0
    %4353 = vmatprep.subr.mxu0 0.0
    %4354 = vmatpush1.msra.mxu0 0.0
    %4355 = vmatprep.subr.mxu0 0.0
    %4356 = vmatpush1.msra.mxu0 0.0
    %4357 = vmatprep.subr.mxu0 0.0
    %4358 = vmatpush1.msra.mxu0 0.0
    %4359 = vmatprep.subr.mxu0 0.0
    %4360 = vmatpush1.msra.mxu0 0.0
    %4361 = vmatprep.subr.mxu0 0.0
    %4362 = vmatpush1.msra.mxu0 0.0
    %4363 = vmatprep.subr.mxu0 0.0
    %4364 = vmatpush1.msra.mxu0 0.0
    %4365 = vmatprep.subr.mxu0 0.0
    %4366 = vmatpush1.msra.mxu0 0.0
    %4367 = vmatprep.subr.mxu0 0.0
    %4368 = vmatpush1.msra.mxu0 0.0
    %4369 = vmatprep.subr.mxu0 0.0
    %4370 = vmatpush1.msra.mxu0 0.0
    %4371 = vmatprep.subr.mxu0 0.0
    %4372 = vmatpush1.msra.mxu0 0.0
    %4373 = vmatprep.subr.mxu0 0.0
    %4374 = vmatpush1.msra.mxu0 0.0
    %4375 = vmatprep.mubr.f32.mxu0 0.0
    %4376 = vmatmul.mubr.f32.gmra.mrb[0].mxu0 %v4288
    %v4377 = vpop.f32.mrb[0].mxu0
    %v4378 = vadd.f32 %v3987, %v4377
    %v4379 = vpop.f32.mrb[0].mxu0
    %4380 = vmatprep.mubr.f32.mxu0 0.0
    %4381 = vmatmul.mubr.f32.gmra.mrb[0].mxu0 %v4291
    %v4382 = vpop.f32.mrb[0].mxu0
    %v4383 = vadd.f32 %v3987, %v4382
    %v4384 = vpop.f32.mrb[0].mxu0
    %4385 = vmatprep.mubr.f32.mxu0 0.0
    %4386 = vmatmul.mubr.f32.gmra.mrb[0].mxu0 %v4294
    %v4387 = vpop.f32.mrb[0].mxu0
    %v4388 = vadd.f32 %v3987, %v4387
    %v4389 = vpop.f32.mrb[0].mxu0
    %4390 = vmatprep.mubr.f32.mxu0 0.0
    %4391 = vmatmul.mubr.f32.gmra.mrb[0].mxu0 %v4297
    %v4392 = vpop.f32.mrb[0].mxu0
    %v4393 = vadd.f32 %v3987, %v4392
    %v4394 = vpop.f32.mrb[0].mxu0
    %4395 = vmatprep.mubr.f32.mxu0 0.0
    %4396 = vmatmul.mubr.f32.gmra.mrb[0].mxu0 %v4300
    %v4397 = vpop.f32.mrb[0].mxu0
    %v4398 = vadd.f32 %v3987, %v4397
    %v4399 = vpop.f32.mrb[0].mxu0
    %4400 = vmatprep.mubr.f32.mxu0 0.0
    %4401 = vmatmul.mubr.f32.gmra.mrb[0].mxu0 %v4303
    %v4402 = vpop.f32.mrb[0].mxu0
    %v4403 = vadd.f32 %v3987, %v4402
    %v4404 = vpop.f32.mrb[0].mxu0
    %4405 = vmatprep.mubr.f32.mxu0 0.0
    %4406 = vmatmul.mubr.f32.gmra.mrb[0].mxu0 %v4306
    %v4407 = vpop.f32.mrb[0].mxu0
    %v4408 = vadd.f32 %v3987, %v4407
    %v4409 = vpop.f32.mrb[0].mxu0
    %4410 = vmatprep.mubr.f32.mxu0 0.0
    %4411 = vmatmul.mubr.f32.gmra.mrb[0].mxu0 %v4309
    %v4412 = vpop.f32.mrb[0].mxu0
    %v4413 = vadd.f32 %v3987, %v4412
    %v4414 = vpop.f32.mrb[0].mxu0
    %4415 = vdwg.mxu0
    %v4416 = vmax.f32 %v4080, %v4378
    %v4417 = vmax.f32 %v4085, %v4383
    %v4418 = vmax.f32 %v4090, %v4388
    %v4419 = vmax.f32 %v4095, %v4393
    %v4420 = vmax.f32 %v4100, %v4398
    %v4421 = vmax.f32 %v4105, %v4403
    %v4422 = vmax.f32 %v4110, %v4408
    %v4423 = vmax.f32 %v4115, %v4413
    %v4424 = vrot.slane %v3785, 1
    %v4425 = vrot.slane %v3787, 1
    %v4426 = vrot.slane %v3789, 1
    %v4427 = vrot.slane %v3791, 1
    %v4428 = vrot.slane %v3793, 1
    %v4429 = vrot.slane %v3795, 1
    %v4430 = vrot.slane %v3797, 1
    %v4431 = vrot.slane %v3799, 1
    %v4432 = vsel %vm1382, %v4430, %v4431
    %v4433 = vsel %vm1382, %v4429, %v4430
    %v4434 = vsel %vm1382, %v4428, %v4429
    %v4435 = vsel %vm1382, %v4427, %v4428
    %v4436 = vsel %vm1382, %v4426, %v4427
    %v4437 = vsel %vm1382, %v4425, %v4426
    %v4438 = vsel %vm1382, %v4424, %v4425
    %v4439 = vsel %vm1382, %v4431, %v4424
    %v4440 = vadd.f32 %v3768, %v4438
    %v4441 = vadd.f32 %v3769, %v4437
    %v4442 = vadd.f32 %v3770, %v4436
    %v4443 = vadd.f32 %v3771, %v4435
    %v4444 = vadd.f32 %v3772, %v4434
    %v4445 = vadd.f32 %v3773, %v4433
    %v4446 = vadd.f32 %v3774, %v4432
    %v4447 = vadd.f32 %v3775, %v4439
    %v4448 = vmax.f32 %v4440, 0.0
    %v4449 = vmax.f32 %v4441, 0.0
    %v4450 = vmax.f32 %v4442, 0.0
    %v4451 = vmax.f32 %v4443, 0.0
    %v4452 = vmax.f32 %v4444, 0.0
    %v4453 = vmax.f32 %v4445, 0.0
    %v4454 = vmax.f32 %v4446, 0.0
    %v4455 = vmax.f32 %v4447, 0.0
    %v4457 = vsel %vm578, %v4448, 0
    %v4460 = vsel %vm578, %v4449, 0
    %v4463 = vsel %vm578, %v4450, 0
    %v4466 = vsel %vm578, %v4451, 0
    %v4469 = vsel %vm578, %v4452, 0
    %v4472 = vsel %vm578, %v4453, 0
    %v4475 = vsel %vm578, %v4454, 0
    %v4478 = vsel %vm578, %v4455, 0
    %4480 = vmatprep.subr.mxu0 0.0
    %4481 = vmatpush1.msra.mxu0 %v3484
    %4482 = vmatprep.subr.mxu0 0.0
    %4483 = vmatpush1.msra.mxu0 %v3485
    %4484 = vmatprep.subr.mxu0 0.0
    %4485 = vmatpush1.msra.mxu0 %v3486
    %4486 = vmatprep.subr.mxu0 0.0
    %4487 = vmatpush1.msra.mxu0 %v3487
    %4488 = vmatprep.subr.mxu0 0.0
    %4489 = vmatpush1.msra.mxu0 %v3488
    %4490 = vmatprep.subr.mxu0 0.0
    %4491 = vmatpush1.msra.mxu0 %v3489
    %4492 = vmatprep.subr.mxu0 0.0
    %4493 = vmatpush1.msra.mxu0 %v3490
    %4494 = vmatprep.subr.mxu0 0.0
    %4495 = vmatpush1.msra.mxu0 %v3491
    %4496 = vmatprep.subr.mxu0 0.0
    %4497 = vmatpush1.msra.mxu0 0.0
    %4498 = vmatprep.subr.mxu0 0.0
    %4499 = vmatpush1.msra.mxu0 0.0
    %4500 = vmatprep.subr.mxu0 0.0
    %4501 = vmatpush1.msra.mxu0 0.0
    %4502 = vmatprep.subr.mxu0 0.0
    %4503 = vmatpush1.msra.mxu0 0.0
    %4504 = vmatprep.subr.mxu0 0.0
    %4505 = vmatpush1.msra.mxu0 0.0
    %4506 = vmatprep.subr.mxu0 0.0
    %4507 = vmatpush1.msra.mxu0 0.0
    %4508 = vmatprep.subr.mxu0 0.0
    %4509 = vmatpush1.msra.mxu0 0.0
    %4510 = vmatprep.subr.mxu0 0.0
    %4511 = vmatpush1.msra.mxu0 0.0
    %4512 = vmatprep.subr.mxu0 0.0
    %4513 = vmatpush1.msra.mxu0 0.0
    %4514 = vmatprep.subr.mxu0 0.0
    %4515 = vmatpush1.msra.mxu0 0.0
    %4516 = vmatprep.subr.mxu0 0.0
    %4517 = vmatpush1.msra.mxu0 0.0
    %4518 = vmatprep.subr.mxu0 0.0
    %4519 = vmatpush1.msra.mxu0 0.0
    %4520 = vmatprep.subr.mxu0 0.0
    %4521 = vmatpush1.msra.mxu0 0.0
    %4522 = vmatprep.subr.mxu0 0.0
    %4523 = vmatpush1.msra.mxu0 0.0
    %4524 = vmatprep.subr.mxu0 0.0
    %4525 = vmatpush1.msra.mxu0 0.0
    %4526 = vmatprep.subr.mxu0 0.0
    %4527 = vmatpush1.msra.mxu0 0.0
    %4528 = vmatprep.subr.mxu0 0.0
    %4529 = vmatpush1.msra.mxu0 0.0
    %4530 = vmatprep.subr.mxu0 0.0
    %4531 = vmatpush1.msra.mxu0 0.0
    %4532 = vmatprep.subr.mxu0 0.0
    %4533 = vmatpush1.msra.mxu0 0.0
    %4534 = vmatprep.subr.mxu0 0.0
    %4535 = vmatpush1.msra.mxu0 0.0
    %4536 = vmatprep.subr.mxu0 0.0
    %4537 = vmatpush1.msra.mxu0 0.0
    %4538 = vmatprep.subr.mxu0 0.0
    %4539 = vmatpush1.msra.mxu0 0.0
    %4540 = vmatprep.subr.mxu0 0.0
    %4541 = vmatpush1.msra.mxu0 0.0
    %4542 = vmatprep.subr.mxu0 0.0
    %4543 = vmatpush1.msra.mxu0 0.0
    %4544 = vmatprep.mubr.f32.mxu0 0.0
    %4545 = vmatmul.mubr.f32.gmra.mrb[0].mxu0 %v4457
    %v4546 = vpop.f32.mrb[0].mxu0
    %v4547 = vadd.f32 %v3844, %v4546
    %v4548 = vpop.f32.mrb[0].mxu0
    %4549 = vmatprep.mubr.f32.mxu0 0.0
    %4550 = vmatmul.mubr.f32.gmra.mrb[0].mxu0 %v4460
    %v4551 = vpop.f32.mrb[0].mxu0
    %v4552 = vadd.f32 %v3844, %v4551
    %v4553 = vpop.f32.mrb[0].mxu0
    %4554 = vmatprep.mubr.f32.mxu0 0.0
    %4555 = vmatmul.mubr.f32.gmra.mrb[0].mxu0 %v4463
    %v4556 = vpop.f32.mrb[0].mxu0
    %v4557 = vadd.f32 %v3844, %v4556
    %v4558 = vpop.f32.mrb[0].mxu0
    %4559 = vmatprep.mubr.f32.mxu0 0.0
    %4560 = vmatmul.mubr.f32.gmra.mrb[0].mxu0 %v4466
    %v4561 = vpop.f32.mrb[0].mxu0
    %v4562 = vadd.f32 %v3844, %v4561
    %v4563 = vpop.f32.mrb[0].mxu0
    %4564 = vmatprep.mubr.f32.mxu0 0.0
    %4565 = vmatmul.mubr.f32.gmra.mrb[0].mxu0 %v4469
    %v4566 = vpop.f32.mrb[0].mxu0
    %v4567 = vadd.f32 %v3844, %v4566
    %v4568 = vpop.f32.mrb[0].mxu0
    %4569 = vmatprep.mubr.f32.mxu0 0.0
    %4570 = vmatmul.mubr.f32.gmra.mrb[0].mxu0 %v4472
    %v4571 = vpop.f32.mrb[0].mxu0
    %v4572 = vadd.f32 %v3844, %v4571
    %v4573 = vpop.f32.mrb[0].mxu0
    %4574 = vmatprep.mubr.f32.mxu0 0.0
    %4575 = vmatmul.mubr.f32.gmra.mrb[0].mxu0 %v4475
    %v4576 = vpop.f32.mrb[0].mxu0
    %v4577 = vadd.f32 %v3844, %v4576
    %v4578 = vpop.f32.mrb[0].mxu0
    %4579 = vmatprep.mubr.f32.mxu0 0.0
    %4580 = vmatmul.mubr.f32.gmra.mrb[0].mxu0 %v4478
    %v4581 = vpop.f32.mrb[0].mxu0
    %v4582 = vadd.f32 %v3844, %v4581
    %v4583 = vpop.f32.mrb[0].mxu0
    %4584 = vdwg.mxu0
    %v4585 = vmax.f32 %v4547, 0.0
    %v4586 = vmax.f32 %v4552, 0.0
    %v4587 = vmax.f32 %v4557, 0.0
    %v4588 = vmax.f32 %v4562, 0.0
    %v4589 = vmax.f32 %v4567, 0.0
    %v4590 = vmax.f32 %v4572, 0.0
    %v4591 = vmax.f32 %v4577, 0.0
    %v4592 = vmax.f32 %v4582, 0.0
    %v4594 = vsel %vm578, %v4585, 0
    %v4597 = vsel %vm578, %v4586, 0
    %v4600 = vsel %vm578, %v4587, 0
    %v4603 = vsel %vm578, %v4588, 0
    %v4606 = vsel %vm578, %v4589, 0
    %v4609 = vsel %vm578, %v4590, 0
    %v4612 = vsel %vm578, %v4591, 0
    %v4615 = vsel %vm578, %v4592, 0
    %4617 = vmatprep.subr.mxu0 0.0
    %4618 = vmatpush1.msra.mxu0 %v3493
    %4619 = vmatprep.subr.mxu0 0.0
    %4620 = vmatpush1.msra.mxu0 %v3494
    %4621 = vmatprep.subr.mxu0 0.0
    %4622 = vmatpush1.msra.mxu0 %v3495
    %4623 = vmatprep.subr.mxu0 0.0
    %4624 = vmatpush1.msra.mxu0 %v3496
    %4625 = vmatprep.subr.mxu0 0.0
    %4626 = vmatpush1.msra.mxu0 %v3497
    %4627 = vmatprep.subr.mxu0 0.0
    %4628 = vmatpush1.msra.mxu0 %v3498
    %4629 = vmatprep.subr.mxu0 0.0
    %4630 = vmatpush1.msra.mxu0 %v3499
    %4631 = vmatprep.subr.mxu0 0.0
    %4632 = vmatpush1.msra.mxu0 %v3500
    %4633 = vmatprep.subr.mxu0 0.0
    %4634 = vmatpush1.msra.mxu0 0.0
    %4635 = vmatprep.subr.mxu0 0.0
    %4636 = vmatpush1.msra.mxu0 0.0
    %4637 = vmatprep.subr.mxu0 0.0
    %4638 = vmatpush1.msra.mxu0 0.0
    %4639 = vmatprep.subr.mxu0 0.0
    %4640 = vmatpush1.msra.mxu0 0.0
    %4641 = vmatprep.subr.mxu0 0.0
    %4642 = vmatpush1.msra.mxu0 0.0
    %4643 = vmatprep.subr.mxu0 0.0
    %4644 = vmatpush1.msra.mxu0 0.0
    %4645 = vmatprep.subr.mxu0 0.0
    %4646 = vmatpush1.msra.mxu0 0.0
    %4647 = vmatprep.subr.mxu0 0.0
    %4648 = vmatpush1.msra.mxu0 0.0
    %4649 = vmatprep.subr.mxu0 0.0
    %4650 = vmatpush1.msra.mxu0 0.0
    %4651 = vmatprep.subr.mxu0 0.0
    %4652 = vmatpush1.msra.mxu0 0.0
    %4653 = vmatprep.subr.mxu0 0.0
    %4654 = vmatpush1.msra.mxu0 0.0
    %4655 = vmatprep.subr.mxu0 0.0
    %4656 = vmatpush1.msra.mxu0 0.0
    %4657 = vmatprep.subr.mxu0 0.0
    %4658 = vmatpush1.msra.mxu0 0.0
    %4659 = vmatprep.subr.mxu0 0.0
    %4660 = vmatpush1.msra.mxu0 0.0
    %4661 = vmatprep.subr.mxu0 0.0
    %4662 = vmatpush1.msra.mxu0 0.0
    %4663 = vmatprep.subr.mxu0 0.0
    %4664 = vmatpush1.msra.mxu0 0.0
    %4665 = vmatprep.subr.mxu0 0.0
    %4666 = vmatpush1.msra.mxu0 0.0
    %4667 = vmatprep.subr.mxu0 0.0
    %4668 = vmatpush1.msra.mxu0 0.0
    %4669 = vmatprep.subr.mxu0 0.0
    %4670 = vmatpush1.msra.mxu0 0.0
    %4671 = vmatprep.subr.mxu0 0.0
    %4672 = vmatpush1.msra.mxu0 0.0
    %4673 = vmatprep.subr.mxu0 0.0
    %4674 = vmatpush1.msra.mxu0 0.0
    %4675 = vmatprep.subr.mxu0 0.0
    %4676 = vmatpush1.msra.mxu0 0.0
    %4677 = vmatprep.subr.mxu0 0.0
    %4678 = vmatpush1.msra.mxu0 0.0
    %4679 = vmatprep.subr.mxu0 0.0
    %4680 = vmatpush1.msra.mxu0 0.0
    %4681 = vmatprep.mubr.f32.mxu0 0.0
    %4682 = vmatmul.mubr.f32.gmra.mrb[0].mxu0 %v4594
    %v4683 = vpop.f32.mrb[0].mxu0
    %v4684 = vadd.f32 %v3987, %v4683
    %v4685 = vpop.f32.mrb[0].mxu0
    %4686 = vmatprep.mubr.f32.mxu0 0.0
    %4687 = vmatmul.mubr.f32.gmra.mrb[0].mxu0 %v4597
    %v4688 = vpop.f32.mrb[0].mxu0
    %v4689 = vadd.f32 %v3987, %v4688
    %v4690 = vpop.f32.mrb[0].mxu0
    %4691 = vmatprep.mubr.f32.mxu0 0.0
    %4692 = vmatmul.mubr.f32.gmra.mrb[0].mxu0 %v4600
    %v4693 = vpop.f32.mrb[0].mxu0
    %v4694 = vadd.f32 %v3987, %v4693
    %v4695 = vpop.f32.mrb[0].mxu0
    %4696 = vmatprep.mubr.f32.mxu0 0.0
    %4697 = vmatmul.mubr.f32.gmra.mrb[0].mxu0 %v4603
    %v4698 = vpop.f32.mrb[0].mxu0
    %v4699 = vadd.f32 %v3987, %v4698
    %v4700 = vpop.f32.mrb[0].mxu0
    %4701 = vmatprep.mubr.f32.mxu0 0.0
    %4702 = vmatmul.mubr.f32.gmra.mrb[0].mxu0 %v4606
    %v4703 = vpop.f32.mrb[0].mxu0
    %v4704 = vadd.f32 %v3987, %v4703
    %v4705 = vpop.f32.mrb[0].mxu0
    %4706 = vmatprep.mubr.f32.mxu0 0.0
    %4707 = vmatmul.mubr.f32.gmra.mrb[0].mxu0 %v4609
    %v4708 = vpop.f32.mrb[0].mxu0
    %v4709 = vadd.f32 %v3987, %v4708
    %v4710 = vpop.f32.mrb[0].mxu0
    %4711 = vmatprep.mubr.f32.mxu0 0.0
    %4712 = vmatmul.mubr.f32.gmra.mrb[0].mxu0 %v4612
    %v4713 = vpop.f32.mrb[0].mxu0
    %v4714 = vadd.f32 %v3987, %v4713
    %v4715 = vpop.f32.mrb[0].mxu0
    %4716 = vmatprep.mubr.f32.mxu0 0.0
    %4717 = vmatmul.mubr.f32.gmra.mrb[0].mxu0 %v4615
    %v4718 = vpop.f32.mrb[0].mxu0
    %v4719 = vadd.f32 %v3987, %v4718
    %v4720 = vpop.f32.mrb[0].mxu0
    %4721 = vdwg.mxu0
    %v4722 = vmax.f32 %v4416, %v4684
    %v4723 = vmax.f32 %v4417, %v4689
    %v4724 = vmax.f32 %v4418, %v4694
    %v4725 = vmax.f32 %v4419, %v4699
    %v4726 = vmax.f32 %v4420, %v4704
    %v4727 = vmax.f32 %v4421, %v4709
    %v4728 = vmax.f32 %v4422, %v4714
    %v4729 = vmax.f32 %v4423, %v4719
    %v4730 = vrot.slane %v3785, 2
    %v4731 = vrot.slane %v3787, 2
    %v4732 = vrot.slane %v3789, 2
    %v4733 = vrot.slane %v3791, 2
    %v4734 = vrot.slane %v3793, 2
    %v4735 = vrot.slane %v3795, 2
    %v4736 = vrot.slane %v3797, 2
    %v4737 = vrot.slane %v3799, 2
    %v4738 = vsel %vm1689, %v4736, %v4737
    %v4739 = vsel %vm1689, %v4735, %v4736
    %v4740 = vsel %vm1689, %v4734, %v4735
    %v4741 = vsel %vm1689, %v4733, %v4734
    %v4742 = vsel %vm1689, %v4732, %v4733
    %v4743 = vsel %vm1689, %v4731, %v4732
    %v4744 = vsel %vm1689, %v4730, %v4731
    %v4745 = vsel %vm1689, %v4737, %v4730
    %v4746 = vadd.f32 %v3768, %v4744
    %v4747 = vadd.f32 %v3769, %v4743
    %v4748 = vadd.f32 %v3770, %v4742
    %v4749 = vadd.f32 %v3771, %v4741
    %v4750 = vadd.f32 %v3772, %v4740
    %v4751 = vadd.f32 %v3773, %v4739
    %v4752 = vadd.f32 %v3774, %v4738
    %v4753 = vadd.f32 %v3775, %v4745
    %v4754 = vmax.f32 %v4746, 0.0
    %v4755 = vmax.f32 %v4747, 0.0
    %v4756 = vmax.f32 %v4748, 0.0
    %v4757 = vmax.f32 %v4749, 0.0
    %v4758 = vmax.f32 %v4750, 0.0
    %v4759 = vmax.f32 %v4751, 0.0
    %v4760 = vmax.f32 %v4752, 0.0
    %v4761 = vmax.f32 %v4753, 0.0
    %v4763 = vsel %vm578, %v4754, 0
    %v4766 = vsel %vm578, %v4755, 0
    %v4769 = vsel %vm578, %v4756, 0
    %v4772 = vsel %vm578, %v4757, 0
    %v4775 = vsel %vm578, %v4758, 0
    %v4778 = vsel %vm578, %v4759, 0
    %v4781 = vsel %vm578, %v4760, 0
    %v4784 = vsel %vm578, %v4761, 0
    %4786 = vmatprep.subr.mxu0 0.0
    %4787 = vmatpush1.msra.mxu0 %v3484
    %4788 = vmatprep.subr.mxu0 0.0
    %4789 = vmatpush1.msra.mxu0 %v3485
    %4790 = vmatprep.subr.mxu0 0.0
    %4791 = vmatpush1.msra.mxu0 %v3486
    %4792 = vmatprep.subr.mxu0 0.0
    %4793 = vmatpush1.msra.mxu0 %v3487
    %4794 = vmatprep.subr.mxu0 0.0
    %4795 = vmatpush1.msra.mxu0 %v3488
    %4796 = vmatprep.subr.mxu0 0.0
    %4797 = vmatpush1.msra.mxu0 %v3489
    %4798 = vmatprep.subr.mxu0 0.0
    %4799 = vmatpush1.msra.mxu0 %v3490
    %4800 = vmatprep.subr.mxu0 0.0
    %4801 = vmatpush1.msra.mxu0 %v3491
    %4802 = vmatprep.subr.mxu0 0.0
    %4803 = vmatpush1.msra.mxu0 0.0
    %4804 = vmatprep.subr.mxu0 0.0
    %4805 = vmatpush1.msra.mxu0 0.0
    %4806 = vmatprep.subr.mxu0 0.0
    %4807 = vmatpush1.msra.mxu0 0.0
    %4808 = vmatprep.subr.mxu0 0.0
    %4809 = vmatpush1.msra.mxu0 0.0
    %4810 = vmatprep.subr.mxu0 0.0
    %4811 = vmatpush1.msra.mxu0 0.0
    %4812 = vmatprep.subr.mxu0 0.0
    %4813 = vmatpush1.msra.mxu0 0.0
    %4814 = vmatprep.subr.mxu0 0.0
    %4815 = vmatpush1.msra.mxu0 0.0
    %4816 = vmatprep.subr.mxu0 0.0
    %4817 = vmatpush1.msra.mxu0 0.0
    %4818 = vmatprep.subr.mxu0 0.0
    %4819 = vmatpush1.msra.mxu0 0.0
    %4820 = vmatprep.subr.mxu0 0.0
    %4821 = vmatpush1.msra.mxu0 0.0
    %4822 = vmatprep.subr.mxu0 0.0
    %4823 = vmatpush1.msra.mxu0 0.0
    %4824 = vmatprep.subr.mxu0 0.0
    %4825 = vmatpush1.msra.mxu0 0.0
    %4826 = vmatprep.subr.mxu0 0.0
    %4827 = vmatpush1.msra.mxu0 0.0
    %4828 = vmatprep.subr.mxu0 0.0
    %4829 = vmatpush1.msra.mxu0 0.0
    %4830 = vmatprep.subr.mxu0 0.0
    %4831 = vmatpush1.msra.mxu0 0.0
    %4832 = vmatprep.subr.mxu0 0.0
    %4833 = vmatpush1.msra.mxu0 0.0
    %4834 = vmatprep.subr.mxu0 0.0
    %4835 = vmatpush1.msra.mxu0 0.0
    %4836 = vmatprep.subr.mxu0 0.0
    %4837 = vmatpush1.msra.mxu0 0.0
    %4838 = vmatprep.subr.mxu0 0.0
    %4839 = vmatpush1.msra.mxu0 0.0
    %4840 = vmatprep.subr.mxu0 0.0
    %4841 = vmatpush1.msra.mxu0 0.0
    %4842 = vmatprep.subr.mxu0 0.0
    %4843 = vmatpush1.msra.mxu0 0.0
    %4844 = vmatprep.subr.mxu0 0.0
    %4845 = vmatpush1.msra.mxu0 0.0
    %4846 = vmatprep.subr.mxu0 0.0
    %4847 = vmatpush1.msra.mxu0 0.0
    %4848 = vmatprep.subr.mxu0 0.0
    %4849 = vmatpush1.msra.mxu0 0.0
    %4850 = vmatprep.mubr.f32.mxu0 0.0
    %4851 = vmatmul.mubr.f32.gmra.mrb[0].mxu0 %v4763
    %v4852 = vpop.f32.mrb[0].mxu0
    %v4853 = vadd.f32 %v3844, %v4852
    %v4854 = vpop.f32.mrb[0].mxu0
    %4855 = vmatprep.mubr.f32.mxu0 0.0
    %4856 = vmatmul.mubr.f32.gmra.mrb[0].mxu0 %v4766
    %v4857 = vpop.f32.mrb[0].mxu0
    %v4858 = vadd.f32 %v3844, %v4857
    %v4859 = vpop.f32.mrb[0].mxu0
    %4860 = vmatprep.mubr.f32.mxu0 0.0
    %4861 = vmatmul.mubr.f32.gmra.mrb[0].mxu0 %v4769
    %v4862 = vpop.f32.mrb[0].mxu0
    %v4863 = vadd.f32 %v3844, %v4862
    %v4864 = vpop.f32.mrb[0].mxu0
    %4865 = vmatprep.mubr.f32.mxu0 0.0
    %4866 = vmatmul.mubr.f32.gmra.mrb[0].mxu0 %v4772
    %v4867 = vpop.f32.mrb[0].mxu0
    %v4868 = vadd.f32 %v3844, %v4867
    %v4869 = vpop.f32.mrb[0].mxu0
    %4870 = vmatprep.mubr.f32.mxu0 0.0
    %4871 = vmatmul.mubr.f32.gmra.mrb[0].mxu0 %v4775
    %v4872 = vpop.f32.mrb[0].mxu0
    %v4873 = vadd.f32 %v3844, %v4872
    %v4874 = vpop.f32.mrb[0].mxu0
    %4875 = vmatprep.mubr.f32.mxu0 0.0
    %4876 = vmatmul.mubr.f32.gmra.mrb[0].mxu0 %v4778
    %v4877 = vpop.f32.mrb[0].mxu0
    %v4878 = vadd.f32 %v3844, %v4877
    %v4879 = vpop.f32.mrb[0].mxu0
    %4880 = vmatprep.mubr.f32.mxu0 0.0
    %4881 = vmatmul.mubr.f32.gmra.mrb[0].mxu0 %v4781
    %v4882 = vpop.f32.mrb[0].mxu0
    %v4883 = vadd.f32 %v3844, %v4882
    %v4884 = vpop.f32.mrb[0].mxu0
    %4885 = vmatprep.mubr.f32.mxu0 0.0
    %4886 = vmatmul.mubr.f32.gmra.mrb[0].mxu0 %v4784
    %v4887 = vpop.f32.mrb[0].mxu0
    %v4888 = vadd.f32 %v3844, %v4887
    %v4889 = vpop.f32.mrb[0].mxu0
    %4890 = vdwg.mxu0
    %v4891 = vmax.f32 %v4853, 0.0
    %v4892 = vmax.f32 %v4858, 0.0
    %v4893 = vmax.f32 %v4863, 0.0
    %v4894 = vmax.f32 %v4868, 0.0
    %v4895 = vmax.f32 %v4873, 0.0
    %v4896 = vmax.f32 %v4878, 0.0
    %v4897 = vmax.f32 %v4883, 0.0
    %v4898 = vmax.f32 %v4888, 0.0
    %v4900 = vsel %vm578, %v4891, 0
    %v4903 = vsel %vm578, %v4892, 0
    %v4906 = vsel %vm578, %v4893, 0
    %v4909 = vsel %vm578, %v4894, 0
    %v4912 = vsel %vm578, %v4895, 0
    %v4915 = vsel %vm578, %v4896, 0
    %v4918 = vsel %vm578, %v4897, 0
    %v4921 = vsel %vm578, %v4898, 0
    %4923 = vmatprep.subr.mxu0 0.0
    %4924 = vmatpush1.msra.mxu0 %v3493
    %4925 = vmatprep.subr.mxu0 0.0
    %4926 = vmatpush1.msra.mxu0 %v3494
    %4927 = vmatprep.subr.mxu0 0.0
    %4928 = vmatpush1.msra.mxu0 %v3495
    %4929 = vmatprep.subr.mxu0 0.0
    %4930 = vmatpush1.msra.mxu0 %v3496
    %4931 = vmatprep.subr.mxu0 0.0
    %4932 = vmatpush1.msra.mxu0 %v3497
    %4933 = vmatprep.subr.mxu0 0.0
    %4934 = vmatpush1.msra.mxu0 %v3498
    %4935 = vmatprep.subr.mxu0 0.0
    %4936 = vmatpush1.msra.mxu0 %v3499
    %4937 = vmatprep.subr.mxu0 0.0
    %4938 = vmatpush1.msra.mxu0 %v3500
    %4939 = vmatprep.subr.mxu0 0.0
    %4940 = vmatpush1.msra.mxu0 0.0
    %4941 = vmatprep.subr.mxu0 0.0
    %4942 = vmatpush1.msra.mxu0 0.0
    %4943 = vmatprep.subr.mxu0 0.0
    %4944 = vmatpush1.msra.mxu0 0.0
    %4945 = vmatprep.subr.mxu0 0.0
    %4946 = vmatpush1.msra.mxu0 0.0
    %4947 = vmatprep.subr.mxu0 0.0
    %4948 = vmatpush1.msra.mxu0 0.0
    %4949 = vmatprep.subr.mxu0 0.0
    %4950 = vmatpush1.msra.mxu0 0.0
    %4951 = vmatprep.subr.mxu0 0.0
    %4952 = vmatpush1.msra.mxu0 0.0
    %4953 = vmatprep.subr.mxu0 0.0
    %4954 = vmatpush1.msra.mxu0 0.0
    %4955 = vmatprep.subr.mxu0 0.0
    %4956 = vmatpush1.msra.mxu0 0.0
    %4957 = vmatprep.subr.mxu0 0.0
    %4958 = vmatpush1.msra.mxu0 0.0
    %4959 = vmatprep.subr.mxu0 0.0
    %4960 = vmatpush1.msra.mxu0 0.0
    %4961 = vmatprep.subr.mxu0 0.0
    %4962 = vmatpush1.msra.mxu0 0.0
    %4963 = vmatprep.subr.mxu0 0.0
    %4964 = vmatpush1.msra.mxu0 0.0
    %4965 = vmatprep.subr.mxu0 0.0
    %4966 = vmatpush1.msra.mxu0 0.0
    %4967 = vmatprep.subr.mxu0 0.0
    %4968 = vmatpush1.msra.mxu0 0.0
    %4969 = vmatprep.subr.mxu0 0.0
    %4970 = vmatpush1.msra.mxu0 0.0
    %4971 = vmatprep.subr.mxu0 0.0
    %4972 = vmatpush1.msra.mxu0 0.0
    %4973 = vmatprep.subr.mxu0 0.0
    %4974 = vmatpush1.msra.mxu0 0.0
    %4975 = vmatprep.subr.mxu0 0.0
    %4976 = vmatpush1.msra.mxu0 0.0
    %4977 = vmatprep.subr.mxu0 0.0
    %4978 = vmatpush1.msra.mxu0 0.0
    %4979 = vmatprep.subr.mxu0 0.0
    %4980 = vmatpush1.msra.mxu0 0.0
    %4981 = vmatprep.subr.mxu0 0.0
    %4982 = vmatpush1.msra.mxu0 0.0
    %4983 = vmatprep.subr.mxu0 0.0
    %4984 = vmatpush1.msra.mxu0 0.0
    %4985 = vmatprep.subr.mxu0 0.0
    %4986 = vmatpush1.msra.mxu0 0.0
    %4987 = vmatprep.mubr.f32.mxu0 0.0
    %4988 = vmatmul.mubr.f32.gmra.mrb[0].mxu0 %v4900
    %v4989 = vpop.f32.mrb[0].mxu0
    %v4990 = vadd.f32 %v3987, %v4989
    %v4991 = vpop.f32.mrb[0].mxu0
    %4992 = vmatprep.mubr.f32.mxu0 0.0
    %4993 = vmatmul.mubr.f32.gmra.mrb[0].mxu0 %v4903
    %v4994 = vpop.f32.mrb[0].mxu0
    %v4995 = vadd.f32 %v3987, %v4994
    %v4996 = vpop.f32.mrb[0].mxu0
    %4997 = vmatprep.mubr.f32.mxu0 0.0
    %4998 = vmatmul.mubr.f32.gmra.mrb[0].mxu0 %v4906
    %v4999 = vpop.f32.mrb[0].mxu0
    %v5000 = vadd.f32 %v3987, %v4999
    %v5001 = vpop.f32.mrb[0].mxu0
    %5002 = vmatprep.mubr.f32.mxu0 0.0
    %5003 = vmatmul.mubr.f32.gmra.mrb[0].mxu0 %v4909
    %v5004 = vpop.f32.mrb[0].mxu0
    %v5005 = vadd.f32 %v3987, %v5004
    %v5006 = vpop.f32.mrb[0].mxu0
    %5007 = vmatprep.mubr.f32.mxu0 0.0
    %5008 = vmatmul.mubr.f32.gmra.mrb[0].mxu0 %v4912
    %v5009 = vpop.f32.mrb[0].mxu0
    %v5010 = vadd.f32 %v3987, %v5009
    %v5011 = vpop.f32.mrb[0].mxu0
    %5012 = vmatprep.mubr.f32.mxu0 0.0
    %5013 = vmatmul.mubr.f32.gmra.mrb[0].mxu0 %v4915
    %v5014 = vpop.f32.mrb[0].mxu0
    %v5015 = vadd.f32 %v3987, %v5014
    %v5016 = vpop.f32.mrb[0].mxu0
    %5017 = vmatprep.mubr.f32.mxu0 0.0
    %5018 = vmatmul.mubr.f32.gmra.mrb[0].mxu0 %v4918
    %v5019 = vpop.f32.mrb[0].mxu0
    %v5020 = vadd.f32 %v3987, %v5019
    %v5021 = vpop.f32.mrb[0].mxu0
    %5022 = vmatprep.mubr.f32.mxu0 0.0
    %5023 = vmatmul.mubr.f32.gmra.mrb[0].mxu0 %v4921
    %v5024 = vpop.f32.mrb[0].mxu0
    %v5025 = vadd.f32 %v3987, %v5024
    %v5026 = vpop.f32.mrb[0].mxu0
    %5027 = vdwg.mxu0
    %v5028 = vmax.f32 %v4722, %v4990
    %v5029 = vmax.f32 %v4723, %v4995
    %v5030 = vmax.f32 %v4724, %v5000
    %v5031 = vmax.f32 %v4725, %v5005
    %v5032 = vmax.f32 %v4726, %v5010
    %v5033 = vmax.f32 %v4727, %v5015
    %v5034 = vmax.f32 %v4728, %v5020
    %v5035 = vmax.f32 %v4729, %v5025
    %v5036 = vmax.f32 %v5028, 0.0
    %v5037 = vmax.f32 %v5029, 0.0
    %v5038 = vmax.f32 %v5030, 0.0
    %v5039 = vmax.f32 %v5031, 0.0
    %v5040 = vmax.f32 %v5032, 0.0
    %v5041 = vmax.f32 %v5033, 0.0
    %v5042 = vmax.f32 %v5034, 0.0
    %v5043 = vmax.f32 %v5035, 0.0
    %v5044 = vsel %vm578, %v5036, 0.0
    %v5045 = vsel %vm578, %v5037, 0.0
    %v5046 = vadd.f32 %v5044, %v5045
    %v5047 = vsel %vm578, %v5038, 0.0
    %v5048 = vadd.f32 %v5046, %v5047
    %v5049 = vsel %vm578, %v5039, 0.0
    %v5050 = vadd.f32 %v5048, %v5049
    %v5051 = vsel %vm578, %v5040, 0.0
    %v5052 = vadd.f32 %v5050, %v5051
    %v5053 = vsel %vm578, %v5041, 0.0
    %v5054 = vadd.f32 %v5052, %v5053
    %v5055 = vsel %vm578, %v5042, 0.0
    %v5056 = vadd.f32 %v5054, %v5055
    %v5057 = vsel %vm578, %v5043, 0.0
    %v5058 = vadd.f32 %v5056, %v5057
    %v5059 = vrot.slane %v5058, 4
    %v5060 = vadd.f32 %v5058, %v5059
    %v5061 = vrot.slane %v5060, 2
    %v5062 = vadd.f32 %v5060, %v5061
    %v5063 = vrot.slane %v5062, 1
    %v5064 = vadd.f32 %v5062, %v5063
    %v5065 = vmul.f32 %v5036, %v5036
    %v5066 = vmul.f32 %v5037, %v5037
    %v5067 = vmul.f32 %v5038, %v5038
    %v5068 = vmul.f32 %v5039, %v5039
    %v5069 = vmul.f32 %v5040, %v5040
    %v5070 = vmul.f32 %v5041, %v5041
    %v5071 = vmul.f32 %v5042, %v5042
    %v5072 = vmul.f32 %v5043, %v5043
    %v5073 = vsel %vm578, %v5065, 0.0
    %v5074 = vsel %vm578, %v5066, 0.0
    %v5075 = vadd.f32 %v5073, %v5074
    %v5076 = vsel %vm578, %v5067, 0.0
    %v5077 = vadd.f32 %v5075, %v5076
    %v5078 = vsel %vm578, %v5068, 0.0
    %v5079 = vadd.f32 %v5077, %v5078
    %v5080 = vsel %vm578, %v5069, 0.0
    %v5081 = vadd.f32 %v5079, %v5080
    %v5082 = vsel %vm578, %v5070, 0.0
    %v5083 = vadd.f32 %v5081, %v5082
    %v5084 = vsel %vm578, %v5071, 0.0
    %v5085 = vadd.f32 %v5083, %v5084
    %v5086 = vsel %vm578, %v5072, 0.0
    %v5087 = vadd.f32 %v5085, %v5086
    %v5088 = vrot.slane %v5087, 4
    %v5089 = vadd.f32 %v5087, %v5088
    %v5090 = vrot.slane %v5089, 2
    %v5091 = vadd.f32 %v5089, %v5090
    %v5092 = vrot.slane %v5091, 1
    %v5093 = vadd.f32 %v5091, %v5092
    %v5094 = vmul.f32 %v5064, 0.015625
    %v5095 = vmul.f32 %v5093, 0.015625
    %v5096 = vmul.f32 %v5094, %v5094
    %v5097 = vsub.f32 %v5095, %v5096
    %v5098 = vmax.f32 %v5097, 0.0
    %v5099 = vsub.f32 %v5036, %v5094
    %v5100 = vsub.f32 %v5037, %v5094
    %v5101 = vsub.f32 %v5038, %v5094
    %v5102 = vsub.f32 %v5039, %v5094
    %v5103 = vsub.f32 %v5040, %v5094
    %v5104 = vsub.f32 %v5041, %v5094
    %v5105 = vsub.f32 %v5042, %v5094
    %v5106 = vsub.f32 %v5043, %v5094
    %v5107 = vadd.f32 %v5098, 1e-05
    %v5108 = vrsqrt.pop %v5107
    %v5109 = vmul.f32 %v5099, %v5108
    %v5110 = vmul.f32 %v5100, %v5108
    %v5111 = vmul.f32 %v5101, %v5108
    %v5112 = vmul.f32 %v5102, %v5108
    %v5113 = vmul.f32 %v5103, %v5108
    %v5114 = vmul.f32 %v5104, %v5108
    %v5115 = vmul.f32 %v5105, %v5108
    %v5116 = vmul.f32 %v5106, %v5108
    %v5118 = vlaneseq
    %v5119 = vshrl.u32 %v5118, 7
    %v5120 = vsub.s32 0, %v5119
    %v5121 = vrot.slane %v3502, %v5120
    %v5123 = vmul.f32 %v5109, %v5121
    %v5124 = vmul.f32 %v5110, %v5121
    %v5125 = vmul.f32 %v5111, %v5121
    %v5126 = vmul.f32 %v5112, %v5121
    %v5127 = vmul.f32 %v5113, %v5121
    %v5128 = vmul.f32 %v5114, %v5121
    %v5129 = vmul.f32 %v5115, %v5121
    %v5130 = vmul.f32 %v5116, %v5121
    %v5132 = vlaneseq
    %v5133 = vshrl.u32 %v5132, 7
    %v5134 = vsub.s32 0, %v5133
    %v5135 = vrot.slane %v3503, %v5134
    %v5137 = vadd.f32 %v5123, %v5135
    %v5138 = vadd.f32 %v5124, %v5135
    %v5139 = vadd.f32 %v5125, %v5135
    %v5140 = vadd.f32 %v5126, %v5135
    %v5141 = vadd.f32 %v5127, %v5135
    %v5142 = vadd.f32 %v5128, %v5135
    %v5143 = vadd.f32 %v5129, %v5135
    %v5144 = vadd.f32 %v5130, %v5135
    %v5145 = vld [vmem:[#allocation46] sm:$0xff]
    %v5146 = vld [vmem:[#allocation46 + $0x8] sm:$0xff]
    %v5147 = vld [vmem:[#allocation46 + $0x10] sm:$0xff]
    %v5148 = vld [vmem:[#allocation46 + $0x18] sm:$0xff]
    %v5149 = vld [vmem:[#allocation46 + $0x20] sm:$0xff]
    %v5150 = vld [vmem:[#allocation46 + $0x28] sm:$0xff]
    %v5151 = vld [vmem:[#allocation46 + $0x30] sm:$0xff]
    %v5152 = vld [vmem:[#allocation46 + $0x38] sm:$0xff]
    %v5153 = vld [vmem:[%s77] sm:$0x1]
    %v5154 = vld [vmem:[%s79] sm:$0xff]
    %v5155 = vld [vmem:[%s79 + $0x8] sm:$0xff]
    %v5156 = vld [vmem:[%s79 + $0x10] sm:$0xff]
    %v5157 = vld [vmem:[%s79 + $0x18] sm:$0xff]
    %v5158 = vld [vmem:[%s79 + $0x20] sm:$0xff]
    %v5159 = vld [vmem:[%s79 + $0x28] sm:$0xff]
    %v5160 = vld [vmem:[%s79 + $0x30] sm:$0xff]
    %v5161 = vld [vmem:[%s79 + $0x38] sm:$0xff]
    %v5162 = vld [vmem:[%s79 + $0x40] sm:$0xff]
    %v5163 = vld [vmem:[%s79 + $0x48] sm:$0xff]
    %v5164 = vld [vmem:[%s79 + $0x50] sm:$0xff]
    %v5165 = vld [vmem:[%s79 + $0x58] sm:$0xff]
    %v5166 = vld [vmem:[%s79 + $0x60] sm:$0xff]
    %v5167 = vld [vmem:[%s79 + $0x68] sm:$0xff]
    %v5168 = vld [vmem:[%s79 + $0x70] sm:$0xff]
    %v5169 = vld [vmem:[%s79 + $0x78] sm:$0xff]
    %v5170 = vld [vmem:[%s81] sm:$0x1]
    %v5171 = vld [vmem:[%s83] sm:$0xff]
    %v5172 = vld [vmem:[%s83 + $0x8] sm:$0xff]
    %v5173 = vld [vmem:[%s83 + $0x10] sm:$0xff]
    %v5174 = vld [vmem:[%s83 + $0x18] sm:$0xff]
    %v5175 = vld [vmem:[%s83 + $0x20] sm:$0xff]
    %v5176 = vld [vmem:[%s83 + $0x28] sm:$0xff]
    %v5177 = vld [vmem:[%s83 + $0x30] sm:$0xff]
    %v5178 = vld [vmem:[%s83 + $0x38] sm:$0xff]
    %v5179 = vld [vmem:[%s83 + $0x40] sm:$0xff]
    %v5180 = vld [vmem:[%s83 + $0x48] sm:$0xff]
    %v5181 = vld [vmem:[%s83 + $0x50] sm:$0xff]
    %v5182 = vld [vmem:[%s83 + $0x58] sm:$0xff]
    %v5183 = vld [vmem:[%s83 + $0x60] sm:$0xff]
    %v5184 = vld [vmem:[%s83 + $0x68] sm:$0xff]
    %v5185 = vld [vmem:[%s83 + $0x70] sm:$0xff]
    %v5186 = vld [vmem:[%s83 + $0x78] sm:$0xff]
    %v5187 = vld [vmem:[%s85] sm:$0x1]
    %v5189 = vlaneseq
    %v5190 = vshrl.u32 %v5189, 7
    %v5191 = vsub.s32 0, %v5190
    %v5192 = vrot.slane %v5153, %v5191
    %v5195 = vsel %vm578, %v5137, 0
    %v5198 = vsel %vm578, %v5138, 0
    %v5201 = vsel %vm578, %v5139, 0
    %v5204 = vsel %vm578, %v5140, 0
    %v5207 = vsel %vm578, %v5141, 0
    %v5210 = vsel %vm578, %v5142, 0
    %v5213 = vsel %vm578, %v5143, 0
    %v5216 = vsel %vm578, %v5144, 0
    %5218 = vmatprep.subr.mxu0 0.0
    %5219 = vmatpush1.msra.mxu0 %v5145
    %5220 = vmatprep.subr.mxu0 0.0
    %5221 = vmatpush1.msra.mxu0 %v5146
    %5222 = vmatprep.subr.mxu0 0.0
    %5223 = vmatpush1.msra.mxu0 %v5147
    %5224 = vmatprep.subr.mxu0 0.0
    %5225 = vmatpush1.msra.mxu0 %v5148
    %5226 = vmatprep.subr.mxu0 0.0
    %5227 = vmatpush1.msra.mxu0 %v5149
    %5228 = vmatprep.subr.mxu0 0.0
    %5229 = vmatpush1.msra.mxu0 %v5150
    %5230 = vmatprep.subr.mxu0 0.0
    %5231 = vmatpush1.msra.mxu0 %v5151
    %5232 = vmatprep.subr.mxu0 0.0
    %5233 = vmatpush1.msra.mxu0 %v5152
    %5234 = vmatprep.subr.mxu0 0.0
    %5235 = vmatpush1.msra.mxu0 0.0
    %5236 = vmatprep.subr.mxu0 0.0
    %5237 = vmatpush1.msra.mxu0 0.0
    %5238 = vmatprep.subr.mxu0 0.0
    %5239 = vmatpush1.msra.mxu0 0.0
    %5240 = vmatprep.subr.mxu0 0.0
    %5241 = vmatpush1.msra.mxu0 0.0
    %5242 = vmatprep.subr.mxu0 0.0
    %5243 = vmatpush1.msra.mxu0 0.0
    %5244 = vmatprep.subr.mxu0 0.0
    %5245 = vmatpush1.msra.mxu0 0.0
    %5246 = vmatprep.subr.mxu0 0.0
    %5247 = vmatpush1.msra.mxu0 0.0
    %5248 = vmatprep.subr.mxu0 0.0
    %5249 = vmatpush1.msra.mxu0 0.0
    %5250 = vmatprep.subr.mxu0 0.0
    %5251 = vmatpush1.msra.mxu0 0.0
    %5252 = vmatprep.subr.mxu0 0.0
    %5253 = vmatpush1.msra.mxu0 0.0
    %5254 = vmatprep.subr.mxu0 0.0
    %5255 = vmatpush1.msra.mxu0 0.0
    %5256 = vmatprep.subr.mxu0 0.0
    %5257 = vmatpush1.msra.mxu0 0.0
    %5258 = vmatprep.subr.mxu0 0.0
    %5259 = vmatpush1.msra.mxu0 0.0
    %5260 = vmatprep.subr.mxu0 0.0
    %5261 = vmatpush1.msra.mxu0 0.0
    %5262 = vmatprep.subr.mxu0 0.0
    %5263 = vmatpush1.msra.mxu0 0.0
    %5264 = vmatprep.subr.mxu0 0.0
    %5265 = vmatpush1.msra.mxu0 0.0
    %5266 = vmatprep.subr.mxu0 0.0
    %5267 = vmatpush1.msra.mxu0 0.0
    %5268 = vmatprep.subr.mxu0 0.0
    %5269 = vmatpush1.msra.mxu0 0.0
    %5270 = vmatprep.subr.mxu0 0.0
    %5271 = vmatpush1.msra.mxu0 0.0
    %5272 = vmatprep.subr.mxu0 0.0
    %5273 = vmatpush1.msra.mxu0 0.0
    %5274 = vmatprep.subr.mxu0 0.0
    %5275 = vmatpush1.msra.mxu0 0.0
    %5276 = vmatprep.subr.mxu0 0.0
    %5277 = vmatpush1.msra.mxu0 0.0
    %5278 = vmatprep.subr.mxu0 0.0
    %5279 = vmatpush1.msra.mxu0 0.0
    %5280 = vmatprep.subr.mxu0 0.0
    %5281 = vmatpush1.msra.mxu0 0.0
    %5282 = vmatprep.mubr.f32.mxu0 0.0
    %5283 = vmatmul.mubr.f32.gmra.mrb[0].mxu0 %v5195
    %v5284 = vpop.f32.mrb[0].mxu0
    %v5285 = vadd.f32 %v5192, %v5284
    %v5286 = vpop.f32.mrb[0].mxu0
    %5287 = vmatprep.mubr.f32.mxu0 0.0
    %5288 = vmatmul.mubr.f32.gmra.mrb[0].mxu0 %v5198
    %v5289 = vpop.f32.mrb[0].mxu0
    %v5290 = vadd.f32 %v5192, %v5289
    %v5291 = vpop.f32.mrb[0].mxu0
    %5292 = vmatprep.mubr.f32.mxu0 0.0
    %5293 = vmatmul.mubr.f32.gmra.mrb[0].mxu0 %v5201
    %v5294 = vpop.f32.mrb[0].mxu0
    %v5295 = vadd.f32 %v5192, %v5294
    %v5296 = vpop.f32.mrb[0].mxu0
    %5297 = vmatprep.mubr.f32.mxu0 0.0
    %5298 = vmatmul.mubr.f32.gmra.mrb[0].mxu0 %v5204
    %v5299 = vpop.f32.mrb[0].mxu0
    %v5300 = vadd.f32 %v5192, %v5299
    %v5301 = vpop.f32.mrb[0].mxu0
    %5302 = vmatprep.mubr.f32.mxu0 0.0
    %5303 = vmatmul.mubr.f32.gmra.mrb[0].mxu0 %v5207
    %v5304 = vpop.f32.mrb[0].mxu0
    %v5305 = vadd.f32 %v5192, %v5304
    %v5306 = vpop.f32.mrb[0].mxu0
    %5307 = vmatprep.mubr.f32.mxu0 0.0
    %5308 = vmatmul.mubr.f32.gmra.mrb[0].mxu0 %v5210
    %v5309 = vpop.f32.mrb[0].mxu0
    %v5310 = vadd.f32 %v5192, %v5309
    %v5311 = vpop.f32.mrb[0].mxu0
    %5312 = vmatprep.mubr.f32.mxu0 0.0
    %5313 = vmatmul.mubr.f32.gmra.mrb[0].mxu0 %v5213
    %v5314 = vpop.f32.mrb[0].mxu0
    %v5315 = vadd.f32 %v5192, %v5314
    %v5316 = vpop.f32.mrb[0].mxu0
    %5317 = vmatprep.mubr.f32.mxu0 0.0
    %5318 = vmatmul.mubr.f32.gmra.mrb[0].mxu0 %v5216
    %v5319 = vpop.f32.mrb[0].mxu0
    %v5320 = vadd.f32 %v5192, %v5319
    %v5321 = vpop.f32.mrb[0].mxu0
    %5322 = vdwg.mxu0
    %v5323 = vmax.f32 %v5285, 0.0
    %v5324 = vmax.f32 %v5290, 0.0
    %v5325 = vmax.f32 %v5295, 0.0
    %v5326 = vmax.f32 %v5300, 0.0
    %v5327 = vmax.f32 %v5305, 0.0
    %v5328 = vmax.f32 %v5310, 0.0
    %v5329 = vmax.f32 %v5315, 0.0
    %v5330 = vmax.f32 %v5320, 0.0
    %v5332 = vlaneseq
    %v5333 = vshrl.u32 %v5332, 7
    %v5334 = vsub.s32 0, %v5333
    %v5335 = vrot.slane %v5170, %v5334
    %5337 = vmatprep.subr.mxu0 0.0
    %5338 = vmatpush1.msra.mxu0 %v5154
    %5339 = vmatprep.subr.mxu0 0.0
    %5340 = vmatpush1.msra.mxu0 %v5155
    %5341 = vmatprep.subr.mxu0 0.0
    %5342 = vmatpush1.msra.mxu0 %v5156
    %5343 = vmatprep.subr.mxu0 0.0
    %5344 = vmatpush1.msra.mxu0 %v5157
    %5345 = vmatprep.subr.mxu0 0.0
    %5346 = vmatpush1.msra.mxu0 %v5158
    %5347 = vmatprep.subr.mxu0 0.0
    %5348 = vmatpush1.msra.mxu0 %v5159
    %5349 = vmatprep.subr.mxu0 0.0
    %5350 = vmatpush1.msra.mxu0 %v5160
    %5351 = vmatprep.subr.mxu0 0.0
    %5352 = vmatpush1.msra.mxu0 %v5161
    %5353 = vmatprep.subr.mxu0 0.0
    %5354 = vmatpush1.msra.mxu0 %v5162
    %5355 = vmatprep.subr.mxu0 0.0
    %5356 = vmatpush1.msra.mxu0 %v5163
    %5357 = vmatprep.subr.mxu0 0.0
    %5358 = vmatpush1.msra.mxu0 %v5164
    %5359 = vmatprep.subr.mxu0 0.0
    %5360 = vmatpush1.msra.mxu0 %v5165
    %5361 = vmatprep.subr.mxu0 0.0
    %5362 = vmatpush1.msra.mxu0 %v5166
    %5363 = vmatprep.subr.mxu0 0.0
    %5364 = vmatpush1.msra.mxu0 %v5167
    %5365 = vmatprep.subr.mxu0 0.0
    %5366 = vmatpush1.msra.mxu0 %v5168
    %5367 = vmatprep.subr.mxu0 0.0
    %5368 = vmatpush1.msra.mxu0 %v5169
    %5369 = vmatprep.subr.mxu0 0.0
    %5370 = vmatpush1.msra.mxu0 0.0
    %5371 = vmatprep.subr.mxu0 0.0
    %5372 = vmatpush1.msra.mxu0 0.0
    %5373 = vmatprep.subr.mxu0 0.0
    %5374 = vmatpush1.msra.mxu0 0.0
    %5375 = vmatprep.subr.mxu0 0.0
    %5376 = vmatpush1.msra.mxu0 0.0
    %5377 = vmatprep.subr.mxu0 0.0
    %5378 = vmatpush1.msra.mxu0 0.0
    %5379 = vmatprep.subr.mxu0 0.0
    %5380 = vmatpush1.msra.mxu0 0.0
    %5381 = vmatprep.subr.mxu0 0.0
    %5382 = vmatpush1.msra.mxu0 0.0
    %5383 = vmatprep.subr.mxu0 0.0
    %5384 = vmatpush1.msra.mxu0 0.0
    %5385 = vmatprep.subr.mxu0 0.0
    %5386 = vmatpush1.msra.mxu0 0.0
    %5387 = vmatprep.subr.mxu0 0.0
    %5388 = vmatpush1.msra.mxu0 0.0
    %5389 = vmatprep.subr.mxu0 0.0
    %5390 = vmatpush1.msra.mxu0 0.0
    %5391 = vmatprep.subr.mxu0 0.0
    %5392 = vmatpush1.msra.mxu0 0.0
    %5393 = vmatprep.subr.mxu0 0.0
    %5394 = vmatpush1.msra.mxu0 0.0
    %5395 = vmatprep.subr.mxu0 0.0
    %5396 = vmatpush1.msra.mxu0 0.0
    %5397 = vmatprep.subr.mxu0 0.0
    %5398 = vmatpush1.msra.mxu0 0.0
    %5399 = vmatprep.subr.mxu0 0.0
    %5400 = vmatpush1.msra.mxu0 0.0
    %5401 = vmatprep.mubr.f32.mxu0 0.0
    %5402 = vmatmul.mubr.f32.gmra.mrb[0].mxu0 %v5323
    %v5403 = vpop.f32.mrb[0].mxu0
    %v5404 = vadd.f32 %v5335, %v5403
    %v5405 = vpop.f32.mrb[0].mxu0
    %5406 = vmatprep.mubr.f32.mxu0 0.0
    %5407 = vmatmul.mubr.f32.gmra.mrb[0].mxu0 %v5324
    %v5408 = vpop.f32.mrb[0].mxu0
    %v5409 = vadd.f32 %v5335, %v5408
    %v5410 = vpop.f32.mrb[0].mxu0
    %5411 = vmatprep.mubr.f32.mxu0 0.0
    %5412 = vmatmul.mubr.f32.gmra.mrb[0].mxu0 %v5325
    %v5413 = vpop.f32.mrb[0].mxu0
    %v5414 = vadd.f32 %v5335, %v5413
    %v5415 = vpop.f32.mrb[0].mxu0
    %5416 = vmatprep.mubr.f32.mxu0 0.0
    %5417 = vmatmul.mubr.f32.gmra.mrb[0].mxu0 %v5326
    %v5418 = vpop.f32.mrb[0].mxu0
    %v5419 = vadd.f32 %v5335, %v5418
    %v5420 = vpop.f32.mrb[0].mxu0
    %5421 = vmatprep.mubr.f32.mxu0 0.0
    %5422 = vmatmul.mubr.f32.gmra.mrb[0].mxu0 %v5327
    %v5423 = vpop.f32.mrb[0].mxu0
    %v5424 = vadd.f32 %v5335, %v5423
    %v5425 = vpop.f32.mrb[0].mxu0
    %5426 = vmatprep.mubr.f32.mxu0 0.0
    %5427 = vmatmul.mubr.f32.gmra.mrb[0].mxu0 %v5328
    %v5428 = vpop.f32.mrb[0].mxu0
    %v5429 = vadd.f32 %v5335, %v5428
    %v5430 = vpop.f32.mrb[0].mxu0
    %5431 = vmatprep.mubr.f32.mxu0 0.0
    %5432 = vmatmul.mubr.f32.gmra.mrb[0].mxu0 %v5329
    %v5433 = vpop.f32.mrb[0].mxu0
    %v5434 = vadd.f32 %v5335, %v5433
    %v5435 = vpop.f32.mrb[0].mxu0
    %5436 = vmatprep.mubr.f32.mxu0 0.0
    %5437 = vmatmul.mubr.f32.gmra.mrb[0].mxu0 %v5330
    %v5438 = vpop.f32.mrb[0].mxu0
    %v5439 = vadd.f32 %v5335, %v5438
    %v5440 = vpop.f32.mrb[0].mxu0
    %5441 = vdwg.mxu0
    %v5442 = vmax.f32 %v5404, 0.0
    %v5443 = vmax.f32 %v5409, 0.0
    %v5444 = vmax.f32 %v5414, 0.0
    %v5445 = vmax.f32 %v5419, 0.0
    %v5446 = vmax.f32 %v5424, 0.0
    %v5447 = vmax.f32 %v5429, 0.0
    %v5448 = vmax.f32 %v5434, 0.0
    %v5449 = vmax.f32 %v5439, 0.0
    %v5451 = vlaneseq
    %v5452 = vshrl.u32 %v5451, 7
    %v5453 = vsub.s32 0, %v5452
    %v5454 = vrot.slane %v5187, %v5453
    %5456 = vmatprep.subr.mxu0 0.0
    %5457 = vmatpush1.msra.mxu0 %v5171
    %5458 = vmatprep.subr.mxu0 0.0
    %5459 = vmatpush1.msra.mxu0 %v5172
    %5460 = vmatprep.subr.mxu0 0.0
    %5461 = vmatpush1.msra.mxu0 %v5173
    %5462 = vmatprep.subr.mxu0 0.0
    %5463 = vmatpush1.msra.mxu0 %v5174
    %5464 = vmatprep.subr.mxu0 0.0
    %5465 = vmatpush1.msra.mxu0 %v5175
    %5466 = vmatprep.subr.mxu0 0.0
    %5467 = vmatpush1.msra.mxu0 %v5176
    %5468 = vmatprep.subr.mxu0 0.0
    %5469 = vmatpush1.msra.mxu0 %v5177
    %5470 = vmatprep.subr.mxu0 0.0
    %5471 = vmatpush1.msra.mxu0 %v5178
    %5472 = vmatprep.subr.mxu0 0.0
    %5473 = vmatpush1.msra.mxu0 %v5179
    %5474 = vmatprep.subr.mxu0 0.0
    %5475 = vmatpush1.msra.mxu0 %v5180
    %5476 = vmatprep.subr.mxu0 0.0
    %5477 = vmatpush1.msra.mxu0 %v5181
    %5478 = vmatprep.subr.mxu0 0.0
    %5479 = vmatpush1.msra.mxu0 %v5182
    %5480 = vmatprep.subr.mxu0 0.0
    %5481 = vmatpush1.msra.mxu0 %v5183
    %5482 = vmatprep.subr.mxu0 0.0
    %5483 = vmatpush1.msra.mxu0 %v5184
    %5484 = vmatprep.subr.mxu0 0.0
    %5485 = vmatpush1.msra.mxu0 %v5185
    %5486 = vmatprep.subr.mxu0 0.0
    %5487 = vmatpush1.msra.mxu0 %v5186
    %5488 = vmatprep.subr.mxu0 0.0
    %5489 = vmatpush1.msra.mxu0 0.0
    %5490 = vmatprep.subr.mxu0 0.0
    %5491 = vmatpush1.msra.mxu0 0.0
    %5492 = vmatprep.subr.mxu0 0.0
    %5493 = vmatpush1.msra.mxu0 0.0
    %5494 = vmatprep.subr.mxu0 0.0
    %5495 = vmatpush1.msra.mxu0 0.0
    %5496 = vmatprep.subr.mxu0 0.0
    %5497 = vmatpush1.msra.mxu0 0.0
    %5498 = vmatprep.subr.mxu0 0.0
    %5499 = vmatpush1.msra.mxu0 0.0
    %5500 = vmatprep.subr.mxu0 0.0
    %5501 = vmatpush1.msra.mxu0 0.0
    %5502 = vmatprep.subr.mxu0 0.0
    %5503 = vmatpush1.msra.mxu0 0.0
    %5504 = vmatprep.subr.mxu0 0.0
    %5505 = vmatpush1.msra.mxu0 0.0
    %5506 = vmatprep.subr.mxu0 0.0
    %5507 = vmatpush1.msra.mxu0 0.0
    %5508 = vmatprep.subr.mxu0 0.0
    %5509 = vmatpush1.msra.mxu0 0.0
    %5510 = vmatprep.subr.mxu0 0.0
    %5511 = vmatpush1.msra.mxu0 0.0
    %5512 = vmatprep.subr.mxu0 0.0
    %5513 = vmatpush1.msra.mxu0 0.0
    %5514 = vmatprep.subr.mxu0 0.0
    %5515 = vmatpush1.msra.mxu0 0.0
    %5516 = vmatprep.subr.mxu0 0.0
    %5517 = vmatpush1.msra.mxu0 0.0
    %5518 = vmatprep.subr.mxu0 0.0
    %5519 = vmatpush1.msra.mxu0 0.0
    %5520 = vmatprep.mubr.f32.mxu0 0.0
    %5521 = vmatmul.mubr.f32.gmra.mrb[0].mxu0 %v5442
    %v5522 = vpop.f32.mrb[0].mxu0
    %v5523 = vadd.f32 %v5454, %v5522
    %v5524 = vpop.f32.mrb[0].mxu0
    %5525 = vmatprep.mubr.f32.mxu0 0.0
    %5526 = vmatmul.mubr.f32.gmra.mrb[0].mxu0 %v5443
    %v5527 = vpop.f32.mrb[0].mxu0
    %v5528 = vadd.f32 %v5454, %v5527
    %v5529 = vpop.f32.mrb[0].mxu0
    %5530 = vmatprep.mubr.f32.mxu0 0.0
    %5531 = vmatmul.mubr.f32.gmra.mrb[0].mxu0 %v5444
    %v5532 = vpop.f32.mrb[0].mxu0
    %v5533 = vadd.f32 %v5454, %v5532
    %v5534 = vpop.f32.mrb[0].mxu0
    %5535 = vmatprep.mubr.f32.mxu0 0.0
    %5536 = vmatmul.mubr.f32.gmra.mrb[0].mxu0 %v5445
    %v5537 = vpop.f32.mrb[0].mxu0
    %v5538 = vadd.f32 %v5454, %v5537
    %v5539 = vpop.f32.mrb[0].mxu0
    %5540 = vmatprep.mubr.f32.mxu0 0.0
    %5541 = vmatmul.mubr.f32.gmra.mrb[0].mxu0 %v5446
    %v5542 = vpop.f32.mrb[0].mxu0
    %v5543 = vadd.f32 %v5454, %v5542
    %v5544 = vpop.f32.mrb[0].mxu0
    %5545 = vmatprep.mubr.f32.mxu0 0.0
    %5546 = vmatmul.mubr.f32.gmra.mrb[0].mxu0 %v5447
    %v5547 = vpop.f32.mrb[0].mxu0
    %v5548 = vadd.f32 %v5454, %v5547
    %v5549 = vpop.f32.mrb[0].mxu0
    %5550 = vmatprep.mubr.f32.mxu0 0.0
    %5551 = vmatmul.mubr.f32.gmra.mrb[0].mxu0 %v5448
    %v5552 = vpop.f32.mrb[0].mxu0
    %v5553 = vadd.f32 %v5454, %v5552
    %v5554 = vpop.f32.mrb[0].mxu0
    %5555 = vmatprep.mubr.f32.mxu0 0.0
    %5556 = vmatmul.mubr.f32.gmra.mrb[0].mxu0 %v5449
    %v5557 = vpop.f32.mrb[0].mxu0
    %v5558 = vadd.f32 %v5454, %v5557
    %v5559 = vpop.f32.mrb[0].mxu0
    %5560 = vdwg.mxu0
    %5561 = vst.msk [vmem:[#allocation47] sm:$0xff] %vm578, %v5523
    %5562 = vst.msk [vmem:[#allocation47 + $0x8] sm:$0xff] %vm578, %v5528
    %5563 = vst.msk [vmem:[#allocation47 + $0x10] sm:$0xff] %vm578, %v5533
    %5564 = vst.msk [vmem:[#allocation47 + $0x18] sm:$0xff] %vm578, %v5538
    %5565 = vst.msk [vmem:[#allocation47 + $0x20] sm:$0xff] %vm578, %v5543
    %5566 = vst.msk [vmem:[#allocation47 + $0x28] sm:$0xff] %vm578, %v5548
    %5567 = vst.msk [vmem:[#allocation47 + $0x30] sm:$0xff] %vm578, %v5553
    %5568 = vst.msk [vmem:[#allocation47 + $0x38] sm:$0xff] %vm578, %v5558
    // Predicated region
    $region290: #{fused_forward.1} parent=1 // pred_check
      _
    $region291: #{fused_forward.1} parent=1 // pred_check_branch
      %5570 = sbr.rel (0) target = $region293
    $region292: #{fused_forward.1} parent=1 // pred_region
      %s5572 = ssub.s32 1024, 1024
      %5573 = vsyncadd [#allocation4], %s5572
      %s5574 = sshll.u32 [#allocation47], 4
      %s5575 = int_to_ptr.vmem [resolvable:$true] %s5574
      %5580 = dma.vmem_to_hbm [thread:$0]  %s5575, 1024, %s87, [#allocation4], 128, 128, 8
    $region293: #{fused_forward.1} parent=1 // pred_fallthru
      _
    // Predicated region
    $region294: #{fused_forward.1} parent=1 // pred_check
      _
    $region295: #{fused_forward.1} parent=1 // pred_check_branch
      %5582 = sbr.rel (0) target = $region297
    $region296: #{fused_forward.1} parent=1 // pred_region
      %5583 = dma.done [#allocation4], 1024
    $region297: #{fused_forward.1} parent=1 // pred_fallthru
      _
    %5584 = vsyncpa [#allocation3], 1
    %5585 = vsyncpa [#allocation6], 1
    %5586 = vsyncpa [#allocation9], 1
    %5587 = vsyncpa [#allocation12], 1
    %5588 = vsyncpa [#allocation15], 1
    %5589 = vsyncpa [#allocation18], 1
    %5590 = vsyncpa [#allocation21], 1
    %5591 = vsyncpa [#allocation24], 1
    %5592 = vsyncpa [#allocation27], 1
    %5593 = vsyncpa [#allocation30], 1
    %5594 = vsyncpa [#allocation33], 1
    %5595 = vsyncpa [#allocation36], 1
    %5596 = vsyncpa [#allocation39], 1
    %5597 = vsyncpa [#allocation42], 1
    %5598 = vsyncpa [#allocation45], 1
    %5599 = vsyncpa [#allocation4], 1

</llo_original>
